<compile_context>
chip_gen: v7x
topology: tpu7x:2x2x1
jax: 0.10.0
libtpu: 0.0.40
codegen_flags: <defaults>
</compile_context>

<pallas_src>
import functools

import jax
import jax.numpy as jnp
from jax.experimental import pallas as pl
from jax.experimental.pallas import tpu as pltpu

HIDDEN = 50          # LSTM hidden size
CONV_OUT = 64        # Conv1d out channels
KSIZE = 2            # Conv1d kernel size
GATE_PAD = 128       # lanes per gate block (i, f, g, o)
HID_PAD = 128        # padded hidden width
NGATES = 4
G_TOTAL = NGATES * GATE_PAD   # 512 padded gate columns
K_PAD = 128          # padded contraction dim for the xg prologue matmul


def cnn_lstm_kernel(a_ref, v_ref, whh_ref, gs_ref, go_ref, fcw_ref, fcb_ref,
                    out_ref, xg_ref, *, T, B):
    # ---- Hoisted time-parallel part: conv + input projection + biases -------
    # One skinny MXU matmul fills the whole sublane/lane-dense gate table.
    xg_ref[...] = jnp.dot(a_ref[...], v_ref[...],
                          preferred_element_type=jnp.float32)

    gs = gs_ref[...]                        # (1, 512) post-tanh scale (0.5 / 1)
    go = go_ref[...]                        # (1, 512) post-tanh offset (0.5 / 0)
    GP = GATE_PAD

    # ---- Serial recurrence: only h @ W_hh^T is on the critical path ---------
    h = jnp.zeros((B, HID_PAD), jnp.float32)
    c = jnp.zeros((B, HID_PAD), jnp.float32)
    for t in range(T):                      # fully unrolled (T static, small)
        xg_t = xg_ref[t * B:(t + 1) * B, :]            # 8-sublane aligned read
        # bf16 LHS/RHS, f32 accumulate; whh read from the ref every step so the
        # (128,512) weight is never held live across the unroll.
        gates = xg_t + jnp.dot(h.astype(jnp.bfloat16), whh_ref[...],
                               preferred_element_type=jnp.float32)
        a = jnp.tanh(gates)                 # single EUP launch for all 4 gates
        act = a * gs + go                   # i/f/o -> sigmoid, g -> tanh
        i = act[:, 0:GP]
        f = act[:, GP:2 * GP]
        g = act[:, 2 * GP:3 * GP]
        o = act[:, 3 * GP:4 * GP]
        c = f * c + i * g                   # padded lanes stay exactly 0
        h = o * jnp.tanh(c)

    # fc: Linear(50 -> 1) as VPU multiply + lane reduction (rows 50:128 zero).
    out_ref[...] = (jnp.sum(h * fcw_ref[...], axis=-1, keepdims=True)
                    + fcb_ref[...])


def _pad_gate_columns(m):
    """(rows, 4H) PyTorch-gate-ordered matrix -> (rows, 4*128) lane-aligned."""
    rows = m.shape[0]
    out = jnp.zeros((rows, G_TOTAL), jnp.float32)
    for g in range(NGATES):
        out = out.at[:, g * GATE_PAD:g * GATE_PAD + HIDDEN].set(
            m[:, g * HIDDEN:(g + 1) * HIDDEN])
    return out


def cnn_lstm_forward(x, params):
    """x: (B, 1, W) float32 (PyTorch NCW).  Returns (B,) like out.squeeze(1)."""
    B, C, W = x.shape
    assert C == 1
    T = W - (KSIZE - 1)
    Bp = max(8, ((B + 7) // 8) * 8)         # pad batch to full sublanes

    cw, cb, wih, whh, b, fcw, fcb = params
    H = HIDDEN

    # ---- One-time weight prep (plain XLA, outside the kernel) ---------------
    wih_p = _pad_gate_columns(wih)                               # (64, 512)
    whh_p = jnp.zeros((HID_PAD, G_TOTAL), jnp.float32)
    whh_p = whh_p.at[:H, :].set(_pad_gate_columns(whh))          # (128, 512)
    b_p = _pad_gate_columns(b)                                   # (1, 512)

    # Fold Conv1d taps/bias through the input projection.
    v0 = cw[0:1, :] @ wih_p                                      # (1, 512)
    v1 = cw[1:2, :] @ wih_p                                      # (1, 512)
    vb = cb @ wih_p + b_p                                        # (1, 512)

    # Fused-activation pre-scaling: i/f/o gate columns carry 0.5 so that
    # sigmoid(z) = 0.5*tanh(z/2) + 0.5 becomes one tanh over all 4 gate blocks.
    lane = jnp.arange(G_TOTAL)
    is_g = (lane >= 2 * GATE_PAD) & (lane < 3 * GATE_PAD)
    pre_scale = jnp.where(is_g, 1.0, 0.5).astype(jnp.float32)[None, :]  # (1,512)
    post_scale = pre_scale                                              # same pattern
    post_off = jnp.where(is_g, 0.0, 0.5).astype(jnp.float32)[None, :]

    v0 = v0 * pre_scale
    v1 = v1 * pre_scale
    vb = vb * pre_scale
    whh_bf16 = (whh_p * pre_scale).astype(jnp.bfloat16)          # (128, 512) bf16

    # V: rows [v0; v1; vb; 0...] for the prologue matmul.
    V = jnp.zeros((K_PAD, G_TOTAL), jnp.float32)
    V = V.at[0].set(v0[0]).at[1].set(v1[0]).at[2].set(vb[0])

    # A: (T*Bp, 128), row t*Bp + b = [x[b,t], x[b,t+1], 1, 0...].
    xb = x.reshape(B, W).astype(jnp.float32)
    x0 = xb[:, :T].T                                             # (T, B)
    x1 = xb[:, 1:W].T                                            # (T, B)
    ones = jnp.ones((T, B), jnp.float32)
    a_small = jnp.stack([x0, x1, ones], axis=-1)                 # (T, B, 3)
    A = jnp.zeros((T, Bp, K_PAD), jnp.float32)
    A = A.at[:, :B, :3].set(a_small)
    A = A.reshape(T * Bp, K_PAD)

    fcw_row = jnp.zeros((1, HID_PAD), jnp.float32).at[0, :H].set(fcw[:, 0])

    vmem = pl.BlockSpec(memory_space=pltpu.MemorySpace.VMEM)
    kernel = functools.partial(cnn_lstm_kernel, T=T, B=Bp)
    out = pl.pallas_call(
        kernel,
        out_shape=jax.ShapeDtypeStruct((Bp, 1), jnp.float32),
        in_specs=[vmem] * 7,
        out_specs=vmem,
        scratch_shapes=[pltpu.VMEM((T * Bp, G_TOTAL), jnp.float32)],
    )(A, V, whh_bf16, post_scale, post_off, fcw_row, fcb)
    return out[:B, 0]


def make_params(key):
    """Deterministic parameter init matching PyTorch module shapes."""
    ks = jax.random.split(key, 7)
    H, F = HIDDEN, CONV_OUT
    # Conv1d(1, 64, kernel_size=2): torch weight (64, 1, 2) -> ours (2, 64)
    conv_w = jax.random.normal(ks[0], (F, 1, KSIZE), jnp.float32) * 0.2
    cw = jnp.transpose(conv_w[:, 0, :], (1, 0))                 # (2, 64)
    cb = (jax.random.normal(ks[1], (F,), jnp.float32) * 0.1).reshape(1, F)
    # LSTM: torch weight_ih (4H, 64), weight_hh (4H, H), biases (4H,)
    w_ih = jax.random.normal(ks[2], (4 * H, F), jnp.float32) * 0.1
    w_hh = jax.random.normal(ks[3], (4 * H, H), jnp.float32) * 0.1
    b_ih = jax.random.normal(ks[4], (4 * H,), jnp.float32) * 0.05
    b_hh = jax.random.normal(ks[5], (4 * H,), jnp.float32) * 0.05
    wih = jnp.transpose(w_ih, (1, 0))                           # (64, 200)
    whh = jnp.transpose(w_hh, (1, 0))                           # (50, 200)
    b = (b_ih + b_hh).reshape(1, 4 * H)                         # (1, 200)
    # Linear(50, 1): torch weight (1, 50), bias (1,)
    fc_w = jax.random.normal(ks[6], (1, H), jnp.float32) * 0.1
    fcw = jnp.transpose(fc_w, (1, 0))                           # (50, 1)
    fcb = jnp.zeros((1, 1), jnp.float32)
    return (cw, cb, wih, whh, b, fcw, fcb)


def reference_forward(x, params):
    """Pure-JAX f32 reference mirroring the PyTorch forward (eval mode)."""
    cw, cb, wih, whh, b, fcw, fcb = params
    B, _, W = x.shape
    xb = x.reshape(B, W)
    T = W - 1
    H = HIDDEN
    # conv + permute -> (B, T, 64)
    feat = (xb[:, :T, None] * cw[0][None, None, :]
            + xb[:, 1:T + 1, None] * cw[1][None, None, :] + cb[None, :, :])
    h = jnp.zeros((B, H), jnp.float32)
    c = jnp.zeros((B, H), jnp.float32)
    for t in range(T):
        gates = feat[:, t, :] @ wih + h @ whh + b
        i = jax.nn.sigmoid(gates[:, 0:H])
        f = jax.nn.sigmoid(gates[:, H:2 * H])
        g = jnp.tanh(gates[:, 2 * H:3 * H])
        o = jax.nn.sigmoid(gates[:, 3 * H:4 * H])
        c = f * c + i * g
        h = o * jnp.tanh(c)
    return (h @ fcw + fcb)[:, 0]


if __name__ == "__main__":
    key = jax.random.PRNGKey(0)
    kx, kp = jax.random.split(key)

    B, WINDOW = 8, 16                      # batch=8 (full sublane), window=16
    x = jax.random.normal(kx, (B, 1, WINDOW), jnp.float32)
    params = make_params(kp)

    out = jax.block_until_ready(cnn_lstm_forward(x, params))
    ref = jax.block_until_ready(reference_forward(x, params))

    assert out.shape == (B,), out.shape
    # bf16 MXU inputs on the recurrence (f32 accumulate/state) -> modest tol.
    assert jnp.allclose(out, ref, atol=2e-2, rtol=2e-2), (out, ref)
    print("KERNEL_OK")
</pallas_src>

<mosaic_0001>
module attributes {stable_mosaic.version = 11 : i64} {
  func.func @cnn_lstm_kernel(%arg0: memref<120x128xf32, #tpu.memory_space<vmem>>, %arg1: memref<128x512xf32, #tpu.memory_space<vmem>>, %arg2: memref<128x512xbf16, #tpu.memory_space<vmem>>, %arg3: memref<1x512xf32, #tpu.memory_space<vmem>>, %arg4: memref<1x512xf32, #tpu.memory_space<vmem>>, %arg5: memref<1x128xf32, #tpu.memory_space<vmem>>, %arg6: memref<1x1xf32, #tpu.memory_space<vmem>>, %arg7: memref<8x1xf32, #tpu.memory_space<vmem>>, %arg8: memref<120x512xf32, #tpu.memory_space<vmem>>) attributes {dimension_semantics = [], scalar_prefetch = 0 : i64, scratch_operands = 1 : i64, tpu.core_type = #tpu.core_type<tc>} {
    %c0 = arith.constant 0 : index
    %c0_0 = arith.constant 0 : index
    %0 = vector.load %arg0[%c0, %c0_0] : memref<120x128xf32, #tpu.memory_space<vmem>>, vector<120x128xf32>
    %c0_1 = arith.constant 0 : index
    %c0_2 = arith.constant 0 : index
    %1 = vector.load %arg1[%c0_1, %c0_2] : memref<128x512xf32, #tpu.memory_space<vmem>>, vector<128x512xf32>
    %cst = arith.constant dense<0.000000e+00> : vector<120x512xf32>
    %2 = tpu.matmul %0, %1, %cst {dimension_numbers = #tpu.dot_dimension_numbers<[1], [0], [0], [1], [0, 0, 1, 1], [], []>} : vector<120x128xf32>, vector<128x512xf32>, vector<120x512xf32> -> vector<120x512xf32>
    %c0_3 = arith.constant 0 : index
    %c0_4 = arith.constant 0 : index
    %3 = vector.load %arg8[%c0_3, %c0_4] : memref<120x512xf32, #tpu.memory_space<vmem>>, vector<120x512xf32>
    tpu.vector_store %arg8[%c0_3, %c0_4], %2 {strides = array<i32>} : memref<120x512xf32, #tpu.memory_space<vmem>>, vector<120x512xf32>,
    %c0_5 = arith.constant 0 : index
    %c0_6 = arith.constant 0 : index
    %4 = vector.load %arg3[%c0_5, %c0_6] : memref<1x512xf32, #tpu.memory_space<vmem>>, vector<1x512xf32>
    %c0_7 = arith.constant 0 : index
    %c0_8 = arith.constant 0 : index
    %5 = vector.load %arg4[%c0_7, %c0_8] : memref<1x512xf32, #tpu.memory_space<vmem>>, vector<1x512xf32>
    %cst_9 = arith.constant 0.000000e+00 : f32
    %6 = vector.broadcast %cst_9 : f32 to vector<8x128xf32>
    %cst_10 = arith.constant 0.000000e+00 : f32
    %7 = vector.broadcast %cst_10 : f32 to vector<8x128xf32>
    %c0_11 = arith.constant 0 : index
    %c0_12 = arith.constant 0 : index
    %8 = vector.load %arg8[%c0_11, %c0_12] : memref<120x512xf32, #tpu.memory_space<vmem>>, vector<8x512xf32>
    %9 = arith.truncf %6 : vector<8x128xf32> to vector<8x128xbf16>
    %c0_13 = arith.constant 0 : index
    %c0_14 = arith.constant 0 : index
    %10 = vector.load %arg2[%c0_13, %c0_14] : memref<128x512xbf16, #tpu.memory_space<vmem>>, vector<128x512xbf16>
    %cst_15 = arith.constant dense<0.000000e+00> : vector<8x512xf32>
    %11 = tpu.matmul %9, %10, %cst_15 {dimension_numbers = #tpu.dot_dimension_numbers<[1], [0], [0], [1], [0, 0, 1, 1], [], []>} : vector<8x128xbf16>, vector<128x512xbf16>, vector<8x512xf32> -> vector<8x512xf32>
    %12 = arith.addf %8, %11 : vector<8x512xf32>
    %13 = math.tanh %12 : vector<8x512xf32>
    %14 = vector.broadcast %4 : vector<1x512xf32> to vector<8x512xf32>
    %15 = arith.mulf %13, %14 : vector<8x512xf32>
    %16 = vector.broadcast %5 : vector<1x512xf32> to vector<8x512xf32>
    %17 = arith.addf %15, %16 : vector<8x512xf32>
    %18 = vector.extract_strided_slice %17 {offsets = [0, 0], sizes = [8, 128], strides = [1, 1]} : vector<8x512xf32> to vector<8x128xf32>
    %19 = vector.extract_strided_slice %17 {offsets = [0, 128], sizes = [8, 128], strides = [1, 1]} : vector<8x512xf32> to vector<8x128xf32>
    %20 = vector.extract_strided_slice %17 {offsets = [0, 256], sizes = [8, 128], strides = [1, 1]} : vector<8x512xf32> to vector<8x128xf32>
    %21 = vector.extract_strided_slice %17 {offsets = [0, 384], sizes = [8, 128], strides = [1, 1]} : vector<8x512xf32> to vector<8x128xf32>
    %22 = arith.mulf %19, %7 : vector<8x128xf32>
    %23 = arith.mulf %18, %20 : vector<8x128xf32>
    %24 = arith.addf %22, %23 : vector<8x128xf32>
    %25 = math.tanh %24 : vector<8x128xf32>
    %26 = arith.mulf %21, %25 : vector<8x128xf32>
    %c8 = arith.constant 8 : index
    %c0_16 = arith.constant 0 : index
    %27 = vector.load %arg8[%c8, %c0_16] : memref<120x512xf32, #tpu.memory_space<vmem>>, vector<8x512xf32>
    %28 = arith.truncf %26 : vector<8x128xf32> to vector<8x128xbf16>
    %c0_17 = arith.constant 0 : index
    %c0_18 = arith.constant 0 : index
    %29 = vector.load %arg2[%c0_17, %c0_18] : memref<128x512xbf16, #tpu.memory_space<vmem>>, vector<128x512xbf16>
    %cst_19 = arith.constant dense<0.000000e+00> : vector<8x512xf32>
    %30 = tpu.matmul %28, %29, %cst_19 {dimension_numbers = #tpu.dot_dimension_numbers<[1], [0], [0], [1], [0, 0, 1, 1], [], []>} : vector<8x128xbf16>, vector<128x512xbf16>, vector<8x512xf32> -> vector<8x512xf32>
    %31 = arith.addf %27, %30 : vector<8x512xf32>
    %32 = math.tanh %31 : vector<8x512xf32>
    %33 = vector.broadcast %4 : vector<1x512xf32> to vector<8x512xf32>
    %34 = arith.mulf %32, %33 : vector<8x512xf32>
    %35 = vector.broadcast %5 : vector<1x512xf32> to vector<8x512xf32>
    %36 = arith.addf %34, %35 : vector<8x512xf32>
    %37 = vector.extract_strided_slice %36 {offsets = [0, 0], sizes = [8, 128], strides = [1, 1]} : vector<8x512xf32> to vector<8x128xf32>
    %38 = vector.extract_strided_slice %36 {offsets = [0, 128], sizes = [8, 128], strides = [1, 1]} : vector<8x512xf32> to vector<8x128xf32>
    %39 = vector.extract_strided_slice %36 {offsets = [0, 256], sizes = [8, 128], strides = [1, 1]} : vector<8x512xf32> to vector<8x128xf32>
    %40 = vector.extract_strided_slice %36 {offsets = [0, 384], sizes = [8, 128], strides = [1, 1]} : vector<8x512xf32> to vector<8x128xf32>
    %41 = arith.mulf %38, %24 : vector<8x128xf32>
    %42 = arith.mulf %37, %39 : vector<8x128xf32>
    %43 = arith.addf %41, %42 : vector<8x128xf32>
    %44 = math.tanh %43 : vector<8x128xf32>
    %45 = arith.mulf %40, %44 : vector<8x128xf32>
    %c16 = arith.constant 16 : index
    %c0_20 = arith.constant 0 : index
    %46 = vector.load %arg8[%c16, %c0_20] : memref<120x512xf32, #tpu.memory_space<vmem>>, vector<8x512xf32>
    %47 = arith.truncf %45 : vector<8x128xf32> to vector<8x128xbf16>
    %c0_21 = arith.constant 0 : index
    %c0_22 = arith.constant 0 : index
    %48 = vector.load %arg2[%c0_21, %c0_22] : memref<128x512xbf16, #tpu.memory_space<vmem>>, vector<128x512xbf16>
    %cst_23 = arith.constant dense<0.000000e+00> : vector<8x512xf32>
    %49 = tpu.matmul %47, %48, %cst_23 {dimension_numbers = #tpu.dot_dimension_numbers<[1], [0], [0], [1], [0, 0, 1, 1], [], []>} : vector<8x128xbf16>, vector<128x512xbf16>, vector<8x512xf32> -> vector<8x512xf32>
    %50 = arith.addf %46, %49 : vector<8x512xf32>
    %51 = math.tanh %50 : vector<8x512xf32>
    %52 = vector.broadcast %4 : vector<1x512xf32> to vector<8x512xf32>
    %53 = arith.mulf %51, %52 : vector<8x512xf32>
    %54 = vector.broadcast %5 : vector<1x512xf32> to vector<8x512xf32>
    %55 = arith.addf %53, %54 : vector<8x512xf32>
    %56 = vector.extract_strided_slice %55 {offsets = [0, 0], sizes = [8, 128], strides = [1, 1]} : vector<8x512xf32> to vector<8x128xf32>
    %57 = vector.extract_strided_slice %55 {offsets = [0, 128], sizes = [8, 128], strides = [1, 1]} : vector<8x512xf32> to vector<8x128xf32>
    %58 = vector.extract_strided_slice %55 {offsets = [0, 256], sizes = [8, 128], strides = [1, 1]} : vector<8x512xf32> to vector<8x128xf32>
    %59 = vector.extract_strided_slice %55 {offsets = [0, 384], sizes = [8, 128], strides = [1, 1]} : vector<8x512xf32> to vector<8x128xf32>
    %60 = arith.mulf %57, %43 : vector<8x128xf32>
    %61 = arith.mulf %56, %58 : vector<8x128xf32>
    %62 = arith.addf %60, %61 : vector<8x128xf32>
    %63 = math.tanh %62 : vector<8x128xf32>
    %64 = arith.mulf %59, %63 : vector<8x128xf32>
    %c24 = arith.constant 24 : index
    %c0_24 = arith.constant 0 : index
    %65 = vector.load %arg8[%c24, %c0_24] : memref<120x512xf32, #tpu.memory_space<vmem>>, vector<8x512xf32>
    %66 = arith.truncf %64 : vector<8x128xf32> to vector<8x128xbf16>
    %c0_25 = arith.constant 0 : index
    %c0_26 = arith.constant 0 : index
    %67 = vector.load %arg2[%c0_25, %c0_26] : memref<128x512xbf16, #tpu.memory_space<vmem>>, vector<128x512xbf16>
    %cst_27 = arith.constant dense<0.000000e+00> : vector<8x512xf32>
    %68 = tpu.matmul %66, %67, %cst_27 {dimension_numbers = #tpu.dot_dimension_numbers<[1], [0], [0], [1], [0, 0, 1, 1], [], []>} : vector<8x128xbf16>, vector<128x512xbf16>, vector<8x512xf32> -> vector<8x512xf32>
    %69 = arith.addf %65, %68 : vector<8x512xf32>
    %70 = math.tanh %69 : vector<8x512xf32>
    %71 = vector.broadcast %4 : vector<1x512xf32> to vector<8x512xf32>
    %72 = arith.mulf %70, %71 : vector<8x512xf32>
    %73 = vector.broadcast %5 : vector<1x512xf32> to vector<8x512xf32>
    %74 = arith.addf %72, %73 : vector<8x512xf32>
    %75 = vector.extract_strided_slice %74 {offsets = [0, 0], sizes = [8, 128], strides = [1, 1]} : vector<8x512xf32> to vector<8x128xf32>
    %76 = vector.extract_strided_slice %74 {offsets = [0, 128], sizes = [8, 128], strides = [1, 1]} : vector<8x512xf32> to vector<8x128xf32>
    %77 = vector.extract_strided_slice %74 {offsets = [0, 256], sizes = [8, 128], strides = [1, 1]} : vector<8x512xf32> to vector<8x128xf32>
    %78 = vector.extract_strided_slice %74 {offsets = [0, 384], sizes = [8, 128], strides = [1, 1]} : vector<8x512xf32> to vector<8x128xf32>
    %79 = arith.mulf %76, %62 : vector<8x128xf32>
    %80 = arith.mulf %75, %77 : vector<8x128xf32>
    %81 = arith.addf %79, %80 : vector<8x128xf32>
    %82 = math.tanh %81 : vector<8x128xf32>
    %83 = arith.mulf %78, %82 : vector<8x128xf32>
    %c32 = arith.constant 32 : index
    %c0_28 = arith.constant 0 : index
    %84 = vector.load %arg8[%c32, %c0_28] : memref<120x512xf32, #tpu.memory_space<vmem>>, vector<8x512xf32>
    %85 = arith.truncf %83 : vector<8x128xf32> to vector<8x128xbf16>
    %c0_29 = arith.constant 0 : index
    %c0_30 = arith.constant 0 : index
    %86 = vector.load %arg2[%c0_29, %c0_30] : memref<128x512xbf16, #tpu.memory_space<vmem>>, vector<128x512xbf16>
    %cst_31 = arith.constant dense<0.000000e+00> : vector<8x512xf32>
    %87 = tpu.matmul %85, %86, %cst_31 {dimension_numbers = #tpu.dot_dimension_numbers<[1], [0], [0], [1], [0, 0, 1, 1], [], []>} : vector<8x128xbf16>, vector<128x512xbf16>, vector<8x512xf32> -> vector<8x512xf32>
    %88 = arith.addf %84, %87 : vector<8x512xf32>
    %89 = math.tanh %88 : vector<8x512xf32>
    %90 = vector.broadcast %4 : vector<1x512xf32> to vector<8x512xf32>
    %91 = arith.mulf %89, %90 : vector<8x512xf32>
    %92 = vector.broadcast %5 : vector<1x512xf32> to vector<8x512xf32>
    %93 = arith.addf %91, %92 : vector<8x512xf32>
    %94 = vector.extract_strided_slice %93 {offsets = [0, 0], sizes = [8, 128], strides = [1, 1]} : vector<8x512xf32> to vector<8x128xf32>
    %95 = vector.extract_strided_slice %93 {offsets = [0, 128], sizes = [8, 128], strides = [1, 1]} : vector<8x512xf32> to vector<8x128xf32>
    %96 = vector.extract_strided_slice %93 {offsets = [0, 256], sizes = [8, 128], strides = [1, 1]} : vector<8x512xf32> to vector<8x128xf32>
    %97 = vector.extract_strided_slice %93 {offsets = [0, 384], sizes = [8, 128], strides = [1, 1]} : vector<8x512xf32> to vector<8x128xf32>
    %98 = arith.mulf %95, %81 : vector<8x128xf32>
    %99 = arith.mulf %94, %96 : vector<8x128xf32>
    %100 = arith.addf %98, %99 : vector<8x128xf32>
    %101 = math.tanh %100 : vector<8x128xf32>
    %102 = arith.mulf %97, %101 : vector<8x128xf32>
    %c40 = arith.constant 40 : index
    %c0_32 = arith.constant 0 : index
    %103 = vector.load %arg8[%c40, %c0_32] : memref<120x512xf32, #tpu.memory_space<vmem>>, vector<8x512xf32>
    %104 = arith.truncf %102 : vector<8x128xf32> to vector<8x128xbf16>
    %c0_33 = arith.constant 0 : index
    %c0_34 = arith.constant 0 : index
    %105 = vector.load %arg2[%c0_33, %c0_34] : memref<128x512xbf16, #tpu.memory_space<vmem>>, vector<128x512xbf16>
    %cst_35 = arith.constant dense<0.000000e+00> : vector<8x512xf32>
    %106 = tpu.matmul %104, %105, %cst_35 {dimension_numbers = #tpu.dot_dimension_numbers<[1], [0], [0], [1], [0, 0, 1, 1], [], []>} : vector<8x128xbf16>, vector<128x512xbf16>, vector<8x512xf32> -> vector<8x512xf32>
    %107 = arith.addf %103, %106 : vector<8x512xf32>
    %108 = math.tanh %107 : vector<8x512xf32>
    %109 = vector.broadcast %4 : vector<1x512xf32> to vector<8x512xf32>
    %110 = arith.mulf %108, %109 : vector<8x512xf32>
    %111 = vector.broadcast %5 : vector<1x512xf32> to vector<8x512xf32>
    %112 = arith.addf %110, %111 : vector<8x512xf32>
    %113 = vector.extract_strided_slice %112 {offsets = [0, 0], sizes = [8, 128], strides = [1, 1]} : vector<8x512xf32> to vector<8x128xf32>
    %114 = vector.extract_strided_slice %112 {offsets = [0, 128], sizes = [8, 128], strides = [1, 1]} : vector<8x512xf32> to vector<8x128xf32>
    %115 = vector.extract_strided_slice %112 {offsets = [0, 256], sizes = [8, 128], strides = [1, 1]} : vector<8x512xf32> to vector<8x128xf32>
    %116 = vector.extract_strided_slice %112 {offsets = [0, 384], sizes = [8, 128], strides = [1, 1]} : vector<8x512xf32> to vector<8x128xf32>
    %117 = arith.mulf %114, %100 : vector<8x128xf32>
    %118 = arith.mulf %113, %115 : vector<8x128xf32>
    %119 = arith.addf %117, %118 : vector<8x128xf32>
    %120 = math.tanh %119 : vector<8x128xf32>
    %121 = arith.mulf %116, %120 : vector<8x128xf32>
    %c48 = arith.constant 48 : index
    %c0_36 = arith.constant 0 : index
    %122 = vector.load %arg8[%c48, %c0_36] : memref<120x512xf32, #tpu.memory_space<vmem>>, vector<8x512xf32>
    %123 = arith.truncf %121 : vector<8x128xf32> to vector<8x128xbf16>
    %c0_37 = arith.constant 0 : index
    %c0_38 = arith.constant 0 : index
    %124 = vector.load %arg2[%c0_37, %c0_38] : memref<128x512xbf16, #tpu.memory_space<vmem>>, vector<128x512xbf16>
    %cst_39 = arith.constant dense<0.000000e+00> : vector<8x512xf32>
    %125 = tpu.matmul %123, %124, %cst_39 {dimension_numbers = #tpu.dot_dimension_numbers<[1], [0], [0], [1], [0, 0, 1, 1], [], []>} : vector<8x128xbf16>, vector<128x512xbf16>, vector<8x512xf32> -> vector<8x512xf32>
    %126 = arith.addf %122, %125 : vector<8x512xf32>
    %127 = math.tanh %126 : vector<8x512xf32>
    %128 = vector.broadcast %4 : vector<1x512xf32> to vector<8x512xf32>
    %129 = arith.mulf %127, %128 : vector<8x512xf32>
    %130 = vector.broadcast %5 : vector<1x512xf32> to vector<8x512xf32>
    %131 = arith.addf %129, %130 : vector<8x512xf32>
    %132 = vector.extract_strided_slice %131 {offsets = [0, 0], sizes = [8, 128], strides = [1, 1]} : vector<8x512xf32> to vector<8x128xf32>
    %133 = vector.extract_strided_slice %131 {offsets = [0, 128], sizes = [8, 128], strides = [1, 1]} : vector<8x512xf32> to vector<8x128xf32>
    %134 = vector.extract_strided_slice %131 {offsets = [0, 256], sizes = [8, 128], strides = [1, 1]} : vector<8x512xf32> to vector<8x128xf32>
    %135 = vector.extract_strided_slice %131 {offsets = [0, 384], sizes = [8, 128], strides = [1, 1]} : vector<8x512xf32> to vector<8x128xf32>
    %136 = arith.mulf %133, %119 : vector<8x128xf32>
    %137 = arith.mulf %132, %134 : vector<8x128xf32>
    %138 = arith.addf %136, %137 : vector<8x128xf32>
    %139 = math.tanh %138 : vector<8x128xf32>
    %140 = arith.mulf %135, %139 : vector<8x128xf32>
    %c56 = arith.constant 56 : index
    %c0_40 = arith.constant 0 : index
    %141 = vector.load %arg8[%c56, %c0_40] : memref<120x512xf32, #tpu.memory_space<vmem>>, vector<8x512xf32>
    %142 = arith.truncf %140 : vector<8x128xf32> to vector<8x128xbf16>
    %c0_41 = arith.constant 0 : index
    %c0_42 = arith.constant 0 : index
    %143 = vector.load %arg2[%c0_41, %c0_42] : memref<128x512xbf16, #tpu.memory_space<vmem>>, vector<128x512xbf16>
    %cst_43 = arith.constant dense<0.000000e+00> : vector<8x512xf32>
    %144 = tpu.matmul %142, %143, %cst_43 {dimension_numbers = #tpu.dot_dimension_numbers<[1], [0], [0], [1], [0, 0, 1, 1], [], []>} : vector<8x128xbf16>, vector<128x512xbf16>, vector<8x512xf32> -> vector<8x512xf32>
    %145 = arith.addf %141, %144 : vector<8x512xf32>
    %146 = math.tanh %145 : vector<8x512xf32>
    %147 = vector.broadcast %4 : vector<1x512xf32> to vector<8x512xf32>
    %148 = arith.mulf %146, %147 : vector<8x512xf32>
    %149 = vector.broadcast %5 : vector<1x512xf32> to vector<8x512xf32>
    %150 = arith.addf %148, %149 : vector<8x512xf32>
    %151 = vector.extract_strided_slice %150 {offsets = [0, 0], sizes = [8, 128], strides = [1, 1]} : vector<8x512xf32> to vector<8x128xf32>
    %152 = vector.extract_strided_slice %150 {offsets = [0, 128], sizes = [8, 128], strides = [1, 1]} : vector<8x512xf32> to vector<8x128xf32>
    %153 = vector.extract_strided_slice %150 {offsets = [0, 256], sizes = [8, 128], strides = [1, 1]} : vector<8x512xf32> to vector<8x128xf32>
    %154 = vector.extract_strided_slice %150 {offsets = [0, 384], sizes = [8, 128], strides = [1, 1]} : vector<8x512xf32> to vector<8x128xf32>
    %155 = arith.mulf %152, %138 : vector<8x128xf32>
    %156 = arith.mulf %151, %153 : vector<8x128xf32>
    %157 = arith.addf %155, %156 : vector<8x128xf32>
    %158 = math.tanh %157 : vector<8x128xf32>
    %159 = arith.mulf %154, %158 : vector<8x128xf32>
    %c64 = arith.constant 64 : index
    %c0_44 = arith.constant 0 : index
    %160 = vector.load %arg8[%c64, %c0_44] : memref<120x512xf32, #tpu.memory_space<vmem>>, vector<8x512xf32>
    %161 = arith.truncf %159 : vector<8x128xf32> to vector<8x128xbf16>
    %c0_45 = arith.constant 0 : index
    %c0_46 = arith.constant 0 : index
    %162 = vector.load %arg2[%c0_45, %c0_46] : memref<128x512xbf16, #tpu.memory_space<vmem>>, vector<128x512xbf16>
    %cst_47 = arith.constant dense<0.000000e+00> : vector<8x512xf32>
    %163 = tpu.matmul %161, %162, %cst_47 {dimension_numbers = #tpu.dot_dimension_numbers<[1], [0], [0], [1], [0, 0, 1, 1], [], []>} : vector<8x128xbf16>, vector<128x512xbf16>, vector<8x512xf32> -> vector<8x512xf32>
    %164 = arith.addf %160, %163 : vector<8x512xf32>
    %165 = math.tanh %164 : vector<8x512xf32>
    %166 = vector.broadcast %4 : vector<1x512xf32> to vector<8x512xf32>
    %167 = arith.mulf %165, %166 : vector<8x512xf32>
    %168 = vector.broadcast %5 : vector<1x512xf32> to vector<8x512xf32>
    %169 = arith.addf %167, %168 : vector<8x512xf32>
    %170 = vector.extract_strided_slice %169 {offsets = [0, 0], sizes = [8, 128], strides = [1, 1]} : vector<8x512xf32> to vector<8x128xf32>
    %171 = vector.extract_strided_slice %169 {offsets = [0, 128], sizes = [8, 128], strides = [1, 1]} : vector<8x512xf32> to vector<8x128xf32>
    %172 = vector.extract_strided_slice %169 {offsets = [0, 256], sizes = [8, 128], strides = [1, 1]} : vector<8x512xf32> to vector<8x128xf32>
    %173 = vector.extract_strided_slice %169 {offsets = [0, 384], sizes = [8, 128], strides = [1, 1]} : vector<8x512xf32> to vector<8x128xf32>
    %174 = arith.mulf %171, %157 : vector<8x128xf32>
    %175 = arith.mulf %170, %172 : vector<8x128xf32>
    %176 = arith.addf %174, %175 : vector<8x128xf32>
    %177 = math.tanh %176 : vector<8x128xf32>
    %178 = arith.mulf %173, %177 : vector<8x128xf32>
    %c72 = arith.constant 72 : index
    %c0_48 = arith.constant 0 : index
    %179 = vector.load %arg8[%c72, %c0_48] : memref<120x512xf32, #tpu.memory_space<vmem>>, vector<8x512xf32>
    %180 = arith.truncf %178 : vector<8x128xf32> to vector<8x128xbf16>
    %c0_49 = arith.constant 0 : index
    %c0_50 = arith.constant 0 : index
    %181 = vector.load %arg2[%c0_49, %c0_50] : memref<128x512xbf16, #tpu.memory_space<vmem>>, vector<128x512xbf16>
    %cst_51 = arith.constant dense<0.000000e+00> : vector<8x512xf32>
    %182 = tpu.matmul %180, %181, %cst_51 {dimension_numbers = #tpu.dot_dimension_numbers<[1], [0], [0], [1], [0, 0, 1, 1], [], []>} : vector<8x128xbf16>, vector<128x512xbf16>, vector<8x512xf32> -> vector<8x512xf32>
    %183 = arith.addf %179, %182 : vector<8x512xf32>
    %184 = math.tanh %183 : vector<8x512xf32>
    %185 = vector.broadcast %4 : vector<1x512xf32> to vector<8x512xf32>
    %186 = arith.mulf %184, %185 : vector<8x512xf32>
    %187 = vector.broadcast %5 : vector<1x512xf32> to vector<8x512xf32>
    %188 = arith.addf %186, %187 : vector<8x512xf32>
    %189 = vector.extract_strided_slice %188 {offsets = [0, 0], sizes = [8, 128], strides = [1, 1]} : vector<8x512xf32> to vector<8x128xf32>
    %190 = vector.extract_strided_slice %188 {offsets = [0, 128], sizes = [8, 128], strides = [1, 1]} : vector<8x512xf32> to vector<8x128xf32>
    %191 = vector.extract_strided_slice %188 {offsets = [0, 256], sizes = [8, 128], strides = [1, 1]} : vector<8x512xf32> to vector<8x128xf32>
    %192 = vector.extract_strided_slice %188 {offsets = [0, 384], sizes = [8, 128], strides = [1, 1]} : vector<8x512xf32> to vector<8x128xf32>
    %193 = arith.mulf %190, %176 : vector<8x128xf32>
    %194 = arith.mulf %189, %191 : vector<8x128xf32>
    %195 = arith.addf %193, %194 : vector<8x128xf32>
    %196 = math.tanh %195 : vector<8x128xf32>
    %197 = arith.mulf %192, %196 : vector<8x128xf32>
    %c80 = arith.constant 80 : index
    %c0_52 = arith.constant 0 : index
    %198 = vector.load %arg8[%c80, %c0_52] : memref<120x512xf32, #tpu.memory_space<vmem>>, vector<8x512xf32>
    %199 = arith.truncf %197 : vector<8x128xf32> to vector<8x128xbf16>
    %c0_53 = arith.constant 0 : index
    %c0_54 = arith.constant 0 : index
    %200 = vector.load %arg2[%c0_53, %c0_54] : memref<128x512xbf16, #tpu.memory_space<vmem>>, vector<128x512xbf16>
    %cst_55 = arith.constant dense<0.000000e+00> : vector<8x512xf32>
    %201 = tpu.matmul %199, %200, %cst_55 {dimension_numbers = #tpu.dot_dimension_numbers<[1], [0], [0], [1], [0, 0, 1, 1], [], []>} : vector<8x128xbf16>, vector<128x512xbf16>, vector<8x512xf32> -> vector<8x512xf32>
    %202 = arith.addf %198, %201 : vector<8x512xf32>
    %203 = math.tanh %202 : vector<8x512xf32>
    %204 = vector.broadcast %4 : vector<1x512xf32> to vector<8x512xf32>
    %205 = arith.mulf %203, %204 : vector<8x512xf32>
    %206 = vector.broadcast %5 : vector<1x512xf32> to vector<8x512xf32>
    %207 = arith.addf %205, %206 : vector<8x512xf32>
    %208 = vector.extract_strided_slice %207 {offsets = [0, 0], sizes = [8, 128], strides = [1, 1]} : vector<8x512xf32> to vector<8x128xf32>
    %209 = vector.extract_strided_slice %207 {offsets = [0, 128], sizes = [8, 128], strides = [1, 1]} : vector<8x512xf32> to vector<8x128xf32>
    %210 = vector.extract_strided_slice %207 {offsets = [0, 256], sizes = [8, 128], strides = [1, 1]} : vector<8x512xf32> to vector<8x128xf32>
    %211 = vector.extract_strided_slice %207 {offsets = [0, 384], sizes = [8, 128], strides = [1, 1]} : vector<8x512xf32> to vector<8x128xf32>
    %212 = arith.mulf %209, %195 : vector<8x128xf32>
    %213 = arith.mulf %208, %210 : vector<8x128xf32>
    %214 = arith.addf %212, %213 : vector<8x128xf32>
    %215 = math.tanh %214 : vector<8x128xf32>
    %216 = arith.mulf %211, %215 : vector<8x128xf32>
    %c88 = arith.constant 88 : index
    %c0_56 = arith.constant 0 : index
    %217 = vector.load %arg8[%c88, %c0_56] : memref<120x512xf32, #tpu.memory_space<vmem>>, vector<8x512xf32>
    %218 = arith.truncf %216 : vector<8x128xf32> to vector<8x128xbf16>
    %c0_57 = arith.constant 0 : index
    %c0_58 = arith.constant 0 : index
    %219 = vector.load %arg2[%c0_57, %c0_58] : memref<128x512xbf16, #tpu.memory_space<vmem>>, vector<128x512xbf16>
    %cst_59 = arith.constant dense<0.000000e+00> : vector<8x512xf32>
    %220 = tpu.matmul %218, %219, %cst_59 {dimension_numbers = #tpu.dot_dimension_numbers<[1], [0], [0], [1], [0, 0, 1, 1], [], []>} : vector<8x128xbf16>, vector<128x512xbf16>, vector<8x512xf32> -> vector<8x512xf32>
    %221 = arith.addf %217, %220 : vector<8x512xf32>
    %222 = math.tanh %221 : vector<8x512xf32>
    %223 = vector.broadcast %4 : vector<1x512xf32> to vector<8x512xf32>
    %224 = arith.mulf %222, %223 : vector<8x512xf32>
    %225 = vector.broadcast %5 : vector<1x512xf32> to vector<8x512xf32>
    %226 = arith.addf %224, %225 : vector<8x512xf32>
    %227 = vector.extract_strided_slice %226 {offsets = [0, 0], sizes = [8, 128], strides = [1, 1]} : vector<8x512xf32> to vector<8x128xf32>
    %228 = vector.extract_strided_slice %226 {offsets = [0, 128], sizes = [8, 128], strides = [1, 1]} : vector<8x512xf32> to vector<8x128xf32>
    %229 = vector.extract_strided_slice %226 {offsets = [0, 256], sizes = [8, 128], strides = [1, 1]} : vector<8x512xf32> to vector<8x128xf32>
    %230 = vector.extract_strided_slice %226 {offsets = [0, 384], sizes = [8, 128], strides = [1, 1]} : vector<8x512xf32> to vector<8x128xf32>
    %231 = arith.mulf %228, %214 : vector<8x128xf32>
    %232 = arith.mulf %227, %229 : vector<8x128xf32>
    %233 = arith.addf %231, %232 : vector<8x128xf32>
    %234 = math.tanh %233 : vector<8x128xf32>
    %235 = arith.mulf %230, %234 : vector<8x128xf32>
    %c96 = arith.constant 96 : index
    %c0_60 = arith.constant 0 : index
    %236 = vector.load %arg8[%c96, %c0_60] : memref<120x512xf32, #tpu.memory_space<vmem>>, vector<8x512xf32>
    %237 = arith.truncf %235 : vector<8x128xf32> to vector<8x128xbf16>
    %c0_61 = arith.constant 0 : index
    %c0_62 = arith.constant 0 : index
    %238 = vector.load %arg2[%c0_61, %c0_62] : memref<128x512xbf16, #tpu.memory_space<vmem>>, vector<128x512xbf16>
    %cst_63 = arith.constant dense<0.000000e+00> : vector<8x512xf32>
    %239 = tpu.matmul %237, %238, %cst_63 {dimension_numbers = #tpu.dot_dimension_numbers<[1], [0], [0], [1], [0, 0, 1, 1], [], []>} : vector<8x128xbf16>, vector<128x512xbf16>, vector<8x512xf32> -> vector<8x512xf32>
    %240 = arith.addf %236, %239 : vector<8x512xf32>
    %241 = math.tanh %240 : vector<8x512xf32>
    %242 = vector.broadcast %4 : vector<1x512xf32> to vector<8x512xf32>
    %243 = arith.mulf %241, %242 : vector<8x512xf32>
    %244 = vector.broadcast %5 : vector<1x512xf32> to vector<8x512xf32>
    %245 = arith.addf %243, %244 : vector<8x512xf32>
    %246 = vector.extract_strided_slice %245 {offsets = [0, 0], sizes = [8, 128], strides = [1, 1]} : vector<8x512xf32> to vector<8x128xf32>
    %247 = vector.extract_strided_slice %245 {offsets = [0, 128], sizes = [8, 128], strides = [1, 1]} : vector<8x512xf32> to vector<8x128xf32>
    %248 = vector.extract_strided_slice %245 {offsets = [0, 256], sizes = [8, 128], strides = [1, 1]} : vector<8x512xf32> to vector<8x128xf32>
    %249 = vector.extract_strided_slice %245 {offsets = [0, 384], sizes = [8, 128], strides = [1, 1]} : vector<8x512xf32> to vector<8x128xf32>
    %250 = arith.mulf %247, %233 : vector<8x128xf32>
    %251 = arith.mulf %246, %248 : vector<8x128xf32>
    %252 = arith.addf %250, %251 : vector<8x128xf32>
    %253 = math.tanh %252 : vector<8x128xf32>
    %254 = arith.mulf %249, %253 : vector<8x128xf32>
    %c104 = arith.constant 104 : index
    %c0_64 = arith.constant 0 : index
    %255 = vector.load %arg8[%c104, %c0_64] : memref<120x512xf32, #tpu.memory_space<vmem>>, vector<8x512xf32>
    %256 = arith.truncf %254 : vector<8x128xf32> to vector<8x128xbf16>
    %c0_65 = arith.constant 0 : index
    %c0_66 = arith.constant 0 : index
    %257 = vector.load %arg2[%c0_65, %c0_66] : memref<128x512xbf16, #tpu.memory_space<vmem>>, vector<128x512xbf16>
    %cst_67 = arith.constant dense<0.000000e+00> : vector<8x512xf32>
    %258 = tpu.matmul %256, %257, %cst_67 {dimension_numbers = #tpu.dot_dimension_numbers<[1], [0], [0], [1], [0, 0, 1, 1], [], []>} : vector<8x128xbf16>, vector<128x512xbf16>, vector<8x512xf32> -> vector<8x512xf32>
    %259 = arith.addf %255, %258 : vector<8x512xf32>
    %260 = math.tanh %259 : vector<8x512xf32>
    %261 = vector.broadcast %4 : vector<1x512xf32> to vector<8x512xf32>
    %262 = arith.mulf %260, %261 : vector<8x512xf32>
    %263 = vector.broadcast %5 : vector<1x512xf32> to vector<8x512xf32>
    %264 = arith.addf %262, %263 : vector<8x512xf32>
    %265 = vector.extract_strided_slice %264 {offsets = [0, 0], sizes = [8, 128], strides = [1, 1]} : vector<8x512xf32> to vector<8x128xf32>
    %266 = vector.extract_strided_slice %264 {offsets = [0, 128], sizes = [8, 128], strides = [1, 1]} : vector<8x512xf32> to vector<8x128xf32>
    %267 = vector.extract_strided_slice %264 {offsets = [0, 256], sizes = [8, 128], strides = [1, 1]} : vector<8x512xf32> to vector<8x128xf32>
    %268 = vector.extract_strided_slice %264 {offsets = [0, 384], sizes = [8, 128], strides = [1, 1]} : vector<8x512xf32> to vector<8x128xf32>
    %269 = arith.mulf %266, %252 : vector<8x128xf32>
    %270 = arith.mulf %265, %267 : vector<8x128xf32>
    %271 = arith.addf %269, %270 : vector<8x128xf32>
    %272 = math.tanh %271 : vector<8x128xf32>
    %273 = arith.mulf %268, %272 : vector<8x128xf32>
    %c112 = arith.constant 112 : index
    %c0_68 = arith.constant 0 : index
    %274 = vector.load %arg8[%c112, %c0_68] : memref<120x512xf32, #tpu.memory_space<vmem>>, vector<8x512xf32>
    %275 = arith.truncf %273 : vector<8x128xf32> to vector<8x128xbf16>
    %c0_69 = arith.constant 0 : index
    %c0_70 = arith.constant 0 : index
    %276 = vector.load %arg2[%c0_69, %c0_70] : memref<128x512xbf16, #tpu.memory_space<vmem>>, vector<128x512xbf16>
    %cst_71 = arith.constant dense<0.000000e+00> : vector<8x512xf32>
    %277 = tpu.matmul %275, %276, %cst_71 {dimension_numbers = #tpu.dot_dimension_numbers<[1], [0], [0], [1], [0, 0, 1, 1], [], []>} : vector<8x128xbf16>, vector<128x512xbf16>, vector<8x512xf32> -> vector<8x512xf32>
    %278 = arith.addf %274, %277 : vector<8x512xf32>
    %279 = math.tanh %278 : vector<8x512xf32>
    %280 = vector.broadcast %4 : vector<1x512xf32> to vector<8x512xf32>
    %281 = arith.mulf %279, %280 : vector<8x512xf32>
    %282 = vector.broadcast %5 : vector<1x512xf32> to vector<8x512xf32>
    %283 = arith.addf %281, %282 : vector<8x512xf32>
    %284 = vector.extract_strided_slice %283 {offsets = [0, 0], sizes = [8, 128], strides = [1, 1]} : vector<8x512xf32> to vector<8x128xf32>
    %285 = vector.extract_strided_slice %283 {offsets = [0, 128], sizes = [8, 128], strides = [1, 1]} : vector<8x512xf32> to vector<8x128xf32>
    %286 = vector.extract_strided_slice %283 {offsets = [0, 256], sizes = [8, 128], strides = [1, 1]} : vector<8x512xf32> to vector<8x128xf32>
    %287 = vector.extract_strided_slice %283 {offsets = [0, 384], sizes = [8, 128], strides = [1, 1]} : vector<8x512xf32> to vector<8x128xf32>
    %288 = arith.mulf %285, %271 : vector<8x128xf32>
    %289 = arith.mulf %284, %286 : vector<8x128xf32>
    %290 = arith.addf %288, %289 : vector<8x128xf32>
    %291 = math.tanh %290 : vector<8x128xf32>
    %292 = arith.mulf %287, %291 : vector<8x128xf32>
    %c0_72 = arith.constant 0 : index
    %c0_73 = arith.constant 0 : index
    %293 = vector.load %arg5[%c0_72, %c0_73] : memref<1x128xf32, #tpu.memory_space<vmem>>, vector<1x128xf32>
    %294 = vector.broadcast %293 : vector<1x128xf32> to vector<8x128xf32>
    %295 = arith.mulf %292, %294 : vector<8x128xf32>
    %cst_74 = arith.constant dense<0.000000e+00> : vector<8xf32>
    %296 = vector.multi_reduction <add>, %295, %cst_74 [1] : vector<8x128xf32> to vector<8xf32>
    %297 = vector.shape_cast %296 : vector<8xf32> to vector<8x1xf32>
    %c0_75 = arith.constant 0 : index
    %c0_76 = arith.constant 0 : index
    %298 = vector.load %arg6[%c0_75, %c0_76] : memref<1x1xf32, #tpu.memory_space<vmem>>, vector<1x1xf32>
    %299 = vector.broadcast %298 : vector<1x1xf32> to vector<8x1xf32>
    %300 = arith.addf %297, %299 : vector<8x1xf32>
    %c0_77 = arith.constant 0 : index
    %c0_78 = arith.constant 0 : index
    %301 = vector.load %arg7[%c0_77, %c0_78] : memref<8x1xf32, #tpu.memory_space<vmem>>, vector<8x1xf32>
    tpu.vector_store %arg7[%c0_77, %c0_78], %300 {strides = array<i32>} : memref<8x1xf32, #tpu.memory_space<vmem>>, vector<8x1xf32>,
    return
  }
}

</mosaic_0001>

<llo_original>
// kernel: tpu_custom_call.1
$region0: #{tpu_custom_call.1}
  #allocation0 [shape = 'u32[]', space=smem, size = 0x4, offset = 0x4, fixed_abs, tag = 'smem constant byte address 0x4 - core index']
  #allocation1 [shape = 'u32[144,128]{1,0:T(1,128)}', space=vmem, size = 0x12000, scoped, tag = 'internal scratch']
  #allocation2 [shape = 'f32[120,512]{1,0:T(8,128)}', space=vmem, size = 0x3c000, scoped, tag = 'scratch operand']
  #allocation3 [shape = 'f32[1,1]{1,0:T(1,128)S(1)}', space=vmem, size = 0x200, scoped, tag = 'scoped memory for tpu_custom_call.1']
  %s0 = inlined_call_operand.hbm [shape: f32[120,128], index: 0, kind: input, shape index: {}]
  %s1 = inlined_call_operand.hbm [shape: f32[128,512], index: 1, kind: input, shape index: {}]
  %s2 = inlined_call_operand.hbm [shape: bf16[128,512], index: 2, kind: input, shape index: {}]
  %s3 = inlined_call_operand.vmem [shape: f32[1,512], index: 3, kind: input, shape index: {}]
  %s4 = inlined_call_operand.vmem [shape: f32[1,512], index: 4, kind: input, shape index: {}]
  %s5 = inlined_call_operand.vmem [shape: f32[1,128], index: 5, kind: input, shape index: {}]
  %s6 = inlined_call_operand.<no memory space> [shape: f32[1,1], index: 6, kind: input, shape index: {}]
  %s7 = inlined_call_operand.vmem [shape: f32[8,1], index: 7, kind: output, shape index: {}]
  %s8 = sld [smem:[#allocation0]]
  $region50: #{tpu_custom_call.1} parent=0
    _
  %s10 = ssub.s32 1, %s8
  %s11 = scalar_select 0, %s10, %s8
  %v12 = vstv %s6
  %13 = vst [vmem:[#allocation3] sm:$0x1] %v12
  $region1: #{tpu_custom_call.1} parent=0
    #allocation4 [shape = 'u8[61440]{0}', space=vmem, size = 0xf000, scoped, tag = 'input window, operand 0, single buffered']
    #allocation5 [shape = 's32[1]{0}', space=sflag, size = 0x4, scoped, tag = 'scoped memory for tpu_custom_call.1']
    #allocation6 [shape = 'u8[262144]{0}', space=vmem, size = 0x40000, scoped, tag = 'input window, operand 1, single buffered']
    #allocation7 [shape = 's32[1]{0}', space=sflag, size = 0x4, scoped, tag = 'scoped memory for tpu_custom_call.1']
    #allocation8 [shape = 'u8[131072]{0}', space=vmem, size = 0x20000, scoped, tag = 'input window, operand 2, single buffered']
    %14 = vsyncpa [#allocation5], 0
    %15 = vsyncpa [#allocation7], 0
    // Predicated region
    $region2: #{tpu_custom_call.1} parent=1 // pred_check
      _
    $region3: #{tpu_custom_call.1} parent=1 // pred_check_branch
      %17 = sbr.rel (0) target = $region5
    $region4: #{tpu_custom_call.1} parent=1 // pred_region
      %s19 = ssub.s32 1920, 1920
      %20 = vsyncadd [#allocation5], %s19
      %s21 = sshll.u32 [#allocation4], 4
      %s22 = int_to_ptr.vmem [resolvable:$true] %s21
      %27 = dma.hbm_to_vmem [thread:$0]  %s0, 1920, %s22, [#allocation5], 128, 128, 8
    $region5: #{tpu_custom_call.1} parent=1 // pred_fallthru
      _
    // Predicated region
    $region6: #{tpu_custom_call.1} parent=1 // pred_check
      _
    $region7: #{tpu_custom_call.1} parent=1 // pred_check_branch
      %29 = sbr.rel (0) target = $region9
    $region8: #{tpu_custom_call.1} parent=1 // pred_region
      %s31 = ssub.s32 8192, 8192
      %32 = vsyncadd [#allocation7], %s31
      %s33 = sshll.u32 [#allocation6], 4
      %s34 = int_to_ptr.vmem [resolvable:$true] %s33
      %39 = dma.hbm_to_vmem [thread:$0]  %s1, 8192, %s34, [#allocation7], 512, 512, 32
    $region9: #{tpu_custom_call.1} parent=1 // pred_fallthru
      _
    // Predicated region
    $region10: #{tpu_custom_call.1} parent=1 // pred_check
      _
    $region11: #{tpu_custom_call.1} parent=1 // pred_check_branch
      %41 = sbr.rel (0) target = $region13
    $region12: #{tpu_custom_call.1} parent=1 // pred_region
      %s43 = ssub.s32 4096, 4096
      %44 = vsyncadd [#allocation7], %s43
      %s45 = sshll.u32 [#allocation8], 4
      %s46 = int_to_ptr.vmem [resolvable:$true] %s45
      %51 = dma.hbm_to_vmem [thread:$0]  %s2, 4096, %s46, [#allocation7], 256, 256, 16
    $region13: #{tpu_custom_call.1} parent=1 // pred_fallthru
      _
    // Predicated region
    $region14: #{tpu_custom_call.1} parent=1 // pred_check
      _
    $region15: #{tpu_custom_call.1} parent=1 // pred_check_branch
      %53 = sbr.rel (0) target = $region17
    $region16: #{tpu_custom_call.1} parent=1 // pred_region
      _
    $region17: #{tpu_custom_call.1} parent=1 // pred_fallthru
      _
    // Predicated region
    $region18: #{tpu_custom_call.1} parent=1 // pred_check
      _
    $region19: #{tpu_custom_call.1} parent=1 // pred_check_branch
      %55 = sbr.rel (0) target = $region21
    $region20: #{tpu_custom_call.1} parent=1 // pred_region
      _
    $region21: #{tpu_custom_call.1} parent=1 // pred_fallthru
      _
    // Predicated region
    $region22: #{tpu_custom_call.1} parent=1 // pred_check
      _
    $region23: #{tpu_custom_call.1} parent=1 // pred_check_branch
      %57 = sbr.rel (0) target = $region25
    $region24: #{tpu_custom_call.1} parent=1 // pred_region
      _
    $region25: #{tpu_custom_call.1} parent=1 // pred_fallthru
      _
    // Predicated region
    $region26: #{tpu_custom_call.1} parent=1 // pred_check
      _
    $region27: #{tpu_custom_call.1} parent=1 // pred_check_branch
      %59 = sbr.rel (0) target = $region29
    $region28: #{tpu_custom_call.1} parent=1 // pred_region
      _
    $region29: #{tpu_custom_call.1} parent=1 // pred_fallthru
      _
    // Predicated region
    $region30: #{tpu_custom_call.1} parent=1 // pred_check
      _
    $region31: #{tpu_custom_call.1} parent=1 // pred_check_branch
      %61 = sbr.rel (0) target = $region33
    $region32: #{tpu_custom_call.1} parent=1 // pred_region
      %62 = dma.done [#allocation5], 1920
    $region33: #{tpu_custom_call.1} parent=1 // pred_fallthru
      _
    // Predicated region
    $region34: #{tpu_custom_call.1} parent=1 // pred_check
      _
    $region35: #{tpu_custom_call.1} parent=1 // pred_check_branch
      %64 = sbr.rel (0) target = $region37
    $region36: #{tpu_custom_call.1} parent=1 // pred_region
      %65 = dma.done [#allocation7], 8192
    $region37: #{tpu_custom_call.1} parent=1 // pred_fallthru
      _
    // Predicated region
    $region38: #{tpu_custom_call.1} parent=1 // pred_check
      _
    $region39: #{tpu_custom_call.1} parent=1 // pred_check_branch
      %67 = sbr.rel (0) target = $region41
    $region40: #{tpu_custom_call.1} parent=1 // pred_region
      %68 = dma.done [#allocation7], 4096
    $region41: #{tpu_custom_call.1} parent=1 // pred_fallthru
      _
    %v70 = vld [vmem:[#allocation4] sm:$0xff]
    %v71 = vld [vmem:[#allocation4 + $0x8] sm:$0xff]
    %v72 = vld [vmem:[#allocation4 + $0x10] sm:$0xff]
    %v73 = vld [vmem:[#allocation4 + $0x18] sm:$0xff]
    %v74 = vld [vmem:[#allocation4 + $0x20] sm:$0xff]
    %v75 = vld [vmem:[#allocation4 + $0x28] sm:$0xff]
    %v76 = vld [vmem:[#allocation4 + $0x30] sm:$0xff]
    %v77 = vld [vmem:[#allocation4 + $0x38] sm:$0xff]
    %v78 = vld [vmem:[#allocation4 + $0x40] sm:$0xff]
    %v79 = vld [vmem:[#allocation4 + $0x48] sm:$0xff]
    %v80 = vld [vmem:[#allocation4 + $0x50] sm:$0xff]
    %v81 = vld [vmem:[#allocation4 + $0x58] sm:$0xff]
    %v82 = vld [vmem:[#allocation4 + $0x60] sm:$0xff]
    %v83 = vld [vmem:[#allocation4 + $0x68] sm:$0xff]
    %v84 = vld [vmem:[#allocation4 + $0x70] sm:$0xff]
    %v85 = vld [vmem:[#allocation6] sm:$0xff]
    %v86 = vld [vmem:[#allocation6 + $0x8] sm:$0xff]
    %v87 = vld [vmem:[#allocation6 + $0x10] sm:$0xff]
    %v88 = vld [vmem:[#allocation6 + $0x18] sm:$0xff]
    %v89 = vld [vmem:[#allocation6 + $0x20] sm:$0xff]
    %v90 = vld [vmem:[#allocation6 + $0x28] sm:$0xff]
    %v91 = vld [vmem:[#allocation6 + $0x30] sm:$0xff]
    %v92 = vld [vmem:[#allocation6 + $0x38] sm:$0xff]
    %v93 = vld [vmem:[#allocation6 + $0x40] sm:$0xff]
    %v94 = vld [vmem:[#allocation6 + $0x48] sm:$0xff]
    %v95 = vld [vmem:[#allocation6 + $0x50] sm:$0xff]
    %v96 = vld [vmem:[#allocation6 + $0x58] sm:$0xff]
    %v97 = vld [vmem:[#allocation6 + $0x60] sm:$0xff]
    %v98 = vld [vmem:[#allocation6 + $0x68] sm:$0xff]
    %v99 = vld [vmem:[#allocation6 + $0x70] sm:$0xff]
    %v100 = vld [vmem:[#allocation6 + $0x78] sm:$0xff]
    %v101 = vld [vmem:[#allocation6 + $0x80] sm:$0xff]
    %v102 = vld [vmem:[#allocation6 + $0x88] sm:$0xff]
    %v103 = vld [vmem:[#allocation6 + $0x90] sm:$0xff]
    %v104 = vld [vmem:[#allocation6 + $0x98] sm:$0xff]
    %v105 = vld [vmem:[#allocation6 + $0xa0] sm:$0xff]
    %v106 = vld [vmem:[#allocation6 + $0xa8] sm:$0xff]
    %v107 = vld [vmem:[#allocation6 + $0xb0] sm:$0xff]
    %v108 = vld [vmem:[#allocation6 + $0xb8] sm:$0xff]
    %v109 = vld [vmem:[#allocation6 + $0xc0] sm:$0xff]
    %v110 = vld [vmem:[#allocation6 + $0xc8] sm:$0xff]
    %v111 = vld [vmem:[#allocation6 + $0xd0] sm:$0xff]
    %v112 = vld [vmem:[#allocation6 + $0xd8] sm:$0xff]
    %v113 = vld [vmem:[#allocation6 + $0xe0] sm:$0xff]
    %v114 = vld [vmem:[#allocation6 + $0xe8] sm:$0xff]
    %v115 = vld [vmem:[#allocation6 + $0xf0] sm:$0xff]
    %v116 = vld [vmem:[#allocation6 + $0xf8] sm:$0xff]
    %v117 = vld [vmem:[#allocation6 + $0x100] sm:$0xff]
    %v118 = vld [vmem:[#allocation6 + $0x108] sm:$0xff]
    %v119 = vld [vmem:[#allocation6 + $0x110] sm:$0xff]
    %v120 = vld [vmem:[#allocation6 + $0x118] sm:$0xff]
    %v121 = vld [vmem:[#allocation6 + $0x120] sm:$0xff]
    %v122 = vld [vmem:[#allocation6 + $0x128] sm:$0xff]
    %v123 = vld [vmem:[#allocation6 + $0x130] sm:$0xff]
    %v124 = vld [vmem:[#allocation6 + $0x138] sm:$0xff]
    %v125 = vld [vmem:[#allocation6 + $0x140] sm:$0xff]
    %v126 = vld [vmem:[#allocation6 + $0x148] sm:$0xff]
    %v127 = vld [vmem:[#allocation6 + $0x150] sm:$0xff]
    %v128 = vld [vmem:[#allocation6 + $0x158] sm:$0xff]
    %v129 = vld [vmem:[#allocation6 + $0x160] sm:$0xff]
    %v130 = vld [vmem:[#allocation6 + $0x168] sm:$0xff]
    %v131 = vld [vmem:[#allocation6 + $0x170] sm:$0xff]
    %v132 = vld [vmem:[#allocation6 + $0x178] sm:$0xff]
    %v133 = vld [vmem:[#allocation6 + $0x180] sm:$0xff]
    %v134 = vld [vmem:[#allocation6 + $0x188] sm:$0xff]
    %v135 = vld [vmem:[#allocation6 + $0x190] sm:$0xff]
    %v136 = vld [vmem:[#allocation6 + $0x198] sm:$0xff]
    %v137 = vld [vmem:[#allocation6 + $0x1a0] sm:$0xff]
    %v138 = vld [vmem:[#allocation6 + $0x1a8] sm:$0xff]
    %v139 = vld [vmem:[#allocation6 + $0x1b0] sm:$0xff]
    %v140 = vld [vmem:[#allocation6 + $0x1b8] sm:$0xff]
    %v141 = vld [vmem:[#allocation6 + $0x1c0] sm:$0xff]
    %v142 = vld [vmem:[#allocation6 + $0x1c8] sm:$0xff]
    %v143 = vld [vmem:[#allocation6 + $0x1d0] sm:$0xff]
    %v144 = vld [vmem:[#allocation6 + $0x1d8] sm:$0xff]
    %v145 = vld [vmem:[#allocation6 + $0x1e0] sm:$0xff]
    %v146 = vld [vmem:[#allocation6 + $0x1e8] sm:$0xff]
    %v147 = vld [vmem:[#allocation6 + $0x1f0] sm:$0xff]
    %v148 = vld [vmem:[#allocation6 + $0x1f8] sm:$0xff]
    %149 = vmatprep.subr.mxu0 %v86
    %150 = vmatpush1.msra.mxu0 %v85
    %151 = vmatprep.subr.mxu0 %v90
    %152 = vmatpush1.msra.mxu0 %v89
    %153 = vmatprep.subr.mxu0 %v94
    %154 = vmatpush1.msra.mxu0 %v93
    %155 = vmatprep.subr.mxu0 %v98
    %156 = vmatpush1.msra.mxu0 %v97
    %157 = vmatprep.subr.mxu0 %v102
    %158 = vmatpush1.msra.mxu0 %v101
    %159 = vmatprep.subr.mxu0 %v106
    %160 = vmatpush1.msra.mxu0 %v105
    %161 = vmatprep.subr.mxu0 %v110
    %162 = vmatpush1.msra.mxu0 %v109
    %163 = vmatprep.subr.mxu0 %v114
    %164 = vmatpush1.msra.mxu0 %v113
    %165 = vmatprep.subr.mxu0 %v118
    %166 = vmatpush1.msra.mxu0 %v117
    %167 = vmatprep.subr.mxu0 %v122
    %168 = vmatpush1.msra.mxu0 %v121
    %169 = vmatprep.subr.mxu0 %v126
    %170 = vmatpush1.msra.mxu0 %v125
    %171 = vmatprep.subr.mxu0 %v130
    %172 = vmatpush1.msra.mxu0 %v129
    %173 = vmatprep.subr.mxu0 %v134
    %174 = vmatpush1.msra.mxu0 %v133
    %175 = vmatprep.subr.mxu0 %v138
    %176 = vmatpush1.msra.mxu0 %v137
    %177 = vmatprep.subr.mxu0 %v142
    %178 = vmatpush1.msra.mxu0 %v141
    %179 = vmatprep.subr.mxu0 %v146
    %180 = vmatpush1.msra.mxu0 %v145
    %181 = vmatprep.subr.mxu0 0.0
    %182 = vmatpush1.msra.mxu0 0.0
    %183 = vmatprep.subr.mxu0 0.0
    %184 = vmatpush1.msra.mxu0 0.0
    %185 = vmatprep.subr.mxu0 0.0
    %186 = vmatpush1.msra.mxu0 0.0
    %187 = vmatprep.subr.mxu0 0.0
    %188 = vmatpush1.msra.mxu0 0.0
    %189 = vmatprep.subr.mxu0 0.0
    %190 = vmatpush1.msra.mxu0 0.0
    %191 = vmatprep.subr.mxu0 0.0
    %192 = vmatpush1.msra.mxu0 0.0
    %193 = vmatprep.subr.mxu0 0.0
    %194 = vmatpush1.msra.mxu0 0.0
    %195 = vmatprep.subr.mxu0 0.0
    %196 = vmatpush1.msra.mxu0 0.0
    %197 = vmatprep.subr.mxu0 0.0
    %198 = vmatpush1.msra.mxu0 0.0
    %199 = vmatprep.subr.mxu0 0.0
    %200 = vmatpush1.msra.mxu0 0.0
    %201 = vmatprep.subr.mxu0 0.0
    %202 = vmatpush1.msra.mxu0 0.0
    %203 = vmatprep.subr.mxu0 0.0
    %204 = vmatpush1.msra.mxu0 0.0
    %205 = vmatprep.subr.mxu0 0.0
    %206 = vmatpush1.msra.mxu0 0.0
    %207 = vmatprep.subr.mxu0 0.0
    %208 = vmatpush1.msra.mxu0 0.0
    %209 = vmatprep.subr.mxu0 0.0
    %210 = vmatpush1.msra.mxu0 0.0
    %211 = vmatprep.subr.mxu0 0.0
    %212 = vmatpush1.msra.mxu0 0.0
    %213 = vmatprep.mubr.f32.mxu0 0.0
    %214 = vmatmul.mubr.f32.gmra.mrb[0].mxu0 %v70
    %v215 = vpop.f32.mrb[0].mxu0
    %v216 = vadd.f32 0.0, %v215
    %v217 = vpop.f32.mrb[0].mxu0
    %v218 = vadd.f32 0.0, %v217
    %219 = vmatprep.mubr.f32.mxu0 0.0
    %220 = vmatmul.mubr.f32.gmra.mrb[0].mxu0 %v71
    %v221 = vpop.f32.mrb[0].mxu0
    %v222 = vadd.f32 0.0, %v221
    %v223 = vpop.f32.mrb[0].mxu0
    %v224 = vadd.f32 0.0, %v223
    %225 = vmatprep.mubr.f32.mxu0 0.0
    %226 = vmatmul.mubr.f32.gmra.mrb[0].mxu0 %v72
    %v227 = vpop.f32.mrb[0].mxu0
    %v228 = vadd.f32 0.0, %v227
    %v229 = vpop.f32.mrb[0].mxu0
    %v230 = vadd.f32 0.0, %v229
    %231 = vmatprep.mubr.f32.mxu0 0.0
    %232 = vmatmul.mubr.f32.gmra.mrb[0].mxu0 %v73
    %v233 = vpop.f32.mrb[0].mxu0
    %v234 = vadd.f32 0.0, %v233
    %v235 = vpop.f32.mrb[0].mxu0
    %v236 = vadd.f32 0.0, %v235
    %237 = vmatprep.mubr.f32.mxu0 0.0
    %238 = vmatmul.mubr.f32.gmra.mrb[0].mxu0 %v74
    %v239 = vpop.f32.mrb[0].mxu0
    %v240 = vadd.f32 0.0, %v239
    %v241 = vpop.f32.mrb[0].mxu0
    %v242 = vadd.f32 0.0, %v241
    %243 = vmatprep.mubr.f32.mxu0 0.0
    %244 = vmatmul.mubr.f32.gmra.mrb[0].mxu0 %v75
    %v245 = vpop.f32.mrb[0].mxu0
    %v246 = vadd.f32 0.0, %v245
    %v247 = vpop.f32.mrb[0].mxu0
    %v248 = vadd.f32 0.0, %v247
    %249 = vmatprep.mubr.f32.mxu0 0.0
    %250 = vmatmul.mubr.f32.gmra.mrb[0].mxu0 %v76
    %v251 = vpop.f32.mrb[0].mxu0
    %v252 = vadd.f32 0.0, %v251
    %v253 = vpop.f32.mrb[0].mxu0
    %v254 = vadd.f32 0.0, %v253
    %255 = vmatprep.mubr.f32.mxu0 0.0
    %256 = vmatmul.mubr.f32.gmra.mrb[0].mxu0 %v77
    %v257 = vpop.f32.mrb[0].mxu0
    %v258 = vadd.f32 0.0, %v257
    %v259 = vpop.f32.mrb[0].mxu0
    %v260 = vadd.f32 0.0, %v259
    %261 = vmatprep.mubr.f32.mxu0 0.0
    %262 = vmatmul.mubr.f32.gmra.mrb[0].mxu0 %v78
    %v263 = vpop.f32.mrb[0].mxu0
    %v264 = vadd.f32 0.0, %v263
    %v265 = vpop.f32.mrb[0].mxu0
    %v266 = vadd.f32 0.0, %v265
    %267 = vmatprep.mubr.f32.mxu0 0.0
    %268 = vmatmul.mubr.f32.gmra.mrb[0].mxu0 %v79
    %v269 = vpop.f32.mrb[0].mxu0
    %v270 = vadd.f32 0.0, %v269
    %v271 = vpop.f32.mrb[0].mxu0
    %v272 = vadd.f32 0.0, %v271
    %273 = vmatprep.mubr.f32.mxu0 0.0
    %274 = vmatmul.mubr.f32.gmra.mrb[0].mxu0 %v80
    %v275 = vpop.f32.mrb[0].mxu0
    %v276 = vadd.f32 0.0, %v275
    %v277 = vpop.f32.mrb[0].mxu0
    %v278 = vadd.f32 0.0, %v277
    %279 = vmatprep.mubr.f32.mxu0 0.0
    %280 = vmatmul.mubr.f32.gmra.mrb[0].mxu0 %v81
    %v281 = vpop.f32.mrb[0].mxu0
    %v282 = vadd.f32 0.0, %v281
    %v283 = vpop.f32.mrb[0].mxu0
    %v284 = vadd.f32 0.0, %v283
    %285 = vmatprep.mubr.f32.mxu0 0.0
    %286 = vmatmul.mubr.f32.gmra.mrb[0].mxu0 %v82
    %v287 = vpop.f32.mrb[0].mxu0
    %v288 = vadd.f32 0.0, %v287
    %v289 = vpop.f32.mrb[0].mxu0
    %v290 = vadd.f32 0.0, %v289
    %291 = vmatprep.mubr.f32.mxu0 0.0
    %292 = vmatmul.mubr.f32.gmra.mrb[0].mxu0 %v83
    %v293 = vpop.f32.mrb[0].mxu0
    %v294 = vadd.f32 0.0, %v293
    %v295 = vpop.f32.mrb[0].mxu0
    %v296 = vadd.f32 0.0, %v295
    %297 = vmatprep.mubr.f32.mxu0 0.0
    %298 = vmatmul.mubr.f32.gmra.mrb[0].mxu0 %v84
    %v299 = vpop.f32.mrb[0].mxu0
    %v300 = vadd.f32 0.0, %v299
    %v301 = vpop.f32.mrb[0].mxu0
    %v302 = vadd.f32 0.0, %v301
    %303 = vdwg.mxu0
    %304 = vmatprep.subr.mxu0 %v88
    %305 = vmatpush1.msra.mxu0 %v87
    %306 = vmatprep.subr.mxu0 %v92
    %307 = vmatpush1.msra.mxu0 %v91
    %308 = vmatprep.subr.mxu0 %v96
    %309 = vmatpush1.msra.mxu0 %v95
    %310 = vmatprep.subr.mxu0 %v100
    %311 = vmatpush1.msra.mxu0 %v99
    %312 = vmatprep.subr.mxu0 %v104
    %313 = vmatpush1.msra.mxu0 %v103
    %314 = vmatprep.subr.mxu0 %v108
    %315 = vmatpush1.msra.mxu0 %v107
    %316 = vmatprep.subr.mxu0 %v112
    %317 = vmatpush1.msra.mxu0 %v111
    %318 = vmatprep.subr.mxu0 %v116
    %319 = vmatpush1.msra.mxu0 %v115
    %320 = vmatprep.subr.mxu0 %v120
    %321 = vmatpush1.msra.mxu0 %v119
    %322 = vmatprep.subr.mxu0 %v124
    %323 = vmatpush1.msra.mxu0 %v123
    %324 = vmatprep.subr.mxu0 %v128
    %325 = vmatpush1.msra.mxu0 %v127
    %326 = vmatprep.subr.mxu0 %v132
    %327 = vmatpush1.msra.mxu0 %v131
    %328 = vmatprep.subr.mxu0 %v136
    %329 = vmatpush1.msra.mxu0 %v135
    %330 = vmatprep.subr.mxu0 %v140
    %331 = vmatpush1.msra.mxu0 %v139
    %332 = vmatprep.subr.mxu0 %v144
    %333 = vmatpush1.msra.mxu0 %v143
    %334 = vmatprep.subr.mxu0 %v148
    %335 = vmatpush1.msra.mxu0 %v147
    %336 = vmatprep.subr.mxu0 0.0
    %337 = vmatpush1.msra.mxu0 0.0
    %338 = vmatprep.subr.mxu0 0.0
    %339 = vmatpush1.msra.mxu0 0.0
    %340 = vmatprep.subr.mxu0 0.0
    %341 = vmatpush1.msra.mxu0 0.0
    %342 = vmatprep.subr.mxu0 0.0
    %343 = vmatpush1.msra.mxu0 0.0
    %344 = vmatprep.subr.mxu0 0.0
    %345 = vmatpush1.msra.mxu0 0.0
    %346 = vmatprep.subr.mxu0 0.0
    %347 = vmatpush1.msra.mxu0 0.0
    %348 = vmatprep.subr.mxu0 0.0
    %349 = vmatpush1.msra.mxu0 0.0
    %350 = vmatprep.subr.mxu0 0.0
    %351 = vmatpush1.msra.mxu0 0.0
    %352 = vmatprep.subr.mxu0 0.0
    %353 = vmatpush1.msra.mxu0 0.0
    %354 = vmatprep.subr.mxu0 0.0
    %355 = vmatpush1.msra.mxu0 0.0
    %356 = vmatprep.subr.mxu0 0.0
    %357 = vmatpush1.msra.mxu0 0.0
    %358 = vmatprep.subr.mxu0 0.0
    %359 = vmatpush1.msra.mxu0 0.0
    %360 = vmatprep.subr.mxu0 0.0
    %361 = vmatpush1.msra.mxu0 0.0
    %362 = vmatprep.subr.mxu0 0.0
    %363 = vmatpush1.msra.mxu0 0.0
    %364 = vmatprep.subr.mxu0 0.0
    %365 = vmatpush1.msra.mxu0 0.0
    %366 = vmatprep.subr.mxu0 0.0
    %367 = vmatpush1.msra.mxu0 0.0
    %368 = vmatprep.mubr.f32.mxu0 0.0
    %369 = vmatmul.mubr.f32.gmra.mrb[0].mxu0 %v70
    %v370 = vpop.f32.mrb[0].mxu0
    %v371 = vadd.f32 0.0, %v370
    %v372 = vpop.f32.mrb[0].mxu0
    %v373 = vadd.f32 0.0, %v372
    %374 = vmatprep.mubr.f32.mxu0 0.0
    %375 = vmatmul.mubr.f32.gmra.mrb[0].mxu0 %v71
    %v376 = vpop.f32.mrb[0].mxu0
    %v377 = vadd.f32 0.0, %v376
    %v378 = vpop.f32.mrb[0].mxu0
    %v379 = vadd.f32 0.0, %v378
    %380 = vmatprep.mubr.f32.mxu0 0.0
    %381 = vmatmul.mubr.f32.gmra.mrb[0].mxu0 %v72
    %v382 = vpop.f32.mrb[0].mxu0
    %v383 = vadd.f32 0.0, %v382
    %v384 = vpop.f32.mrb[0].mxu0
    %v385 = vadd.f32 0.0, %v384
    %386 = vmatprep.mubr.f32.mxu0 0.0
    %387 = vmatmul.mubr.f32.gmra.mrb[0].mxu0 %v73
    %v388 = vpop.f32.mrb[0].mxu0
    %v389 = vadd.f32 0.0, %v388
    %v390 = vpop.f32.mrb[0].mxu0
    %v391 = vadd.f32 0.0, %v390
    %392 = vmatprep.mubr.f32.mxu0 0.0
    %393 = vmatmul.mubr.f32.gmra.mrb[0].mxu0 %v74
    %v394 = vpop.f32.mrb[0].mxu0
    %v395 = vadd.f32 0.0, %v394
    %v396 = vpop.f32.mrb[0].mxu0
    %v397 = vadd.f32 0.0, %v396
    %398 = vmatprep.mubr.f32.mxu0 0.0
    %399 = vmatmul.mubr.f32.gmra.mrb[0].mxu0 %v75
    %v400 = vpop.f32.mrb[0].mxu0
    %v401 = vadd.f32 0.0, %v400
    %v402 = vpop.f32.mrb[0].mxu0
    %v403 = vadd.f32 0.0, %v402
    %404 = vmatprep.mubr.f32.mxu0 0.0
    %405 = vmatmul.mubr.f32.gmra.mrb[0].mxu0 %v76
    %v406 = vpop.f32.mrb[0].mxu0
    %v407 = vadd.f32 0.0, %v406
    %v408 = vpop.f32.mrb[0].mxu0
    %v409 = vadd.f32 0.0, %v408
    %410 = vmatprep.mubr.f32.mxu0 0.0
    %411 = vmatmul.mubr.f32.gmra.mrb[0].mxu0 %v77
    %v412 = vpop.f32.mrb[0].mxu0
    %v413 = vadd.f32 0.0, %v412
    %v414 = vpop.f32.mrb[0].mxu0
    %v415 = vadd.f32 0.0, %v414
    %416 = vmatprep.mubr.f32.mxu0 0.0
    %417 = vmatmul.mubr.f32.gmra.mrb[0].mxu0 %v78
    %v418 = vpop.f32.mrb[0].mxu0
    %v419 = vadd.f32 0.0, %v418
    %v420 = vpop.f32.mrb[0].mxu0
    %v421 = vadd.f32 0.0, %v420
    %422 = vmatprep.mubr.f32.mxu0 0.0
    %423 = vmatmul.mubr.f32.gmra.mrb[0].mxu0 %v79
    %v424 = vpop.f32.mrb[0].mxu0
    %v425 = vadd.f32 0.0, %v424
    %v426 = vpop.f32.mrb[0].mxu0
    %v427 = vadd.f32 0.0, %v426
    %428 = vmatprep.mubr.f32.mxu0 0.0
    %429 = vmatmul.mubr.f32.gmra.mrb[0].mxu0 %v80
    %v430 = vpop.f32.mrb[0].mxu0
    %v431 = vadd.f32 0.0, %v430
    %v432 = vpop.f32.mrb[0].mxu0
    %v433 = vadd.f32 0.0, %v432
    %434 = vmatprep.mubr.f32.mxu0 0.0
    %435 = vmatmul.mubr.f32.gmra.mrb[0].mxu0 %v81
    %v436 = vpop.f32.mrb[0].mxu0
    %v437 = vadd.f32 0.0, %v436
    %v438 = vpop.f32.mrb[0].mxu0
    %v439 = vadd.f32 0.0, %v438
    %440 = vmatprep.mubr.f32.mxu0 0.0
    %441 = vmatmul.mubr.f32.gmra.mrb[0].mxu0 %v82
    %v442 = vpop.f32.mrb[0].mxu0
    %v443 = vadd.f32 0.0, %v442
    %v444 = vpop.f32.mrb[0].mxu0
    %v445 = vadd.f32 0.0, %v444
    %446 = vmatprep.mubr.f32.mxu0 0.0
    %447 = vmatmul.mubr.f32.gmra.mrb[0].mxu0 %v83
    %v448 = vpop.f32.mrb[0].mxu0
    %v449 = vadd.f32 0.0, %v448
    %v450 = vpop.f32.mrb[0].mxu0
    %v451 = vadd.f32 0.0, %v450
    %452 = vmatprep.mubr.f32.mxu0 0.0
    %453 = vmatmul.mubr.f32.gmra.mrb[0].mxu0 %v84
    %v454 = vpop.f32.mrb[0].mxu0
    %v455 = vadd.f32 0.0, %v454
    %v456 = vpop.f32.mrb[0].mxu0
    %v457 = vadd.f32 0.0, %v456
    %458 = vdwg.mxu0
    %459 = vst [vmem:[#allocation2] sm:$0xff] %v216
    %460 = vst [vmem:[#allocation2 + $0x8] sm:$0xff] %v218
    %461 = vst [vmem:[#allocation2 + $0x10] sm:$0xff] %v371
    %462 = vst [vmem:[#allocation2 + $0x18] sm:$0xff] %v373
    %463 = vst [vmem:[#allocation2 + $0x20] sm:$0xff] %v222
    %464 = vst [vmem:[#allocation2 + $0x28] sm:$0xff] %v224
    %465 = vst [vmem:[#allocation2 + $0x30] sm:$0xff] %v377
    %466 = vst [vmem:[#allocation2 + $0x38] sm:$0xff] %v379
    %467 = vst [vmem:[#allocation2 + $0x40] sm:$0xff] %v228
    %468 = vst [vmem:[#allocation2 + $0x48] sm:$0xff] %v230
    %469 = vst [vmem:[#allocation2 + $0x50] sm:$0xff] %v383
    %470 = vst [vmem:[#allocation2 + $0x58] sm:$0xff] %v385
    %471 = vst [vmem:[#allocation2 + $0x60] sm:$0xff] %v234
    %472 = vst [vmem:[#allocation2 + $0x68] sm:$0xff] %v236
    %473 = vst [vmem:[#allocation2 + $0x70] sm:$0xff] %v389
    %474 = vst [vmem:[#allocation2 + $0x78] sm:$0xff] %v391
    %475 = vst [vmem:[#allocation2 + $0x80] sm:$0xff] %v240
    %476 = vst [vmem:[#allocation2 + $0x88] sm:$0xff] %v242
    %477 = vst [vmem:[#allocation2 + $0x90] sm:$0xff] %v395
    %478 = vst [vmem:[#allocation2 + $0x98] sm:$0xff] %v397
    %479 = vst [vmem:[#allocation2 + $0xa0] sm:$0xff] %v246
    %480 = vst [vmem:[#allocation2 + $0xa8] sm:$0xff] %v248
    %481 = vst [vmem:[#allocation2 + $0xb0] sm:$0xff] %v401
    %482 = vst [vmem:[#allocation2 + $0xb8] sm:$0xff] %v403
    %483 = vst [vmem:[#allocation2 + $0xc0] sm:$0xff] %v252
    %484 = vst [vmem:[#allocation2 + $0xc8] sm:$0xff] %v254
    %485 = vst [vmem:[#allocation2 + $0xd0] sm:$0xff] %v407
    %486 = vst [vmem:[#allocation2 + $0xd8] sm:$0xff] %v409
    %487 = vst [vmem:[#allocation2 + $0xe0] sm:$0xff] %v258
    %488 = vst [vmem:[#allocation2 + $0xe8] sm:$0xff] %v260
    %489 = vst [vmem:[#allocation2 + $0xf0] sm:$0xff] %v413
    %490 = vst [vmem:[#allocation2 + $0xf8] sm:$0xff] %v415
    %491 = vst [vmem:[#allocation2 + $0x100] sm:$0xff] %v264
    %492 = vst [vmem:[#allocation2 + $0x108] sm:$0xff] %v266
    %493 = vst [vmem:[#allocation2 + $0x110] sm:$0xff] %v419
    %494 = vst [vmem:[#allocation2 + $0x118] sm:$0xff] %v421
    %495 = vst [vmem:[#allocation2 + $0x120] sm:$0xff] %v270
    %496 = vst [vmem:[#allocation2 + $0x128] sm:$0xff] %v272
    %497 = vst [vmem:[#allocation2 + $0x130] sm:$0xff] %v425
    %498 = vst [vmem:[#allocation2 + $0x138] sm:$0xff] %v427
    %499 = vst [vmem:[#allocation2 + $0x140] sm:$0xff] %v276
    %500 = vst [vmem:[#allocation2 + $0x148] sm:$0xff] %v278
    %501 = vst [vmem:[#allocation2 + $0x150] sm:$0xff] %v431
    %502 = vst [vmem:[#allocation2 + $0x158] sm:$0xff] %v433
    %503 = vst [vmem:[#allocation2 + $0x160] sm:$0xff] %v282
    %504 = vst [vmem:[#allocation2 + $0x168] sm:$0xff] %v284
    %505 = vst [vmem:[#allocation2 + $0x170] sm:$0xff] %v437
    %506 = vst [vmem:[#allocation2 + $0x178] sm:$0xff] %v439
    %507 = vst [vmem:[#allocation2 + $0x180] sm:$0xff] %v288
    %508 = vst [vmem:[#allocation2 + $0x188] sm:$0xff] %v290
    %509 = vst [vmem:[#allocation2 + $0x190] sm:$0xff] %v443
    %510 = vst [vmem:[#allocation2 + $0x198] sm:$0xff] %v445
    %511 = vst [vmem:[#allocation2 + $0x1a0] sm:$0xff] %v294
    %512 = vst [vmem:[#allocation2 + $0x1a8] sm:$0xff] %v296
    %513 = vst [vmem:[#allocation2 + $0x1b0] sm:$0xff] %v449
    %514 = vst [vmem:[#allocation2 + $0x1b8] sm:$0xff] %v451
    %515 = vst [vmem:[#allocation2 + $0x1c0] sm:$0xff] %v300
    %516 = vst [vmem:[#allocation2 + $0x1c8] sm:$0xff] %v302
    %517 = vst [vmem:[#allocation2 + $0x1d0] sm:$0xff] %v455
    %518 = vst [vmem:[#allocation2 + $0x1d8] sm:$0xff] %v457
    %v519 = vld [vmem:[%s3] sm:$0xf]
    %v520 = vld [vmem:[%s4] sm:$0xf]
    %v521 = vld [vmem:[#allocation2] sm:$0xff]
    %v522 = vld [vmem:[#allocation2 + $0x8] sm:$0xff]
    %v523 = vld [vmem:[#allocation2 + $0x10] sm:$0xff]
    %v524 = vld [vmem:[#allocation2 + $0x18] sm:$0xff]
    %v525 = vld [vmem:[#allocation8] sm:$0xff]
    %v526 = vld [vmem:[#allocation8 + $0x8] sm:$0xff]
    %v527 = vld [vmem:[#allocation8 + $0x10] sm:$0xff]
    %v528 = vld [vmem:[#allocation8 + $0x18] sm:$0xff]
    %v529 = vld [vmem:[#allocation8 + $0x20] sm:$0xff]
    %v530 = vld [vmem:[#allocation8 + $0x28] sm:$0xff]
    %v531 = vld [vmem:[#allocation8 + $0x30] sm:$0xff]
    %v532 = vld [vmem:[#allocation8 + $0x38] sm:$0xff]
    %v533 = vld [vmem:[#allocation8 + $0x40] sm:$0xff]
    %v534 = vld [vmem:[#allocation8 + $0x48] sm:$0xff]
    %v535 = vld [vmem:[#allocation8 + $0x50] sm:$0xff]
    %v536 = vld [vmem:[#allocation8 + $0x58] sm:$0xff]
    %v537 = vld [vmem:[#allocation8 + $0x60] sm:$0xff]
    %v538 = vld [vmem:[#allocation8 + $0x68] sm:$0xff]
    %v539 = vld [vmem:[#allocation8 + $0x70] sm:$0xff]
    %v540 = vld [vmem:[#allocation8 + $0x78] sm:$0xff]
    %v541 = vld [vmem:[#allocation8 + $0x80] sm:$0xff]
    %v542 = vld [vmem:[#allocation8 + $0x88] sm:$0xff]
    %v543 = vld [vmem:[#allocation8 + $0x90] sm:$0xff]
    %v544 = vld [vmem:[#allocation8 + $0x98] sm:$0xff]
    %v545 = vld [vmem:[#allocation8 + $0xa0] sm:$0xff]
    %v546 = vld [vmem:[#allocation8 + $0xa8] sm:$0xff]
    %v547 = vld [vmem:[#allocation8 + $0xb0] sm:$0xff]
    %v548 = vld [vmem:[#allocation8 + $0xb8] sm:$0xff]
    %v549 = vld [vmem:[#allocation8 + $0xc0] sm:$0xff]
    %v550 = vld [vmem:[#allocation8 + $0xc8] sm:$0xff]
    %v551 = vld [vmem:[#allocation8 + $0xd0] sm:$0xff]
    %v552 = vld [vmem:[#allocation8 + $0xd8] sm:$0xff]
    %v553 = vld [vmem:[#allocation8 + $0xe0] sm:$0xff]
    %v554 = vld [vmem:[#allocation8 + $0xe8] sm:$0xff]
    %v555 = vld [vmem:[#allocation8 + $0xf0] sm:$0xff]
    %v556 = vld [vmem:[#allocation8 + $0xf8] sm:$0xff]
    %v589 = vunpack.c.l.b16 %v525
    %v590 = vunpack.c.h.b16 %v525
    %v591 = vunpack.c.l.b16 %v526
    %v592 = vunpack.c.h.b16 %v526
    %v593 = vunpack.c.l.b16 %v527
    %v594 = vunpack.c.h.b16 %v527
    %v595 = vunpack.c.l.b16 %v528
    %v596 = vunpack.c.h.b16 %v528
    %v597 = vunpack.c.l.b16 %v529
    %v598 = vunpack.c.h.b16 %v529
    %v599 = vunpack.c.l.b16 %v530
    %v600 = vunpack.c.h.b16 %v530
    %v601 = vunpack.c.l.b16 %v531
    %v602 = vunpack.c.h.b16 %v531
    %v603 = vunpack.c.l.b16 %v532
    %v604 = vunpack.c.h.b16 %v532
    %v605 = vunpack.c.l.b16 %v533
    %v606 = vunpack.c.h.b16 %v533
    %v607 = vunpack.c.l.b16 %v534
    %v608 = vunpack.c.h.b16 %v534
    %v609 = vunpack.c.l.b16 %v535
    %v610 = vunpack.c.h.b16 %v535
    %v611 = vunpack.c.l.b16 %v536
    %v612 = vunpack.c.h.b16 %v536
    %v613 = vunpack.c.l.b16 %v537
    %v614 = vunpack.c.h.b16 %v537
    %v615 = vunpack.c.l.b16 %v538
    %v616 = vunpack.c.h.b16 %v538
    %v617 = vunpack.c.l.b16 %v539
    %v618 = vunpack.c.h.b16 %v539
    %v619 = vunpack.c.l.b16 %v540
    %v620 = vunpack.c.h.b16 %v540
    %v621 = vunpack.c.l.b16 %v541
    %v622 = vunpack.c.h.b16 %v541
    %v623 = vunpack.c.l.b16 %v542
    %v624 = vunpack.c.h.b16 %v542
    %v625 = vunpack.c.l.b16 %v543
    %v626 = vunpack.c.h.b16 %v543
    %v627 = vunpack.c.l.b16 %v544
    %v628 = vunpack.c.h.b16 %v544
    %v629 = vunpack.c.l.b16 %v545
    %v630 = vunpack.c.h.b16 %v545
    %v631 = vunpack.c.l.b16 %v546
    %v632 = vunpack.c.h.b16 %v546
    %v633 = vunpack.c.l.b16 %v547
    %v634 = vunpack.c.h.b16 %v547
    %v635 = vunpack.c.l.b16 %v548
    %v636 = vunpack.c.h.b16 %v548
    %v637 = vunpack.c.l.b16 %v549
    %v638 = vunpack.c.h.b16 %v549
    %v639 = vunpack.c.l.b16 %v550
    %v640 = vunpack.c.h.b16 %v550
    %v641 = vunpack.c.l.b16 %v551
    %v642 = vunpack.c.h.b16 %v551
    %v643 = vunpack.c.l.b16 %v552
    %v644 = vunpack.c.h.b16 %v552
    %v645 = vunpack.c.l.b16 %v553
    %v646 = vunpack.c.h.b16 %v553
    %v647 = vunpack.c.l.b16 %v554
    %v648 = vunpack.c.h.b16 %v554
    %v649 = vunpack.c.l.b16 %v555
    %v650 = vunpack.c.h.b16 %v555
    %v651 = vunpack.c.l.b16 %v556
    %v652 = vunpack.c.h.b16 %v556
    %v653 = vpack.c.b16 %v593, %v589
    %v654 = vpack.c.b16 %v594, %v590
    %v655 = vpack.c.b16 %v595, %v591
    %v656 = vpack.c.b16 %v596, %v592
    %v657 = vpack.c.b16 %v601, %v597
    %v658 = vpack.c.b16 %v602, %v598
    %v659 = vpack.c.b16 %v603, %v599
    %v660 = vpack.c.b16 %v604, %v600
    %v661 = vpack.c.b16 %v609, %v605
    %v662 = vpack.c.b16 %v610, %v606
    %v663 = vpack.c.b16 %v611, %v607
    %v664 = vpack.c.b16 %v612, %v608
    %v665 = vpack.c.b16 %v617, %v613
    %v666 = vpack.c.b16 %v618, %v614
    %v667 = vpack.c.b16 %v619, %v615
    %v668 = vpack.c.b16 %v620, %v616
    %v669 = vpack.c.b16 %v625, %v621
    %v670 = vpack.c.b16 %v626, %v622
    %v671 = vpack.c.b16 %v627, %v623
    %v672 = vpack.c.b16 %v628, %v624
    %v673 = vpack.c.b16 %v633, %v629
    %v674 = vpack.c.b16 %v634, %v630
    %v675 = vpack.c.b16 %v635, %v631
    %v676 = vpack.c.b16 %v636, %v632
    %v677 = vpack.c.b16 %v641, %v637
    %v678 = vpack.c.b16 %v642, %v638
    %v679 = vpack.c.b16 %v643, %v639
    %v680 = vpack.c.b16 %v644, %v640
    %v681 = vpack.c.b16 %v649, %v645
    %v682 = vpack.c.b16 %v650, %v646
    %v683 = vpack.c.b16 %v651, %v647
    %v684 = vpack.c.b16 %v652, %v648
    %717 = vmatprep.subr.bf16.mxu0 %v654
    %718 = vmatpush1.bf16.msra.mxu0 %v653
    %719 = vmatprep.subr.bf16.mxu0 %v658
    %720 = vmatpush1.bf16.msra.mxu0 %v657
    %721 = vmatprep.subr.bf16.mxu0 %v662
    %722 = vmatpush1.bf16.msra.mxu0 %v661
    %723 = vmatprep.subr.bf16.mxu0 %v666
    %724 = vmatpush1.bf16.msra.mxu0 %v665
    %725 = vmatprep.subr.bf16.mxu0 %v670
    %726 = vmatpush1.bf16.msra.mxu0 %v669
    %727 = vmatprep.subr.bf16.mxu0 %v674
    %728 = vmatpush1.bf16.msra.mxu0 %v673
    %729 = vmatprep.subr.bf16.mxu0 %v678
    %730 = vmatpush1.bf16.msra.mxu0 %v677
    %731 = vmatprep.subr.bf16.mxu0 %v682
    %732 = vmatpush1.bf16.msra.mxu0 %v681
    %733 = vmatprep.subr.bf16.mxu0 0
    %734 = vmatpush1.bf16.msra.mxu0 0
    %735 = vmatprep.subr.bf16.mxu0 0
    %736 = vmatpush1.bf16.msra.mxu0 0
    %737 = vmatprep.subr.bf16.mxu0 0
    %738 = vmatpush1.bf16.msra.mxu0 0
    %739 = vmatprep.subr.bf16.mxu0 0
    %740 = vmatpush1.bf16.msra.mxu0 0
    %741 = vmatprep.subr.bf16.mxu0 0
    %742 = vmatpush1.bf16.msra.mxu0 0
    %743 = vmatprep.subr.bf16.mxu0 0
    %744 = vmatpush1.bf16.msra.mxu0 0
    %745 = vmatprep.subr.bf16.mxu0 0
    %746 = vmatpush1.bf16.msra.mxu0 0
    %747 = vmatprep.subr.bf16.mxu0 0
    %748 = vmatpush1.bf16.msra.mxu0 0
    %749 = vmatprep.mubr.bf16.mxu0 0
    %750 = vmatmul.mubr.bf16.gmra.mrb[0].mxu0 0
    %v751 = vpop.f32.mrb[0].mxu0
    %v752 = vadd.f32 0.0, %v751
    %v753 = vpop.f32.mrb[0].mxu0
    %v754 = vadd.f32 0.0, %v753
    %v755 = vpop.f32.mrb[0].mxu0
    %v756 = vpop.f32.mrb[0].mxu0
    %757 = vdwg.mxu0
    %758 = vmatprep.subr.bf16.mxu0 %v656
    %759 = vmatpush1.bf16.msra.mxu0 %v655
    %760 = vmatprep.subr.bf16.mxu0 %v660
    %761 = vmatpush1.bf16.msra.mxu0 %v659
    %762 = vmatprep.subr.bf16.mxu0 %v664
    %763 = vmatpush1.bf16.msra.mxu0 %v663
    %764 = vmatprep.subr.bf16.mxu0 %v668
    %765 = vmatpush1.bf16.msra.mxu0 %v667
    %766 = vmatprep.subr.bf16.mxu0 %v672
    %767 = vmatpush1.bf16.msra.mxu0 %v671
    %768 = vmatprep.subr.bf16.mxu0 %v676
    %769 = vmatpush1.bf16.msra.mxu0 %v675
    %770 = vmatprep.subr.bf16.mxu0 %v680
    %771 = vmatpush1.bf16.msra.mxu0 %v679
    %772 = vmatprep.subr.bf16.mxu0 %v684
    %773 = vmatpush1.bf16.msra.mxu0 %v683
    %774 = vmatprep.subr.bf16.mxu0 0
    %775 = vmatpush1.bf16.msra.mxu0 0
    %776 = vmatprep.subr.bf16.mxu0 0
    %777 = vmatpush1.bf16.msra.mxu0 0
    %778 = vmatprep.subr.bf16.mxu0 0
    %779 = vmatpush1.bf16.msra.mxu0 0
    %780 = vmatprep.subr.bf16.mxu0 0
    %781 = vmatpush1.bf16.msra.mxu0 0
    %782 = vmatprep.subr.bf16.mxu0 0
    %783 = vmatpush1.bf16.msra.mxu0 0
    %784 = vmatprep.subr.bf16.mxu0 0
    %785 = vmatpush1.bf16.msra.mxu0 0
    %786 = vmatprep.subr.bf16.mxu0 0
    %787 = vmatpush1.bf16.msra.mxu0 0
    %788 = vmatprep.subr.bf16.mxu0 0
    %789 = vmatpush1.bf16.msra.mxu0 0
    %790 = vmatprep.mubr.bf16.mxu0 0
    %791 = vmatmul.mubr.bf16.gmra.mrb[0].mxu0 0
    %v792 = vpop.f32.mrb[0].mxu0
    %v793 = vadd.f32 0.0, %v792
    %v794 = vpop.f32.mrb[0].mxu0
    %v795 = vadd.f32 0.0, %v794
    %v796 = vpop.f32.mrb[0].mxu0
    %v797 = vpop.f32.mrb[0].mxu0
    %798 = vdwg.mxu0
    %v799 = vadd.f32 %v521, %v752
    %v800 = vadd.f32 %v522, %v754
    %v801 = vadd.f32 %v523, %v793
    %v802 = vadd.f32 %v524, %v795
    %v803 = vtanh.pop %v799
    %v804 = vtanh.pop %v800
    %v805 = vtanh.pop %v801
    %v806 = vtanh.pop %v802
    %v808 = vlaneseq
    %v809 = vshrl.u32 %v808, 7
    %v810 = vsub.s32 0, %v809
    %v811 = vrot.slane %v519, %v810
    %v812 = vlaneseq
    %v813 = vshrl.u32 %v812, 7
    %v814 = vsub.s32 1, %v813
    %v815 = vrot.slane %v519, %v814
    %v816 = vlaneseq
    %v817 = vshrl.u32 %v816, 7
    %v818 = vsub.s32 2, %v817
    %v819 = vrot.slane %v519, %v818
    %v820 = vlaneseq
    %v821 = vshrl.u32 %v820, 7
    %v822 = vsub.s32 3, %v821
    %v823 = vrot.slane %v519, %v822
    %v828 = vmul.f32 %v803, %v811
    %v829 = vmul.f32 %v804, %v815
    %v830 = vmul.f32 %v805, %v819
    %v831 = vmul.f32 %v806, %v823
    %v833 = vlaneseq
    %v834 = vshrl.u32 %v833, 7
    %v835 = vsub.s32 0, %v834
    %v836 = vrot.slane %v520, %v835
    %v837 = vlaneseq
    %v838 = vshrl.u32 %v837, 7
    %v839 = vsub.s32 1, %v838
    %v840 = vrot.slane %v520, %v839
    %v841 = vlaneseq
    %v842 = vshrl.u32 %v841, 7
    %v843 = vsub.s32 2, %v842
    %v844 = vrot.slane %v520, %v843
    %v845 = vlaneseq
    %v846 = vshrl.u32 %v845, 7
    %v847 = vsub.s32 3, %v846
    %v848 = vrot.slane %v520, %v847
    %v853 = vadd.f32 %v828, %v836
    %v854 = vadd.f32 %v829, %v840
    %v855 = vadd.f32 %v830, %v844
    %v856 = vadd.f32 %v831, %v848
    %v857 = vmul.f32 %v854, 0.0
    %v858 = vmul.f32 %v853, %v855
    %v859 = vadd.f32 %v857, %v858
    %v860 = vtanh.pop %v859
    %v861 = vmul.f32 %v856, %v860
    %v862 = vld [vmem:[#allocation2 + $0x20] sm:$0xff]
    %v863 = vld [vmem:[#allocation2 + $0x28] sm:$0xff]
    %v864 = vld [vmem:[#allocation2 + $0x30] sm:$0xff]
    %v865 = vld [vmem:[#allocation2 + $0x38] sm:$0xff]
    %v866 = vpack.c.bf16 %v861, %v861
    %867 = vmatprep.subr.bf16.mxu0 %v654
    %868 = vmatpush1.bf16.msra.mxu0 %v653
    %869 = vmatprep.subr.bf16.mxu0 %v658
    %870 = vmatpush1.bf16.msra.mxu0 %v657
    %871 = vmatprep.subr.bf16.mxu0 %v662
    %872 = vmatpush1.bf16.msra.mxu0 %v661
    %873 = vmatprep.subr.bf16.mxu0 %v666
    %874 = vmatpush1.bf16.msra.mxu0 %v665
    %875 = vmatprep.subr.bf16.mxu0 %v670
    %876 = vmatpush1.bf16.msra.mxu0 %v669
    %877 = vmatprep.subr.bf16.mxu0 %v674
    %878 = vmatpush1.bf16.msra.mxu0 %v673
    %879 = vmatprep.subr.bf16.mxu0 %v678
    %880 = vmatpush1.bf16.msra.mxu0 %v677
    %881 = vmatprep.subr.bf16.mxu0 %v682
    %882 = vmatpush1.bf16.msra.mxu0 %v681
    %883 = vmatprep.subr.bf16.mxu0 0
    %884 = vmatpush1.bf16.msra.mxu0 0
    %885 = vmatprep.subr.bf16.mxu0 0
    %886 = vmatpush1.bf16.msra.mxu0 0
    %887 = vmatprep.subr.bf16.mxu0 0
    %888 = vmatpush1.bf16.msra.mxu0 0
    %889 = vmatprep.subr.bf16.mxu0 0
    %890 = vmatpush1.bf16.msra.mxu0 0
    %891 = vmatprep.subr.bf16.mxu0 0
    %892 = vmatpush1.bf16.msra.mxu0 0
    %893 = vmatprep.subr.bf16.mxu0 0
    %894 = vmatpush1.bf16.msra.mxu0 0
    %895 = vmatprep.subr.bf16.mxu0 0
    %896 = vmatpush1.bf16.msra.mxu0 0
    %897 = vmatprep.subr.bf16.mxu0 0
    %898 = vmatpush1.bf16.msra.mxu0 0
    %899 = vmatprep.mubr.bf16.mxu0 0
    %900 = vmatmul.mubr.bf16.gmra.mrb[0].mxu0 %v866
    %v901 = vpop.f32.mrb[0].mxu0
    %v902 = vadd.f32 0.0, %v901
    %v903 = vpop.f32.mrb[0].mxu0
    %v904 = vadd.f32 0.0, %v903
    %v905 = vpop.f32.mrb[0].mxu0
    %v906 = vpop.f32.mrb[0].mxu0
    %907 = vdwg.mxu0
    %908 = vmatprep.subr.bf16.mxu0 %v656
    %909 = vmatpush1.bf16.msra.mxu0 %v655
    %910 = vmatprep.subr.bf16.mxu0 %v660
    %911 = vmatpush1.bf16.msra.mxu0 %v659
    %912 = vmatprep.subr.bf16.mxu0 %v664
    %913 = vmatpush1.bf16.msra.mxu0 %v663
    %914 = vmatprep.subr.bf16.mxu0 %v668
    %915 = vmatpush1.bf16.msra.mxu0 %v667
    %916 = vmatprep.subr.bf16.mxu0 %v672
    %917 = vmatpush1.bf16.msra.mxu0 %v671
    %918 = vmatprep.subr.bf16.mxu0 %v676
    %919 = vmatpush1.bf16.msra.mxu0 %v675
    %920 = vmatprep.subr.bf16.mxu0 %v680
    %921 = vmatpush1.bf16.msra.mxu0 %v679
    %922 = vmatprep.subr.bf16.mxu0 %v684
    %923 = vmatpush1.bf16.msra.mxu0 %v683
    %924 = vmatprep.subr.bf16.mxu0 0
    %925 = vmatpush1.bf16.msra.mxu0 0
    %926 = vmatprep.subr.bf16.mxu0 0
    %927 = vmatpush1.bf16.msra.mxu0 0
    %928 = vmatprep.subr.bf16.mxu0 0
    %929 = vmatpush1.bf16.msra.mxu0 0
    %930 = vmatprep.subr.bf16.mxu0 0
    %931 = vmatpush1.bf16.msra.mxu0 0
    %932 = vmatprep.subr.bf16.mxu0 0
    %933 = vmatpush1.bf16.msra.mxu0 0
    %934 = vmatprep.subr.bf16.mxu0 0
    %935 = vmatpush1.bf16.msra.mxu0 0
    %936 = vmatprep.subr.bf16.mxu0 0
    %937 = vmatpush1.bf16.msra.mxu0 0
    %938 = vmatprep.subr.bf16.mxu0 0
    %939 = vmatpush1.bf16.msra.mxu0 0
    %940 = vmatprep.mubr.bf16.mxu0 0
    %941 = vmatmul.mubr.bf16.gmra.mrb[0].mxu0 %v866
    %v942 = vpop.f32.mrb[0].mxu0
    %v943 = vadd.f32 0.0, %v942
    %v944 = vpop.f32.mrb[0].mxu0
    %v945 = vadd.f32 0.0, %v944
    %v946 = vpop.f32.mrb[0].mxu0
    %v947 = vpop.f32.mrb[0].mxu0
    %948 = vdwg.mxu0
    %v949 = vadd.f32 %v862, %v902
    %v950 = vadd.f32 %v863, %v904
    %v951 = vadd.f32 %v864, %v943
    %v952 = vadd.f32 %v865, %v945
    %v953 = vtanh.pop %v949
    %v954 = vtanh.pop %v950
    %v955 = vtanh.pop %v951
    %v956 = vtanh.pop %v952
    %v957 = vmul.f32 %v953, %v811
    %v958 = vmul.f32 %v954, %v815
    %v959 = vmul.f32 %v955, %v819
    %v960 = vmul.f32 %v956, %v823
    %v961 = vadd.f32 %v957, %v836
    %v962 = vadd.f32 %v958, %v840
    %v963 = vadd.f32 %v959, %v844
    %v964 = vadd.f32 %v960, %v848
    %v965 = vmul.f32 %v962, %v859
    %v966 = vmul.f32 %v961, %v963
    %v967 = vadd.f32 %v965, %v966
    %v968 = vtanh.pop %v967
    %v969 = vmul.f32 %v964, %v968
    %v970 = vld [vmem:[#allocation2 + $0x40] sm:$0xff]
    %v971 = vld [vmem:[#allocation2 + $0x48] sm:$0xff]
    %v972 = vld [vmem:[#allocation2 + $0x50] sm:$0xff]
    %v973 = vld [vmem:[#allocation2 + $0x58] sm:$0xff]
    %v974 = vpack.c.bf16 %v969, %v969
    %975 = vmatprep.subr.bf16.mxu0 %v654
    %976 = vmatpush1.bf16.msra.mxu0 %v653
    %977 = vmatprep.subr.bf16.mxu0 %v658
    %978 = vmatpush1.bf16.msra.mxu0 %v657
    %979 = vmatprep.subr.bf16.mxu0 %v662
    %980 = vmatpush1.bf16.msra.mxu0 %v661
    %981 = vmatprep.subr.bf16.mxu0 %v666
    %982 = vmatpush1.bf16.msra.mxu0 %v665
    %983 = vmatprep.subr.bf16.mxu0 %v670
    %984 = vmatpush1.bf16.msra.mxu0 %v669
    %985 = vmatprep.subr.bf16.mxu0 %v674
    %986 = vmatpush1.bf16.msra.mxu0 %v673
    %987 = vmatprep.subr.bf16.mxu0 %v678
    %988 = vmatpush1.bf16.msra.mxu0 %v677
    %989 = vmatprep.subr.bf16.mxu0 %v682
    %990 = vmatpush1.bf16.msra.mxu0 %v681
    %991 = vmatprep.subr.bf16.mxu0 0
    %992 = vmatpush1.bf16.msra.mxu0 0
    %993 = vmatprep.subr.bf16.mxu0 0
    %994 = vmatpush1.bf16.msra.mxu0 0
    %995 = vmatprep.subr.bf16.mxu0 0
    %996 = vmatpush1.bf16.msra.mxu0 0
    %997 = vmatprep.subr.bf16.mxu0 0
    %998 = vmatpush1.bf16.msra.mxu0 0
    %999 = vmatprep.subr.bf16.mxu0 0
    %1000 = vmatpush1.bf16.msra.mxu0 0
    %1001 = vmatprep.subr.bf16.mxu0 0
    %1002 = vmatpush1.bf16.msra.mxu0 0
    %1003 = vmatprep.subr.bf16.mxu0 0
    %1004 = vmatpush1.bf16.msra.mxu0 0
    %1005 = vmatprep.subr.bf16.mxu0 0
    %1006 = vmatpush1.bf16.msra.mxu0 0
    %1007 = vmatprep.mubr.bf16.mxu0 0
    %1008 = vmatmul.mubr.bf16.gmra.mrb[0].mxu0 %v974
    %v1009 = vpop.f32.mrb[0].mxu0
    %v1010 = vadd.f32 0.0, %v1009
    %v1011 = vpop.f32.mrb[0].mxu0
    %v1012 = vadd.f32 0.0, %v1011
    %v1013 = vpop.f32.mrb[0].mxu0
    %v1014 = vpop.f32.mrb[0].mxu0
    %1015 = vdwg.mxu0
    %1016 = vmatprep.subr.bf16.mxu0 %v656
    %1017 = vmatpush1.bf16.msra.mxu0 %v655
    %1018 = vmatprep.subr.bf16.mxu0 %v660
    %1019 = vmatpush1.bf16.msra.mxu0 %v659
    %1020 = vmatprep.subr.bf16.mxu0 %v664
    %1021 = vmatpush1.bf16.msra.mxu0 %v663
    %1022 = vmatprep.subr.bf16.mxu0 %v668
    %1023 = vmatpush1.bf16.msra.mxu0 %v667
    %1024 = vmatprep.subr.bf16.mxu0 %v672
    %1025 = vmatpush1.bf16.msra.mxu0 %v671
    %1026 = vmatprep.subr.bf16.mxu0 %v676
    %1027 = vmatpush1.bf16.msra.mxu0 %v675
    %1028 = vmatprep.subr.bf16.mxu0 %v680
    %1029 = vmatpush1.bf16.msra.mxu0 %v679
    %1030 = vmatprep.subr.bf16.mxu0 %v684
    %1031 = vmatpush1.bf16.msra.mxu0 %v683
    %1032 = vmatprep.subr.bf16.mxu0 0
    %1033 = vmatpush1.bf16.msra.mxu0 0
    %1034 = vmatprep.subr.bf16.mxu0 0
    %1035 = vmatpush1.bf16.msra.mxu0 0
    %1036 = vmatprep.subr.bf16.mxu0 0
    %1037 = vmatpush1.bf16.msra.mxu0 0
    %1038 = vmatprep.subr.bf16.mxu0 0
    %1039 = vmatpush1.bf16.msra.mxu0 0
    %1040 = vmatprep.subr.bf16.mxu0 0
    %1041 = vmatpush1.bf16.msra.mxu0 0
    %1042 = vmatprep.subr.bf16.mxu0 0
    %1043 = vmatpush1.bf16.msra.mxu0 0
    %1044 = vmatprep.subr.bf16.mxu0 0
    %1045 = vmatpush1.bf16.msra.mxu0 0
    %1046 = vmatprep.subr.bf16.mxu0 0
    %1047 = vmatpush1.bf16.msra.mxu0 0
    %1048 = vmatprep.mubr.bf16.mxu0 0
    %1049 = vmatmul.mubr.bf16.gmra.mrb[0].mxu0 %v974
    %v1050 = vpop.f32.mrb[0].mxu0
    %v1051 = vadd.f32 0.0, %v1050
    %v1052 = vpop.f32.mrb[0].mxu0
    %v1053 = vadd.f32 0.0, %v1052
    %v1054 = vpop.f32.mrb[0].mxu0
    %v1055 = vpop.f32.mrb[0].mxu0
    %1056 = vdwg.mxu0
    %v1057 = vadd.f32 %v970, %v1010
    %v1058 = vadd.f32 %v971, %v1012
    %v1059 = vadd.f32 %v972, %v1051
    %v1060 = vadd.f32 %v973, %v1053
    %v1061 = vtanh.pop %v1057
    %v1062 = vtanh.pop %v1058
    %v1063 = vtanh.pop %v1059
    %v1064 = vtanh.pop %v1060
    %v1065 = vmul.f32 %v1061, %v811
    %v1066 = vmul.f32 %v1062, %v815
    %v1067 = vmul.f32 %v1063, %v819
    %v1068 = vmul.f32 %v1064, %v823
    %v1069 = vadd.f32 %v1065, %v836
    %v1070 = vadd.f32 %v1066, %v840
    %v1071 = vadd.f32 %v1067, %v844
    %v1072 = vadd.f32 %v1068, %v848
    %v1073 = vmul.f32 %v1070, %v967
    %v1074 = vmul.f32 %v1069, %v1071
    %v1075 = vadd.f32 %v1073, %v1074
    %v1076 = vtanh.pop %v1075
    %v1077 = vmul.f32 %v1072, %v1076
    %v1078 = vld [vmem:[#allocation2 + $0x60] sm:$0xff]
    %v1079 = vld [vmem:[#allocation2 + $0x68] sm:$0xff]
    %v1080 = vld [vmem:[#allocation2 + $0x70] sm:$0xff]
    %v1081 = vld [vmem:[#allocation2 + $0x78] sm:$0xff]
    %v1082 = vpack.c.bf16 %v1077, %v1077
    %1083 = vmatprep.subr.bf16.mxu0 %v654
    %1084 = vmatpush1.bf16.msra.mxu0 %v653
    %1085 = vmatprep.subr.bf16.mxu0 %v658
    %1086 = vmatpush1.bf16.msra.mxu0 %v657
    %1087 = vmatprep.subr.bf16.mxu0 %v662
    %1088 = vmatpush1.bf16.msra.mxu0 %v661
    %1089 = vmatprep.subr.bf16.mxu0 %v666
    %1090 = vmatpush1.bf16.msra.mxu0 %v665
    %1091 = vmatprep.subr.bf16.mxu0 %v670
    %1092 = vmatpush1.bf16.msra.mxu0 %v669
    %1093 = vmatprep.subr.bf16.mxu0 %v674
    %1094 = vmatpush1.bf16.msra.mxu0 %v673
    %1095 = vmatprep.subr.bf16.mxu0 %v678
    %1096 = vmatpush1.bf16.msra.mxu0 %v677
    %1097 = vmatprep.subr.bf16.mxu0 %v682
    %1098 = vmatpush1.bf16.msra.mxu0 %v681
    %1099 = vmatprep.subr.bf16.mxu0 0
    %1100 = vmatpush1.bf16.msra.mxu0 0
    %1101 = vmatprep.subr.bf16.mxu0 0
    %1102 = vmatpush1.bf16.msra.mxu0 0
    %1103 = vmatprep.subr.bf16.mxu0 0
    %1104 = vmatpush1.bf16.msra.mxu0 0
    %1105 = vmatprep.subr.bf16.mxu0 0
    %1106 = vmatpush1.bf16.msra.mxu0 0
    %1107 = vmatprep.subr.bf16.mxu0 0
    %1108 = vmatpush1.bf16.msra.mxu0 0
    %1109 = vmatprep.subr.bf16.mxu0 0
    %1110 = vmatpush1.bf16.msra.mxu0 0
    %1111 = vmatprep.subr.bf16.mxu0 0
    %1112 = vmatpush1.bf16.msra.mxu0 0
    %1113 = vmatprep.subr.bf16.mxu0 0
    %1114 = vmatpush1.bf16.msra.mxu0 0
    %1115 = vmatprep.mubr.bf16.mxu0 0
    %1116 = vmatmul.mubr.bf16.gmra.mrb[0].mxu0 %v1082
    %v1117 = vpop.f32.mrb[0].mxu0
    %v1118 = vadd.f32 0.0, %v1117
    %v1119 = vpop.f32.mrb[0].mxu0
    %v1120 = vadd.f32 0.0, %v1119
    %v1121 = vpop.f32.mrb[0].mxu0
    %v1122 = vpop.f32.mrb[0].mxu0
    %1123 = vdwg.mxu0
    %1124 = vmatprep.subr.bf16.mxu0 %v656
    %1125 = vmatpush1.bf16.msra.mxu0 %v655
    %1126 = vmatprep.subr.bf16.mxu0 %v660
    %1127 = vmatpush1.bf16.msra.mxu0 %v659
    %1128 = vmatprep.subr.bf16.mxu0 %v664
    %1129 = vmatpush1.bf16.msra.mxu0 %v663
    %1130 = vmatprep.subr.bf16.mxu0 %v668
    %1131 = vmatpush1.bf16.msra.mxu0 %v667
    %1132 = vmatprep.subr.bf16.mxu0 %v672
    %1133 = vmatpush1.bf16.msra.mxu0 %v671
    %1134 = vmatprep.subr.bf16.mxu0 %v676
    %1135 = vmatpush1.bf16.msra.mxu0 %v675
    %1136 = vmatprep.subr.bf16.mxu0 %v680
    %1137 = vmatpush1.bf16.msra.mxu0 %v679
    %1138 = vmatprep.subr.bf16.mxu0 %v684
    %1139 = vmatpush1.bf16.msra.mxu0 %v683
    %1140 = vmatprep.subr.bf16.mxu0 0
    %1141 = vmatpush1.bf16.msra.mxu0 0
    %1142 = vmatprep.subr.bf16.mxu0 0
    %1143 = vmatpush1.bf16.msra.mxu0 0
    %1144 = vmatprep.subr.bf16.mxu0 0
    %1145 = vmatpush1.bf16.msra.mxu0 0
    %1146 = vmatprep.subr.bf16.mxu0 0
    %1147 = vmatpush1.bf16.msra.mxu0 0
    %1148 = vmatprep.subr.bf16.mxu0 0
    %1149 = vmatpush1.bf16.msra.mxu0 0
    %1150 = vmatprep.subr.bf16.mxu0 0
    %1151 = vmatpush1.bf16.msra.mxu0 0
    %1152 = vmatprep.subr.bf16.mxu0 0
    %1153 = vmatpush1.bf16.msra.mxu0 0
    %1154 = vmatprep.subr.bf16.mxu0 0
    %1155 = vmatpush1.bf16.msra.mxu0 0
    %1156 = vmatprep.mubr.bf16.mxu0 0
    %1157 = vmatmul.mubr.bf16.gmra.mrb[0].mxu0 %v1082
    %v1158 = vpop.f32.mrb[0].mxu0
    %v1159 = vadd.f32 0.0, %v1158
    %v1160 = vpop.f32.mrb[0].mxu0
    %v1161 = vadd.f32 0.0, %v1160
    %v1162 = vpop.f32.mrb[0].mxu0
    %v1163 = vpop.f32.mrb[0].mxu0
    %1164 = vdwg.mxu0
    %v1165 = vadd.f32 %v1078, %v1118
    %v1166 = vadd.f32 %v1079, %v1120
    %v1167 = vadd.f32 %v1080, %v1159
    %v1168 = vadd.f32 %v1081, %v1161
    %v1169 = vtanh.pop %v1165
    %v1170 = vtanh.pop %v1166
    %v1171 = vtanh.pop %v1167
    %v1172 = vtanh.pop %v1168
    %v1173 = vmul.f32 %v1169, %v811
    %v1174 = vmul.f32 %v1170, %v815
    %v1175 = vmul.f32 %v1171, %v819
    %v1176 = vmul.f32 %v1172, %v823
    %v1177 = vadd.f32 %v1173, %v836
    %v1178 = vadd.f32 %v1174, %v840
    %v1179 = vadd.f32 %v1175, %v844
    %v1180 = vadd.f32 %v1176, %v848
    %v1181 = vmul.f32 %v1178, %v1075
    %v1182 = vmul.f32 %v1177, %v1179
    %v1183 = vadd.f32 %v1181, %v1182
    %v1184 = vtanh.pop %v1183
    %v1185 = vmul.f32 %v1180, %v1184
    %v1186 = vld [vmem:[#allocation2 + $0x80] sm:$0xff]
    %v1187 = vld [vmem:[#allocation2 + $0x88] sm:$0xff]
    %v1188 = vld [vmem:[#allocation2 + $0x90] sm:$0xff]
    %v1189 = vld [vmem:[#allocation2 + $0x98] sm:$0xff]
    %v1190 = vpack.c.bf16 %v1185, %v1185
    %1191 = vmatprep.subr.bf16.mxu0 %v654
    %1192 = vmatpush1.bf16.msra.mxu0 %v653
    %1193 = vmatprep.subr.bf16.mxu0 %v658
    %1194 = vmatpush1.bf16.msra.mxu0 %v657
    %1195 = vmatprep.subr.bf16.mxu0 %v662
    %1196 = vmatpush1.bf16.msra.mxu0 %v661
    %1197 = vmatprep.subr.bf16.mxu0 %v666
    %1198 = vmatpush1.bf16.msra.mxu0 %v665
    %1199 = vmatprep.subr.bf16.mxu0 %v670
    %1200 = vmatpush1.bf16.msra.mxu0 %v669
    %1201 = vmatprep.subr.bf16.mxu0 %v674
    %1202 = vmatpush1.bf16.msra.mxu0 %v673
    %1203 = vmatprep.subr.bf16.mxu0 %v678
    %1204 = vmatpush1.bf16.msra.mxu0 %v677
    %1205 = vmatprep.subr.bf16.mxu0 %v682
    %1206 = vmatpush1.bf16.msra.mxu0 %v681
    %1207 = vmatprep.subr.bf16.mxu0 0
    %1208 = vmatpush1.bf16.msra.mxu0 0
    %1209 = vmatprep.subr.bf16.mxu0 0
    %1210 = vmatpush1.bf16.msra.mxu0 0
    %1211 = vmatprep.subr.bf16.mxu0 0
    %1212 = vmatpush1.bf16.msra.mxu0 0
    %1213 = vmatprep.subr.bf16.mxu0 0
    %1214 = vmatpush1.bf16.msra.mxu0 0
    %1215 = vmatprep.subr.bf16.mxu0 0
    %1216 = vmatpush1.bf16.msra.mxu0 0
    %1217 = vmatprep.subr.bf16.mxu0 0
    %1218 = vmatpush1.bf16.msra.mxu0 0
    %1219 = vmatprep.subr.bf16.mxu0 0
    %1220 = vmatpush1.bf16.msra.mxu0 0
    %1221 = vmatprep.subr.bf16.mxu0 0
    %1222 = vmatpush1.bf16.msra.mxu0 0
    %1223 = vmatprep.mubr.bf16.mxu0 0
    %1224 = vmatmul.mubr.bf16.gmra.mrb[0].mxu0 %v1190
    %v1225 = vpop.f32.mrb[0].mxu0
    %v1226 = vadd.f32 0.0, %v1225
    %v1227 = vpop.f32.mrb[0].mxu0
    %v1228 = vadd.f32 0.0, %v1227
    %v1229 = vpop.f32.mrb[0].mxu0
    %v1230 = vpop.f32.mrb[0].mxu0
    %1231 = vdwg.mxu0
    %1232 = vmatprep.subr.bf16.mxu0 %v656
    %1233 = vmatpush1.bf16.msra.mxu0 %v655
    %1234 = vmatprep.subr.bf16.mxu0 %v660
    %1235 = vmatpush1.bf16.msra.mxu0 %v659
    %1236 = vmatprep.subr.bf16.mxu0 %v664
    %1237 = vmatpush1.bf16.msra.mxu0 %v663
    %1238 = vmatprep.subr.bf16.mxu0 %v668
    %1239 = vmatpush1.bf16.msra.mxu0 %v667
    %1240 = vmatprep.subr.bf16.mxu0 %v672
    %1241 = vmatpush1.bf16.msra.mxu0 %v671
    %1242 = vmatprep.subr.bf16.mxu0 %v676
    %1243 = vmatpush1.bf16.msra.mxu0 %v675
    %1244 = vmatprep.subr.bf16.mxu0 %v680
    %1245 = vmatpush1.bf16.msra.mxu0 %v679
    %1246 = vmatprep.subr.bf16.mxu0 %v684
    %1247 = vmatpush1.bf16.msra.mxu0 %v683
    %1248 = vmatprep.subr.bf16.mxu0 0
    %1249 = vmatpush1.bf16.msra.mxu0 0
    %1250 = vmatprep.subr.bf16.mxu0 0
    %1251 = vmatpush1.bf16.msra.mxu0 0
    %1252 = vmatprep.subr.bf16.mxu0 0
    %1253 = vmatpush1.bf16.msra.mxu0 0
    %1254 = vmatprep.subr.bf16.mxu0 0
    %1255 = vmatpush1.bf16.msra.mxu0 0
    %1256 = vmatprep.subr.bf16.mxu0 0
    %1257 = vmatpush1.bf16.msra.mxu0 0
    %1258 = vmatprep.subr.bf16.mxu0 0
    %1259 = vmatpush1.bf16.msra.mxu0 0
    %1260 = vmatprep.subr.bf16.mxu0 0
    %1261 = vmatpush1.bf16.msra.mxu0 0
    %1262 = vmatprep.subr.bf16.mxu0 0
    %1263 = vmatpush1.bf16.msra.mxu0 0
    %1264 = vmatprep.mubr.bf16.mxu0 0
    %1265 = vmatmul.mubr.bf16.gmra.mrb[0].mxu0 %v1190
    %v1266 = vpop.f32.mrb[0].mxu0
    %v1267 = vadd.f32 0.0, %v1266
    %v1268 = vpop.f32.mrb[0].mxu0
    %v1269 = vadd.f32 0.0, %v1268
    %v1270 = vpop.f32.mrb[0].mxu0
    %v1271 = vpop.f32.mrb[0].mxu0
    %1272 = vdwg.mxu0
    %v1273 = vadd.f32 %v1186, %v1226
    %v1274 = vadd.f32 %v1187, %v1228
    %v1275 = vadd.f32 %v1188, %v1267
    %v1276 = vadd.f32 %v1189, %v1269
    %v1277 = vtanh.pop %v1273
    %v1278 = vtanh.pop %v1274
    %v1279 = vtanh.pop %v1275
    %v1280 = vtanh.pop %v1276
    %v1281 = vmul.f32 %v1277, %v811
    %v1282 = vmul.f32 %v1278, %v815
    %v1283 = vmul.f32 %v1279, %v819
    %v1284 = vmul.f32 %v1280, %v823
    %v1285 = vadd.f32 %v1281, %v836
    %v1286 = vadd.f32 %v1282, %v840
    %v1287 = vadd.f32 %v1283, %v844
    %v1288 = vadd.f32 %v1284, %v848
    %v1289 = vmul.f32 %v1286, %v1183
    %v1290 = vmul.f32 %v1285, %v1287
    %v1291 = vadd.f32 %v1289, %v1290
    %v1292 = vtanh.pop %v1291
    %v1293 = vmul.f32 %v1288, %v1292
    %v1294 = vld [vmem:[#allocation2 + $0xa0] sm:$0xff]
    %v1295 = vld [vmem:[#allocation2 + $0xa8] sm:$0xff]
    %v1296 = vld [vmem:[#allocation2 + $0xb0] sm:$0xff]
    %v1297 = vld [vmem:[#allocation2 + $0xb8] sm:$0xff]
    %v1298 = vpack.c.bf16 %v1293, %v1293
    %1299 = vmatprep.subr.bf16.mxu0 %v654
    %1300 = vmatpush1.bf16.msra.mxu0 %v653
    %1301 = vmatprep.subr.bf16.mxu0 %v658
    %1302 = vmatpush1.bf16.msra.mxu0 %v657
    %1303 = vmatprep.subr.bf16.mxu0 %v662
    %1304 = vmatpush1.bf16.msra.mxu0 %v661
    %1305 = vmatprep.subr.bf16.mxu0 %v666
    %1306 = vmatpush1.bf16.msra.mxu0 %v665
    %1307 = vmatprep.subr.bf16.mxu0 %v670
    %1308 = vmatpush1.bf16.msra.mxu0 %v669
    %1309 = vmatprep.subr.bf16.mxu0 %v674
    %1310 = vmatpush1.bf16.msra.mxu0 %v673
    %1311 = vmatprep.subr.bf16.mxu0 %v678
    %1312 = vmatpush1.bf16.msra.mxu0 %v677
    %1313 = vmatprep.subr.bf16.mxu0 %v682
    %1314 = vmatpush1.bf16.msra.mxu0 %v681
    %1315 = vmatprep.subr.bf16.mxu0 0
    %1316 = vmatpush1.bf16.msra.mxu0 0
    %1317 = vmatprep.subr.bf16.mxu0 0
    %1318 = vmatpush1.bf16.msra.mxu0 0
    %1319 = vmatprep.subr.bf16.mxu0 0
    %1320 = vmatpush1.bf16.msra.mxu0 0
    %1321 = vmatprep.subr.bf16.mxu0 0
    %1322 = vmatpush1.bf16.msra.mxu0 0
    %1323 = vmatprep.subr.bf16.mxu0 0
    %1324 = vmatpush1.bf16.msra.mxu0 0
    %1325 = vmatprep.subr.bf16.mxu0 0
    %1326 = vmatpush1.bf16.msra.mxu0 0
    %1327 = vmatprep.subr.bf16.mxu0 0
    %1328 = vmatpush1.bf16.msra.mxu0 0
    %1329 = vmatprep.subr.bf16.mxu0 0
    %1330 = vmatpush1.bf16.msra.mxu0 0
    %1331 = vmatprep.mubr.bf16.mxu0 0
    %1332 = vmatmul.mubr.bf16.gmra.mrb[0].mxu0 %v1298
    %v1333 = vpop.f32.mrb[0].mxu0
    %v1334 = vadd.f32 0.0, %v1333
    %v1335 = vpop.f32.mrb[0].mxu0
    %v1336 = vadd.f32 0.0, %v1335
    %v1337 = vpop.f32.mrb[0].mxu0
    %v1338 = vpop.f32.mrb[0].mxu0
    %1339 = vdwg.mxu0
    %1340 = vmatprep.subr.bf16.mxu0 %v656
    %1341 = vmatpush1.bf16.msra.mxu0 %v655
    %1342 = vmatprep.subr.bf16.mxu0 %v660
    %1343 = vmatpush1.bf16.msra.mxu0 %v659
    %1344 = vmatprep.subr.bf16.mxu0 %v664
    %1345 = vmatpush1.bf16.msra.mxu0 %v663
    %1346 = vmatprep.subr.bf16.mxu0 %v668
    %1347 = vmatpush1.bf16.msra.mxu0 %v667
    %1348 = vmatprep.subr.bf16.mxu0 %v672
    %1349 = vmatpush1.bf16.msra.mxu0 %v671
    %1350 = vmatprep.subr.bf16.mxu0 %v676
    %1351 = vmatpush1.bf16.msra.mxu0 %v675
    %1352 = vmatprep.subr.bf16.mxu0 %v680
    %1353 = vmatpush1.bf16.msra.mxu0 %v679
    %1354 = vmatprep.subr.bf16.mxu0 %v684
    %1355 = vmatpush1.bf16.msra.mxu0 %v683
    %1356 = vmatprep.subr.bf16.mxu0 0
    %1357 = vmatpush1.bf16.msra.mxu0 0
    %1358 = vmatprep.subr.bf16.mxu0 0
    %1359 = vmatpush1.bf16.msra.mxu0 0
    %1360 = vmatprep.subr.bf16.mxu0 0
    %1361 = vmatpush1.bf16.msra.mxu0 0
    %1362 = vmatprep.subr.bf16.mxu0 0
    %1363 = vmatpush1.bf16.msra.mxu0 0
    %1364 = vmatprep.subr.bf16.mxu0 0
    %1365 = vmatpush1.bf16.msra.mxu0 0
    %1366 = vmatprep.subr.bf16.mxu0 0
    %1367 = vmatpush1.bf16.msra.mxu0 0
    %1368 = vmatprep.subr.bf16.mxu0 0
    %1369 = vmatpush1.bf16.msra.mxu0 0
    %1370 = vmatprep.subr.bf16.mxu0 0
    %1371 = vmatpush1.bf16.msra.mxu0 0
    %1372 = vmatprep.mubr.bf16.mxu0 0
    %1373 = vmatmul.mubr.bf16.gmra.mrb[0].mxu0 %v1298
    %v1374 = vpop.f32.mrb[0].mxu0
    %v1375 = vadd.f32 0.0, %v1374
    %v1376 = vpop.f32.mrb[0].mxu0
    %v1377 = vadd.f32 0.0, %v1376
    %v1378 = vpop.f32.mrb[0].mxu0
    %v1379 = vpop.f32.mrb[0].mxu0
    %1380 = vdwg.mxu0
    %v1381 = vadd.f32 %v1294, %v1334
    %v1382 = vadd.f32 %v1295, %v1336
    %v1383 = vadd.f32 %v1296, %v1375
    %v1384 = vadd.f32 %v1297, %v1377
    %v1385 = vtanh.pop %v1381
    %v1386 = vtanh.pop %v1382
    %v1387 = vtanh.pop %v1383
    %v1388 = vtanh.pop %v1384
    %v1389 = vmul.f32 %v1385, %v811
    %v1390 = vmul.f32 %v1386, %v815
    %v1391 = vmul.f32 %v1387, %v819
    %v1392 = vmul.f32 %v1388, %v823
    %v1393 = vadd.f32 %v1389, %v836
    %v1394 = vadd.f32 %v1390, %v840
    %v1395 = vadd.f32 %v1391, %v844
    %v1396 = vadd.f32 %v1392, %v848
    %v1397 = vmul.f32 %v1394, %v1291
    %v1398 = vmul.f32 %v1393, %v1395
    %v1399 = vadd.f32 %v1397, %v1398
    %v1400 = vtanh.pop %v1399
    %v1401 = vmul.f32 %v1396, %v1400
    %v1402 = vld [vmem:[#allocation2 + $0xc0] sm:$0xff]
    %v1403 = vld [vmem:[#allocation2 + $0xc8] sm:$0xff]
    %v1404 = vld [vmem:[#allocation2 + $0xd0] sm:$0xff]
    %v1405 = vld [vmem:[#allocation2 + $0xd8] sm:$0xff]
    %v1406 = vpack.c.bf16 %v1401, %v1401
    %1407 = vmatprep.subr.bf16.mxu0 %v654
    %1408 = vmatpush1.bf16.msra.mxu0 %v653
    %1409 = vmatprep.subr.bf16.mxu0 %v658
    %1410 = vmatpush1.bf16.msra.mxu0 %v657
    %1411 = vmatprep.subr.bf16.mxu0 %v662
    %1412 = vmatpush1.bf16.msra.mxu0 %v661
    %1413 = vmatprep.subr.bf16.mxu0 %v666
    %1414 = vmatpush1.bf16.msra.mxu0 %v665
    %1415 = vmatprep.subr.bf16.mxu0 %v670
    %1416 = vmatpush1.bf16.msra.mxu0 %v669
    %1417 = vmatprep.subr.bf16.mxu0 %v674
    %1418 = vmatpush1.bf16.msra.mxu0 %v673
    %1419 = vmatprep.subr.bf16.mxu0 %v678
    %1420 = vmatpush1.bf16.msra.mxu0 %v677
    %1421 = vmatprep.subr.bf16.mxu0 %v682
    %1422 = vmatpush1.bf16.msra.mxu0 %v681
    %1423 = vmatprep.subr.bf16.mxu0 0
    %1424 = vmatpush1.bf16.msra.mxu0 0
    %1425 = vmatprep.subr.bf16.mxu0 0
    %1426 = vmatpush1.bf16.msra.mxu0 0
    %1427 = vmatprep.subr.bf16.mxu0 0
    %1428 = vmatpush1.bf16.msra.mxu0 0
    %1429 = vmatprep.subr.bf16.mxu0 0
    %1430 = vmatpush1.bf16.msra.mxu0 0
    %1431 = vmatprep.subr.bf16.mxu0 0
    %1432 = vmatpush1.bf16.msra.mxu0 0
    %1433 = vmatprep.subr.bf16.mxu0 0
    %1434 = vmatpush1.bf16.msra.mxu0 0
    %1435 = vmatprep.subr.bf16.mxu0 0
    %1436 = vmatpush1.bf16.msra.mxu0 0
    %1437 = vmatprep.subr.bf16.mxu0 0
    %1438 = vmatpush1.bf16.msra.mxu0 0
    %1439 = vmatprep.mubr.bf16.mxu0 0
    %1440 = vmatmul.mubr.bf16.gmra.mrb[0].mxu0 %v1406
    %v1441 = vpop.f32.mrb[0].mxu0
    %v1442 = vadd.f32 0.0, %v1441
    %v1443 = vpop.f32.mrb[0].mxu0
    %v1444 = vadd.f32 0.0, %v1443
    %v1445 = vpop.f32.mrb[0].mxu0
    %v1446 = vpop.f32.mrb[0].mxu0
    %1447 = vdwg.mxu0
    %1448 = vmatprep.subr.bf16.mxu0 %v656
    %1449 = vmatpush1.bf16.msra.mxu0 %v655
    %1450 = vmatprep.subr.bf16.mxu0 %v660
    %1451 = vmatpush1.bf16.msra.mxu0 %v659
    %1452 = vmatprep.subr.bf16.mxu0 %v664
    %1453 = vmatpush1.bf16.msra.mxu0 %v663
    %1454 = vmatprep.subr.bf16.mxu0 %v668
    %1455 = vmatpush1.bf16.msra.mxu0 %v667
    %1456 = vmatprep.subr.bf16.mxu0 %v672
    %1457 = vmatpush1.bf16.msra.mxu0 %v671
    %1458 = vmatprep.subr.bf16.mxu0 %v676
    %1459 = vmatpush1.bf16.msra.mxu0 %v675
    %1460 = vmatprep.subr.bf16.mxu0 %v680
    %1461 = vmatpush1.bf16.msra.mxu0 %v679
    %1462 = vmatprep.subr.bf16.mxu0 %v684
    %1463 = vmatpush1.bf16.msra.mxu0 %v683
    %1464 = vmatprep.subr.bf16.mxu0 0
    %1465 = vmatpush1.bf16.msra.mxu0 0
    %1466 = vmatprep.subr.bf16.mxu0 0
    %1467 = vmatpush1.bf16.msra.mxu0 0
    %1468 = vmatprep.subr.bf16.mxu0 0
    %1469 = vmatpush1.bf16.msra.mxu0 0
    %1470 = vmatprep.subr.bf16.mxu0 0
    %1471 = vmatpush1.bf16.msra.mxu0 0
    %1472 = vmatprep.subr.bf16.mxu0 0
    %1473 = vmatpush1.bf16.msra.mxu0 0
    %1474 = vmatprep.subr.bf16.mxu0 0
    %1475 = vmatpush1.bf16.msra.mxu0 0
    %1476 = vmatprep.subr.bf16.mxu0 0
    %1477 = vmatpush1.bf16.msra.mxu0 0
    %1478 = vmatprep.subr.bf16.mxu0 0
    %1479 = vmatpush1.bf16.msra.mxu0 0
    %1480 = vmatprep.mubr.bf16.mxu0 0
    %1481 = vmatmul.mubr.bf16.gmra.mrb[0].mxu0 %v1406
    %v1482 = vpop.f32.mrb[0].mxu0
    %v1483 = vadd.f32 0.0, %v1482
    %v1484 = vpop.f32.mrb[0].mxu0
    %v1485 = vadd.f32 0.0, %v1484
    %v1486 = vpop.f32.mrb[0].mxu0
    %v1487 = vpop.f32.mrb[0].mxu0
    %1488 = vdwg.mxu0
    %v1489 = vadd.f32 %v1402, %v1442
    %v1490 = vadd.f32 %v1403, %v1444
    %v1491 = vadd.f32 %v1404, %v1483
    %v1492 = vadd.f32 %v1405, %v1485
    %v1493 = vtanh.pop %v1489
    %v1494 = vtanh.pop %v1490
    %v1495 = vtanh.pop %v1491
    %v1496 = vtanh.pop %v1492
    %v1497 = vmul.f32 %v1493, %v811
    %v1498 = vmul.f32 %v1494, %v815
    %v1499 = vmul.f32 %v1495, %v819
    %v1500 = vmul.f32 %v1496, %v823
    %v1501 = vadd.f32 %v1497, %v836
    %v1502 = vadd.f32 %v1498, %v840
    %v1503 = vadd.f32 %v1499, %v844
    %v1504 = vadd.f32 %v1500, %v848
    %v1505 = vmul.f32 %v1502, %v1399
    %v1506 = vmul.f32 %v1501, %v1503
    %v1507 = vadd.f32 %v1505, %v1506
    %v1508 = vtanh.pop %v1507
    %v1509 = vmul.f32 %v1504, %v1508
    %v1510 = vld [vmem:[#allocation2 + $0xe0] sm:$0xff]
    %v1511 = vld [vmem:[#allocation2 + $0xe8] sm:$0xff]
    %v1512 = vld [vmem:[#allocation2 + $0xf0] sm:$0xff]
    %v1513 = vld [vmem:[#allocation2 + $0xf8] sm:$0xff]
    %v1514 = vpack.c.bf16 %v1509, %v1509
    %1515 = vmatprep.subr.bf16.mxu0 %v654
    %1516 = vmatpush1.bf16.msra.mxu0 %v653
    %1517 = vmatprep.subr.bf16.mxu0 %v658
    %1518 = vmatpush1.bf16.msra.mxu0 %v657
    %1519 = vmatprep.subr.bf16.mxu0 %v662
    %1520 = vmatpush1.bf16.msra.mxu0 %v661
    %1521 = vmatprep.subr.bf16.mxu0 %v666
    %1522 = vmatpush1.bf16.msra.mxu0 %v665
    %1523 = vmatprep.subr.bf16.mxu0 %v670
    %1524 = vmatpush1.bf16.msra.mxu0 %v669
    %1525 = vmatprep.subr.bf16.mxu0 %v674
    %1526 = vmatpush1.bf16.msra.mxu0 %v673
    %1527 = vmatprep.subr.bf16.mxu0 %v678
    %1528 = vmatpush1.bf16.msra.mxu0 %v677
    %1529 = vmatprep.subr.bf16.mxu0 %v682
    %1530 = vmatpush1.bf16.msra.mxu0 %v681
    %1531 = vmatprep.subr.bf16.mxu0 0
    %1532 = vmatpush1.bf16.msra.mxu0 0
    %1533 = vmatprep.subr.bf16.mxu0 0
    %1534 = vmatpush1.bf16.msra.mxu0 0
    %1535 = vmatprep.subr.bf16.mxu0 0
    %1536 = vmatpush1.bf16.msra.mxu0 0
    %1537 = vmatprep.subr.bf16.mxu0 0
    %1538 = vmatpush1.bf16.msra.mxu0 0
    %1539 = vmatprep.subr.bf16.mxu0 0
    %1540 = vmatpush1.bf16.msra.mxu0 0
    %1541 = vmatprep.subr.bf16.mxu0 0
    %1542 = vmatpush1.bf16.msra.mxu0 0
    %1543 = vmatprep.subr.bf16.mxu0 0
    %1544 = vmatpush1.bf16.msra.mxu0 0
    %1545 = vmatprep.subr.bf16.mxu0 0
    %1546 = vmatpush1.bf16.msra.mxu0 0
    %1547 = vmatprep.mubr.bf16.mxu0 0
    %1548 = vmatmul.mubr.bf16.gmra.mrb[0].mxu0 %v1514
    %v1549 = vpop.f32.mrb[0].mxu0
    %v1550 = vadd.f32 0.0, %v1549
    %v1551 = vpop.f32.mrb[0].mxu0
    %v1552 = vadd.f32 0.0, %v1551
    %v1553 = vpop.f32.mrb[0].mxu0
    %v1554 = vpop.f32.mrb[0].mxu0
    %1555 = vdwg.mxu0
    %1556 = vmatprep.subr.bf16.mxu0 %v656
    %1557 = vmatpush1.bf16.msra.mxu0 %v655
    %1558 = vmatprep.subr.bf16.mxu0 %v660
    %1559 = vmatpush1.bf16.msra.mxu0 %v659
    %1560 = vmatprep.subr.bf16.mxu0 %v664
    %1561 = vmatpush1.bf16.msra.mxu0 %v663
    %1562 = vmatprep.subr.bf16.mxu0 %v668
    %1563 = vmatpush1.bf16.msra.mxu0 %v667
    %1564 = vmatprep.subr.bf16.mxu0 %v672
    %1565 = vmatpush1.bf16.msra.mxu0 %v671
    %1566 = vmatprep.subr.bf16.mxu0 %v676
    %1567 = vmatpush1.bf16.msra.mxu0 %v675
    %1568 = vmatprep.subr.bf16.mxu0 %v680
    %1569 = vmatpush1.bf16.msra.mxu0 %v679
    %1570 = vmatprep.subr.bf16.mxu0 %v684
    %1571 = vmatpush1.bf16.msra.mxu0 %v683
    %1572 = vmatprep.subr.bf16.mxu0 0
    %1573 = vmatpush1.bf16.msra.mxu0 0
    %1574 = vmatprep.subr.bf16.mxu0 0
    %1575 = vmatpush1.bf16.msra.mxu0 0
    %1576 = vmatprep.subr.bf16.mxu0 0
    %1577 = vmatpush1.bf16.msra.mxu0 0
    %1578 = vmatprep.subr.bf16.mxu0 0
    %1579 = vmatpush1.bf16.msra.mxu0 0
    %1580 = vmatprep.subr.bf16.mxu0 0
    %1581 = vmatpush1.bf16.msra.mxu0 0
    %1582 = vmatprep.subr.bf16.mxu0 0
    %1583 = vmatpush1.bf16.msra.mxu0 0
    %1584 = vmatprep.subr.bf16.mxu0 0
    %1585 = vmatpush1.bf16.msra.mxu0 0
    %1586 = vmatprep.subr.bf16.mxu0 0
    %1587 = vmatpush1.bf16.msra.mxu0 0
    %1588 = vmatprep.mubr.bf16.mxu0 0
    %1589 = vmatmul.mubr.bf16.gmra.mrb[0].mxu0 %v1514
    %v1590 = vpop.f32.mrb[0].mxu0
    %v1591 = vadd.f32 0.0, %v1590
    %v1592 = vpop.f32.mrb[0].mxu0
    %v1593 = vadd.f32 0.0, %v1592
    %v1594 = vpop.f32.mrb[0].mxu0
    %v1595 = vpop.f32.mrb[0].mxu0
    %1596 = vdwg.mxu0
    %v1597 = vadd.f32 %v1510, %v1550
    %v1598 = vadd.f32 %v1511, %v1552
    %v1599 = vadd.f32 %v1512, %v1591
    %v1600 = vadd.f32 %v1513, %v1593
    %v1601 = vtanh.pop %v1597
    %v1602 = vtanh.pop %v1598
    %v1603 = vtanh.pop %v1599
    %v1604 = vtanh.pop %v1600
    %v1605 = vmul.f32 %v1601, %v811
    %v1606 = vmul.f32 %v1602, %v815
    %v1607 = vmul.f32 %v1603, %v819
    %v1608 = vmul.f32 %v1604, %v823
    %v1609 = vadd.f32 %v1605, %v836
    %v1610 = vadd.f32 %v1606, %v840
    %v1611 = vadd.f32 %v1607, %v844
    %v1612 = vadd.f32 %v1608, %v848
    %v1613 = vmul.f32 %v1610, %v1507
    %v1614 = vmul.f32 %v1609, %v1611
    %v1615 = vadd.f32 %v1613, %v1614
    %v1616 = vtanh.pop %v1615
    %v1617 = vmul.f32 %v1612, %v1616
    %v1618 = vld [vmem:[#allocation2 + $0x100] sm:$0xff]
    %v1619 = vld [vmem:[#allocation2 + $0x108] sm:$0xff]
    %v1620 = vld [vmem:[#allocation2 + $0x110] sm:$0xff]
    %v1621 = vld [vmem:[#allocation2 + $0x118] sm:$0xff]
    %v1622 = vpack.c.bf16 %v1617, %v1617
    %1623 = vmatprep.subr.bf16.mxu0 %v654
    %1624 = vmatpush1.bf16.msra.mxu0 %v653
    %1625 = vmatprep.subr.bf16.mxu0 %v658
    %1626 = vmatpush1.bf16.msra.mxu0 %v657
    %1627 = vmatprep.subr.bf16.mxu0 %v662
    %1628 = vmatpush1.bf16.msra.mxu0 %v661
    %1629 = vmatprep.subr.bf16.mxu0 %v666
    %1630 = vmatpush1.bf16.msra.mxu0 %v665
    %1631 = vmatprep.subr.bf16.mxu0 %v670
    %1632 = vmatpush1.bf16.msra.mxu0 %v669
    %1633 = vmatprep.subr.bf16.mxu0 %v674
    %1634 = vmatpush1.bf16.msra.mxu0 %v673
    %1635 = vmatprep.subr.bf16.mxu0 %v678
    %1636 = vmatpush1.bf16.msra.mxu0 %v677
    %1637 = vmatprep.subr.bf16.mxu0 %v682
    %1638 = vmatpush1.bf16.msra.mxu0 %v681
    %1639 = vmatprep.subr.bf16.mxu0 0
    %1640 = vmatpush1.bf16.msra.mxu0 0
    %1641 = vmatprep.subr.bf16.mxu0 0
    %1642 = vmatpush1.bf16.msra.mxu0 0
    %1643 = vmatprep.subr.bf16.mxu0 0
    %1644 = vmatpush1.bf16.msra.mxu0 0
    %1645 = vmatprep.subr.bf16.mxu0 0
    %1646 = vmatpush1.bf16.msra.mxu0 0
    %1647 = vmatprep.subr.bf16.mxu0 0
    %1648 = vmatpush1.bf16.msra.mxu0 0
    %1649 = vmatprep.subr.bf16.mxu0 0
    %1650 = vmatpush1.bf16.msra.mxu0 0
    %1651 = vmatprep.subr.bf16.mxu0 0
    %1652 = vmatpush1.bf16.msra.mxu0 0
    %1653 = vmatprep.subr.bf16.mxu0 0
    %1654 = vmatpush1.bf16.msra.mxu0 0
    %1655 = vmatprep.mubr.bf16.mxu0 0
    %1656 = vmatmul.mubr.bf16.gmra.mrb[0].mxu0 %v1622
    %v1657 = vpop.f32.mrb[0].mxu0
    %v1658 = vadd.f32 0.0, %v1657
    %v1659 = vpop.f32.mrb[0].mxu0
    %v1660 = vadd.f32 0.0, %v1659
    %v1661 = vpop.f32.mrb[0].mxu0
    %v1662 = vpop.f32.mrb[0].mxu0
    %1663 = vdwg.mxu0
    %1664 = vmatprep.subr.bf16.mxu0 %v656
    %1665 = vmatpush1.bf16.msra.mxu0 %v655
    %1666 = vmatprep.subr.bf16.mxu0 %v660
    %1667 = vmatpush1.bf16.msra.mxu0 %v659
    %1668 = vmatprep.subr.bf16.mxu0 %v664
    %1669 = vmatpush1.bf16.msra.mxu0 %v663
    %1670 = vmatprep.subr.bf16.mxu0 %v668
    %1671 = vmatpush1.bf16.msra.mxu0 %v667
    %1672 = vmatprep.subr.bf16.mxu0 %v672
    %1673 = vmatpush1.bf16.msra.mxu0 %v671
    %1674 = vmatprep.subr.bf16.mxu0 %v676
    %1675 = vmatpush1.bf16.msra.mxu0 %v675
    %1676 = vmatprep.subr.bf16.mxu0 %v680
    %1677 = vmatpush1.bf16.msra.mxu0 %v679
    %1678 = vmatprep.subr.bf16.mxu0 %v684
    %1679 = vmatpush1.bf16.msra.mxu0 %v683
    %1680 = vmatprep.subr.bf16.mxu0 0
    %1681 = vmatpush1.bf16.msra.mxu0 0
    %1682 = vmatprep.subr.bf16.mxu0 0
    %1683 = vmatpush1.bf16.msra.mxu0 0
    %1684 = vmatprep.subr.bf16.mxu0 0
    %1685 = vmatpush1.bf16.msra.mxu0 0
    %1686 = vmatprep.subr.bf16.mxu0 0
    %1687 = vmatpush1.bf16.msra.mxu0 0
    %1688 = vmatprep.subr.bf16.mxu0 0
    %1689 = vmatpush1.bf16.msra.mxu0 0
    %1690 = vmatprep.subr.bf16.mxu0 0
    %1691 = vmatpush1.bf16.msra.mxu0 0
    %1692 = vmatprep.subr.bf16.mxu0 0
    %1693 = vmatpush1.bf16.msra.mxu0 0
    %1694 = vmatprep.subr.bf16.mxu0 0
    %1695 = vmatpush1.bf16.msra.mxu0 0
    %1696 = vmatprep.mubr.bf16.mxu0 0
    %1697 = vmatmul.mubr.bf16.gmra.mrb[0].mxu0 %v1622
    %v1698 = vpop.f32.mrb[0].mxu0
    %v1699 = vadd.f32 0.0, %v1698
    %v1700 = vpop.f32.mrb[0].mxu0
    %v1701 = vadd.f32 0.0, %v1700
    %v1702 = vpop.f32.mrb[0].mxu0
    %v1703 = vpop.f32.mrb[0].mxu0
    %1704 = vdwg.mxu0
    %v1705 = vadd.f32 %v1618, %v1658
    %v1706 = vadd.f32 %v1619, %v1660
    %v1707 = vadd.f32 %v1620, %v1699
    %v1708 = vadd.f32 %v1621, %v1701
    %v1709 = vtanh.pop %v1705
    %v1710 = vtanh.pop %v1706
    %v1711 = vtanh.pop %v1707
    %v1712 = vtanh.pop %v1708
    %v1713 = vmul.f32 %v1709, %v811
    %v1714 = vmul.f32 %v1710, %v815
    %v1715 = vmul.f32 %v1711, %v819
    %v1716 = vmul.f32 %v1712, %v823
    %v1717 = vadd.f32 %v1713, %v836
    %v1718 = vadd.f32 %v1714, %v840
    %v1719 = vadd.f32 %v1715, %v844
    %v1720 = vadd.f32 %v1716, %v848
    %v1721 = vmul.f32 %v1718, %v1615
    %v1722 = vmul.f32 %v1717, %v1719
    %v1723 = vadd.f32 %v1721, %v1722
    %v1724 = vtanh.pop %v1723
    %v1725 = vmul.f32 %v1720, %v1724
    %v1726 = vld [vmem:[#allocation2 + $0x120] sm:$0xff]
    %v1727 = vld [vmem:[#allocation2 + $0x128] sm:$0xff]
    %v1728 = vld [vmem:[#allocation2 + $0x130] sm:$0xff]
    %v1729 = vld [vmem:[#allocation2 + $0x138] sm:$0xff]
    %v1730 = vpack.c.bf16 %v1725, %v1725
    %1731 = vmatprep.subr.bf16.mxu0 %v654
    %1732 = vmatpush1.bf16.msra.mxu0 %v653
    %1733 = vmatprep.subr.bf16.mxu0 %v658
    %1734 = vmatpush1.bf16.msra.mxu0 %v657
    %1735 = vmatprep.subr.bf16.mxu0 %v662
    %1736 = vmatpush1.bf16.msra.mxu0 %v661
    %1737 = vmatprep.subr.bf16.mxu0 %v666
    %1738 = vmatpush1.bf16.msra.mxu0 %v665
    %1739 = vmatprep.subr.bf16.mxu0 %v670
    %1740 = vmatpush1.bf16.msra.mxu0 %v669
    %1741 = vmatprep.subr.bf16.mxu0 %v674
    %1742 = vmatpush1.bf16.msra.mxu0 %v673
    %1743 = vmatprep.subr.bf16.mxu0 %v678
    %1744 = vmatpush1.bf16.msra.mxu0 %v677
    %1745 = vmatprep.subr.bf16.mxu0 %v682
    %1746 = vmatpush1.bf16.msra.mxu0 %v681
    %1747 = vmatprep.subr.bf16.mxu0 0
    %1748 = vmatpush1.bf16.msra.mxu0 0
    %1749 = vmatprep.subr.bf16.mxu0 0
    %1750 = vmatpush1.bf16.msra.mxu0 0
    %1751 = vmatprep.subr.bf16.mxu0 0
    %1752 = vmatpush1.bf16.msra.mxu0 0
    %1753 = vmatprep.subr.bf16.mxu0 0
    %1754 = vmatpush1.bf16.msra.mxu0 0
    %1755 = vmatprep.subr.bf16.mxu0 0
    %1756 = vmatpush1.bf16.msra.mxu0 0
    %1757 = vmatprep.subr.bf16.mxu0 0
    %1758 = vmatpush1.bf16.msra.mxu0 0
    %1759 = vmatprep.subr.bf16.mxu0 0
    %1760 = vmatpush1.bf16.msra.mxu0 0
    %1761 = vmatprep.subr.bf16.mxu0 0
    %1762 = vmatpush1.bf16.msra.mxu0 0
    %1763 = vmatprep.mubr.bf16.mxu0 0
    %1764 = vmatmul.mubr.bf16.gmra.mrb[0].mxu0 %v1730
    %v1765 = vpop.f32.mrb[0].mxu0
    %v1766 = vadd.f32 0.0, %v1765
    %v1767 = vpop.f32.mrb[0].mxu0
    %v1768 = vadd.f32 0.0, %v1767
    %v1769 = vpop.f32.mrb[0].mxu0
    %v1770 = vpop.f32.mrb[0].mxu0
    %1771 = vdwg.mxu0
    %1772 = vmatprep.subr.bf16.mxu0 %v656
    %1773 = vmatpush1.bf16.msra.mxu0 %v655
    %1774 = vmatprep.subr.bf16.mxu0 %v660
    %1775 = vmatpush1.bf16.msra.mxu0 %v659
    %1776 = vmatprep.subr.bf16.mxu0 %v664
    %1777 = vmatpush1.bf16.msra.mxu0 %v663
    %1778 = vmatprep.subr.bf16.mxu0 %v668
    %1779 = vmatpush1.bf16.msra.mxu0 %v667
    %1780 = vmatprep.subr.bf16.mxu0 %v672
    %1781 = vmatpush1.bf16.msra.mxu0 %v671
    %1782 = vmatprep.subr.bf16.mxu0 %v676
    %1783 = vmatpush1.bf16.msra.mxu0 %v675
    %1784 = vmatprep.subr.bf16.mxu0 %v680
    %1785 = vmatpush1.bf16.msra.mxu0 %v679
    %1786 = vmatprep.subr.bf16.mxu0 %v684
    %1787 = vmatpush1.bf16.msra.mxu0 %v683
    %1788 = vmatprep.subr.bf16.mxu0 0
    %1789 = vmatpush1.bf16.msra.mxu0 0
    %1790 = vmatprep.subr.bf16.mxu0 0
    %1791 = vmatpush1.bf16.msra.mxu0 0
    %1792 = vmatprep.subr.bf16.mxu0 0
    %1793 = vmatpush1.bf16.msra.mxu0 0
    %1794 = vmatprep.subr.bf16.mxu0 0
    %1795 = vmatpush1.bf16.msra.mxu0 0
    %1796 = vmatprep.subr.bf16.mxu0 0
    %1797 = vmatpush1.bf16.msra.mxu0 0
    %1798 = vmatprep.subr.bf16.mxu0 0
    %1799 = vmatpush1.bf16.msra.mxu0 0
    %1800 = vmatprep.subr.bf16.mxu0 0
    %1801 = vmatpush1.bf16.msra.mxu0 0
    %1802 = vmatprep.subr.bf16.mxu0 0
    %1803 = vmatpush1.bf16.msra.mxu0 0
    %1804 = vmatprep.mubr.bf16.mxu0 0
    %1805 = vmatmul.mubr.bf16.gmra.mrb[0].mxu0 %v1730
    %v1806 = vpop.f32.mrb[0].mxu0
    %v1807 = vadd.f32 0.0, %v1806
    %v1808 = vpop.f32.mrb[0].mxu0
    %v1809 = vadd.f32 0.0, %v1808
    %v1810 = vpop.f32.mrb[0].mxu0
    %v1811 = vpop.f32.mrb[0].mxu0
    %1812 = vdwg.mxu0
    %v1813 = vadd.f32 %v1726, %v1766
    %v1814 = vadd.f32 %v1727, %v1768
    %v1815 = vadd.f32 %v1728, %v1807
    %v1816 = vadd.f32 %v1729, %v1809
    %v1817 = vtanh.pop %v1813
    %v1818 = vtanh.pop %v1814
    %v1819 = vtanh.pop %v1815
    %v1820 = vtanh.pop %v1816
    %v1821 = vmul.f32 %v1817, %v811
    %v1822 = vmul.f32 %v1818, %v815
    %v1823 = vmul.f32 %v1819, %v819
    %v1824 = vmul.f32 %v1820, %v823
    %v1825 = vadd.f32 %v1821, %v836
    %v1826 = vadd.f32 %v1822, %v840
    %v1827 = vadd.f32 %v1823, %v844
    %v1828 = vadd.f32 %v1824, %v848
    %v1829 = vmul.f32 %v1826, %v1723
    %v1830 = vmul.f32 %v1825, %v1827
    %v1831 = vadd.f32 %v1829, %v1830
    %v1832 = vtanh.pop %v1831
    %v1833 = vmul.f32 %v1828, %v1832
    %v1834 = vld [vmem:[#allocation2 + $0x140] sm:$0xff]
    %v1835 = vld [vmem:[#allocation2 + $0x148] sm:$0xff]
    %v1836 = vld [vmem:[#allocation2 + $0x150] sm:$0xff]
    %v1837 = vld [vmem:[#allocation2 + $0x158] sm:$0xff]
    %v1838 = vpack.c.bf16 %v1833, %v1833
    %1839 = vmatprep.subr.bf16.mxu0 %v654
    %1840 = vmatpush1.bf16.msra.mxu0 %v653
    %1841 = vmatprep.subr.bf16.mxu0 %v658
    %1842 = vmatpush1.bf16.msra.mxu0 %v657
    %1843 = vmatprep.subr.bf16.mxu0 %v662
    %1844 = vmatpush1.bf16.msra.mxu0 %v661
    %1845 = vmatprep.subr.bf16.mxu0 %v666
    %1846 = vmatpush1.bf16.msra.mxu0 %v665
    %1847 = vmatprep.subr.bf16.mxu0 %v670
    %1848 = vmatpush1.bf16.msra.mxu0 %v669
    %1849 = vmatprep.subr.bf16.mxu0 %v674
    %1850 = vmatpush1.bf16.msra.mxu0 %v673
    %1851 = vmatprep.subr.bf16.mxu0 %v678
    %1852 = vmatpush1.bf16.msra.mxu0 %v677
    %1853 = vmatprep.subr.bf16.mxu0 %v682
    %1854 = vmatpush1.bf16.msra.mxu0 %v681
    %1855 = vmatprep.subr.bf16.mxu0 0
    %1856 = vmatpush1.bf16.msra.mxu0 0
    %1857 = vmatprep.subr.bf16.mxu0 0
    %1858 = vmatpush1.bf16.msra.mxu0 0
    %1859 = vmatprep.subr.bf16.mxu0 0
    %1860 = vmatpush1.bf16.msra.mxu0 0
    %1861 = vmatprep.subr.bf16.mxu0 0
    %1862 = vmatpush1.bf16.msra.mxu0 0
    %1863 = vmatprep.subr.bf16.mxu0 0
    %1864 = vmatpush1.bf16.msra.mxu0 0
    %1865 = vmatprep.subr.bf16.mxu0 0
    %1866 = vmatpush1.bf16.msra.mxu0 0
    %1867 = vmatprep.subr.bf16.mxu0 0
    %1868 = vmatpush1.bf16.msra.mxu0 0
    %1869 = vmatprep.subr.bf16.mxu0 0
    %1870 = vmatpush1.bf16.msra.mxu0 0
    %1871 = vmatprep.mubr.bf16.mxu0 0
    %1872 = vmatmul.mubr.bf16.gmra.mrb[0].mxu0 %v1838
    %v1873 = vpop.f32.mrb[0].mxu0
    %v1874 = vadd.f32 0.0, %v1873
    %v1875 = vpop.f32.mrb[0].mxu0
    %v1876 = vadd.f32 0.0, %v1875
    %v1877 = vpop.f32.mrb[0].mxu0
    %v1878 = vpop.f32.mrb[0].mxu0
    %1879 = vdwg.mxu0
    %1880 = vmatprep.subr.bf16.mxu0 %v656
    %1881 = vmatpush1.bf16.msra.mxu0 %v655
    %1882 = vmatprep.subr.bf16.mxu0 %v660
    %1883 = vmatpush1.bf16.msra.mxu0 %v659
    %1884 = vmatprep.subr.bf16.mxu0 %v664
    %1885 = vmatpush1.bf16.msra.mxu0 %v663
    %1886 = vmatprep.subr.bf16.mxu0 %v668
    %1887 = vmatpush1.bf16.msra.mxu0 %v667
    %1888 = vmatprep.subr.bf16.mxu0 %v672
    %1889 = vmatpush1.bf16.msra.mxu0 %v671
    %1890 = vmatprep.subr.bf16.mxu0 %v676
    %1891 = vmatpush1.bf16.msra.mxu0 %v675
    %1892 = vmatprep.subr.bf16.mxu0 %v680
    %1893 = vmatpush1.bf16.msra.mxu0 %v679
    %1894 = vmatprep.subr.bf16.mxu0 %v684
    %1895 = vmatpush1.bf16.msra.mxu0 %v683
    %1896 = vmatprep.subr.bf16.mxu0 0
    %1897 = vmatpush1.bf16.msra.mxu0 0
    %1898 = vmatprep.subr.bf16.mxu0 0
    %1899 = vmatpush1.bf16.msra.mxu0 0
    %1900 = vmatprep.subr.bf16.mxu0 0
    %1901 = vmatpush1.bf16.msra.mxu0 0
    %1902 = vmatprep.subr.bf16.mxu0 0
    %1903 = vmatpush1.bf16.msra.mxu0 0
    %1904 = vmatprep.subr.bf16.mxu0 0
    %1905 = vmatpush1.bf16.msra.mxu0 0
    %1906 = vmatprep.subr.bf16.mxu0 0
    %1907 = vmatpush1.bf16.msra.mxu0 0
    %1908 = vmatprep.subr.bf16.mxu0 0
    %1909 = vmatpush1.bf16.msra.mxu0 0
    %1910 = vmatprep.subr.bf16.mxu0 0
    %1911 = vmatpush1.bf16.msra.mxu0 0
    %1912 = vmatprep.mubr.bf16.mxu0 0
    %1913 = vmatmul.mubr.bf16.gmra.mrb[0].mxu0 %v1838
    %v1914 = vpop.f32.mrb[0].mxu0
    %v1915 = vadd.f32 0.0, %v1914
    %v1916 = vpop.f32.mrb[0].mxu0
    %v1917 = vadd.f32 0.0, %v1916
    %v1918 = vpop.f32.mrb[0].mxu0
    %v1919 = vpop.f32.mrb[0].mxu0
    %1920 = vdwg.mxu0
    %v1921 = vadd.f32 %v1834, %v1874
    %v1922 = vadd.f32 %v1835, %v1876
    %v1923 = vadd.f32 %v1836, %v1915
    %v1924 = vadd.f32 %v1837, %v1917
    %v1925 = vtanh.pop %v1921
    %v1926 = vtanh.pop %v1922
    %v1927 = vtanh.pop %v1923
    %v1928 = vtanh.pop %v1924
    %v1929 = vmul.f32 %v1925, %v811
    %v1930 = vmul.f32 %v1926, %v815
    %v1931 = vmul.f32 %v1927, %v819
    %v1932 = vmul.f32 %v1928, %v823
    %v1933 = vadd.f32 %v1929, %v836
    %v1934 = vadd.f32 %v1930, %v840
    %v1935 = vadd.f32 %v1931, %v844
    %v1936 = vadd.f32 %v1932, %v848
    %v1937 = vmul.f32 %v1934, %v1831
    %v1938 = vmul.f32 %v1933, %v1935
    %v1939 = vadd.f32 %v1937, %v1938
    %v1940 = vtanh.pop %v1939
    %v1941 = vmul.f32 %v1936, %v1940
    %v1942 = vld [vmem:[#allocation2 + $0x160] sm:$0xff]
    %v1943 = vld [vmem:[#allocation2 + $0x168] sm:$0xff]
    %v1944 = vld [vmem:[#allocation2 + $0x170] sm:$0xff]
    %v1945 = vld [vmem:[#allocation2 + $0x178] sm:$0xff]
    %v1946 = vpack.c.bf16 %v1941, %v1941
    %1947 = vmatprep.subr.bf16.mxu0 %v654
    %1948 = vmatpush1.bf16.msra.mxu0 %v653
    %1949 = vmatprep.subr.bf16.mxu0 %v658
    %1950 = vmatpush1.bf16.msra.mxu0 %v657
    %1951 = vmatprep.subr.bf16.mxu0 %v662
    %1952 = vmatpush1.bf16.msra.mxu0 %v661
    %1953 = vmatprep.subr.bf16.mxu0 %v666
    %1954 = vmatpush1.bf16.msra.mxu0 %v665
    %1955 = vmatprep.subr.bf16.mxu0 %v670
    %1956 = vmatpush1.bf16.msra.mxu0 %v669
    %1957 = vmatprep.subr.bf16.mxu0 %v674
    %1958 = vmatpush1.bf16.msra.mxu0 %v673
    %1959 = vmatprep.subr.bf16.mxu0 %v678
    %1960 = vmatpush1.bf16.msra.mxu0 %v677
    %1961 = vmatprep.subr.bf16.mxu0 %v682
    %1962 = vmatpush1.bf16.msra.mxu0 %v681
    %1963 = vmatprep.subr.bf16.mxu0 0
    %1964 = vmatpush1.bf16.msra.mxu0 0
    %1965 = vmatprep.subr.bf16.mxu0 0
    %1966 = vmatpush1.bf16.msra.mxu0 0
    %1967 = vmatprep.subr.bf16.mxu0 0
    %1968 = vmatpush1.bf16.msra.mxu0 0
    %1969 = vmatprep.subr.bf16.mxu0 0
    %1970 = vmatpush1.bf16.msra.mxu0 0
    %1971 = vmatprep.subr.bf16.mxu0 0
    %1972 = vmatpush1.bf16.msra.mxu0 0
    %1973 = vmatprep.subr.bf16.mxu0 0
    %1974 = vmatpush1.bf16.msra.mxu0 0
    %1975 = vmatprep.subr.bf16.mxu0 0
    %1976 = vmatpush1.bf16.msra.mxu0 0
    %1977 = vmatprep.subr.bf16.mxu0 0
    %1978 = vmatpush1.bf16.msra.mxu0 0
    %1979 = vmatprep.mubr.bf16.mxu0 0
    %1980 = vmatmul.mubr.bf16.gmra.mrb[0].mxu0 %v1946
    %v1981 = vpop.f32.mrb[0].mxu0
    %v1982 = vadd.f32 0.0, %v1981
    %v1983 = vpop.f32.mrb[0].mxu0
    %v1984 = vadd.f32 0.0, %v1983
    %v1985 = vpop.f32.mrb[0].mxu0
    %v1986 = vpop.f32.mrb[0].mxu0
    %1987 = vdwg.mxu0
    %1988 = vmatprep.subr.bf16.mxu0 %v656
    %1989 = vmatpush1.bf16.msra.mxu0 %v655
    %1990 = vmatprep.subr.bf16.mxu0 %v660
    %1991 = vmatpush1.bf16.msra.mxu0 %v659
    %1992 = vmatprep.subr.bf16.mxu0 %v664
    %1993 = vmatpush1.bf16.msra.mxu0 %v663
    %1994 = vmatprep.subr.bf16.mxu0 %v668
    %1995 = vmatpush1.bf16.msra.mxu0 %v667
    %1996 = vmatprep.subr.bf16.mxu0 %v672
    %1997 = vmatpush1.bf16.msra.mxu0 %v671
    %1998 = vmatprep.subr.bf16.mxu0 %v676
    %1999 = vmatpush1.bf16.msra.mxu0 %v675
    %2000 = vmatprep.subr.bf16.mxu0 %v680
    %2001 = vmatpush1.bf16.msra.mxu0 %v679
    %2002 = vmatprep.subr.bf16.mxu0 %v684
    %2003 = vmatpush1.bf16.msra.mxu0 %v683
    %2004 = vmatprep.subr.bf16.mxu0 0
    %2005 = vmatpush1.bf16.msra.mxu0 0
    %2006 = vmatprep.subr.bf16.mxu0 0
    %2007 = vmatpush1.bf16.msra.mxu0 0
    %2008 = vmatprep.subr.bf16.mxu0 0
    %2009 = vmatpush1.bf16.msra.mxu0 0
    %2010 = vmatprep.subr.bf16.mxu0 0
    %2011 = vmatpush1.bf16.msra.mxu0 0
    %2012 = vmatprep.subr.bf16.mxu0 0
    %2013 = vmatpush1.bf16.msra.mxu0 0
    %2014 = vmatprep.subr.bf16.mxu0 0
    %2015 = vmatpush1.bf16.msra.mxu0 0
    %2016 = vmatprep.subr.bf16.mxu0 0
    %2017 = vmatpush1.bf16.msra.mxu0 0
    %2018 = vmatprep.subr.bf16.mxu0 0
    %2019 = vmatpush1.bf16.msra.mxu0 0
    %2020 = vmatprep.mubr.bf16.mxu0 0
    %2021 = vmatmul.mubr.bf16.gmra.mrb[0].mxu0 %v1946
    %v2022 = vpop.f32.mrb[0].mxu0
    %v2023 = vadd.f32 0.0, %v2022
    %v2024 = vpop.f32.mrb[0].mxu0
    %v2025 = vadd.f32 0.0, %v2024
    %v2026 = vpop.f32.mrb[0].mxu0
    %v2027 = vpop.f32.mrb[0].mxu0
    %2028 = vdwg.mxu0
    %v2029 = vadd.f32 %v1942, %v1982
    %v2030 = vadd.f32 %v1943, %v1984
    %v2031 = vadd.f32 %v1944, %v2023
    %v2032 = vadd.f32 %v1945, %v2025
    %v2033 = vtanh.pop %v2029
    %v2034 = vtanh.pop %v2030
    %v2035 = vtanh.pop %v2031
    %v2036 = vtanh.pop %v2032
    %v2037 = vmul.f32 %v2033, %v811
    %v2038 = vmul.f32 %v2034, %v815
    %v2039 = vmul.f32 %v2035, %v819
    %v2040 = vmul.f32 %v2036, %v823
    %v2041 = vadd.f32 %v2037, %v836
    %v2042 = vadd.f32 %v2038, %v840
    %v2043 = vadd.f32 %v2039, %v844
    %v2044 = vadd.f32 %v2040, %v848
    %v2045 = vmul.f32 %v2042, %v1939
    %v2046 = vmul.f32 %v2041, %v2043
    %v2047 = vadd.f32 %v2045, %v2046
    %v2048 = vtanh.pop %v2047
    %v2049 = vmul.f32 %v2044, %v2048
    %v2050 = vld [vmem:[#allocation2 + $0x180] sm:$0xff]
    %v2051 = vld [vmem:[#allocation2 + $0x188] sm:$0xff]
    %v2052 = vld [vmem:[#allocation2 + $0x190] sm:$0xff]
    %v2053 = vld [vmem:[#allocation2 + $0x198] sm:$0xff]
    %v2054 = vpack.c.bf16 %v2049, %v2049
    %2055 = vmatprep.subr.bf16.mxu0 %v654
    %2056 = vmatpush1.bf16.msra.mxu0 %v653
    %2057 = vmatprep.subr.bf16.mxu0 %v658
    %2058 = vmatpush1.bf16.msra.mxu0 %v657
    %2059 = vmatprep.subr.bf16.mxu0 %v662
    %2060 = vmatpush1.bf16.msra.mxu0 %v661
    %2061 = vmatprep.subr.bf16.mxu0 %v666
    %2062 = vmatpush1.bf16.msra.mxu0 %v665
    %2063 = vmatprep.subr.bf16.mxu0 %v670
    %2064 = vmatpush1.bf16.msra.mxu0 %v669
    %2065 = vmatprep.subr.bf16.mxu0 %v674
    %2066 = vmatpush1.bf16.msra.mxu0 %v673
    %2067 = vmatprep.subr.bf16.mxu0 %v678
    %2068 = vmatpush1.bf16.msra.mxu0 %v677
    %2069 = vmatprep.subr.bf16.mxu0 %v682
    %2070 = vmatpush1.bf16.msra.mxu0 %v681
    %2071 = vmatprep.subr.bf16.mxu0 0
    %2072 = vmatpush1.bf16.msra.mxu0 0
    %2073 = vmatprep.subr.bf16.mxu0 0
    %2074 = vmatpush1.bf16.msra.mxu0 0
    %2075 = vmatprep.subr.bf16.mxu0 0
    %2076 = vmatpush1.bf16.msra.mxu0 0
    %2077 = vmatprep.subr.bf16.mxu0 0
    %2078 = vmatpush1.bf16.msra.mxu0 0
    %2079 = vmatprep.subr.bf16.mxu0 0
    %2080 = vmatpush1.bf16.msra.mxu0 0
    %2081 = vmatprep.subr.bf16.mxu0 0
    %2082 = vmatpush1.bf16.msra.mxu0 0
    %2083 = vmatprep.subr.bf16.mxu0 0
    %2084 = vmatpush1.bf16.msra.mxu0 0
    %2085 = vmatprep.subr.bf16.mxu0 0
    %2086 = vmatpush1.bf16.msra.mxu0 0
    %2087 = vmatprep.mubr.bf16.mxu0 0
    %2088 = vmatmul.mubr.bf16.gmra.mrb[0].mxu0 %v2054
    %v2089 = vpop.f32.mrb[0].mxu0
    %v2090 = vadd.f32 0.0, %v2089
    %v2091 = vpop.f32.mrb[0].mxu0
    %v2092 = vadd.f32 0.0, %v2091
    %v2093 = vpop.f32.mrb[0].mxu0
    %v2094 = vpop.f32.mrb[0].mxu0
    %2095 = vdwg.mxu0
    %2096 = vmatprep.subr.bf16.mxu0 %v656
    %2097 = vmatpush1.bf16.msra.mxu0 %v655
    %2098 = vmatprep.subr.bf16.mxu0 %v660
    %2099 = vmatpush1.bf16.msra.mxu0 %v659
    %2100 = vmatprep.subr.bf16.mxu0 %v664
    %2101 = vmatpush1.bf16.msra.mxu0 %v663
    %2102 = vmatprep.subr.bf16.mxu0 %v668
    %2103 = vmatpush1.bf16.msra.mxu0 %v667
    %2104 = vmatprep.subr.bf16.mxu0 %v672
    %2105 = vmatpush1.bf16.msra.mxu0 %v671
    %2106 = vmatprep.subr.bf16.mxu0 %v676
    %2107 = vmatpush1.bf16.msra.mxu0 %v675
    %2108 = vmatprep.subr.bf16.mxu0 %v680
    %2109 = vmatpush1.bf16.msra.mxu0 %v679
    %2110 = vmatprep.subr.bf16.mxu0 %v684
    %2111 = vmatpush1.bf16.msra.mxu0 %v683
    %2112 = vmatprep.subr.bf16.mxu0 0
    %2113 = vmatpush1.bf16.msra.mxu0 0
    %2114 = vmatprep.subr.bf16.mxu0 0
    %2115 = vmatpush1.bf16.msra.mxu0 0
    %2116 = vmatprep.subr.bf16.mxu0 0
    %2117 = vmatpush1.bf16.msra.mxu0 0
    %2118 = vmatprep.subr.bf16.mxu0 0
    %2119 = vmatpush1.bf16.msra.mxu0 0
    %2120 = vmatprep.subr.bf16.mxu0 0
    %2121 = vmatpush1.bf16.msra.mxu0 0
    %2122 = vmatprep.subr.bf16.mxu0 0
    %2123 = vmatpush1.bf16.msra.mxu0 0
    %2124 = vmatprep.subr.bf16.mxu0 0
    %2125 = vmatpush1.bf16.msra.mxu0 0
    %2126 = vmatprep.subr.bf16.mxu0 0
    %2127 = vmatpush1.bf16.msra.mxu0 0
    %2128 = vmatprep.mubr.bf16.mxu0 0
    %2129 = vmatmul.mubr.bf16.gmra.mrb[0].mxu0 %v2054
    %v2130 = vpop.f32.mrb[0].mxu0
    %v2131 = vadd.f32 0.0, %v2130
    %v2132 = vpop.f32.mrb[0].mxu0
    %v2133 = vadd.f32 0.0, %v2132
    %v2134 = vpop.f32.mrb[0].mxu0
    %v2135 = vpop.f32.mrb[0].mxu0
    %2136 = vdwg.mxu0
    %v2137 = vadd.f32 %v2050, %v2090
    %v2138 = vadd.f32 %v2051, %v2092
    %v2139 = vadd.f32 %v2052, %v2131
    %v2140 = vadd.f32 %v2053, %v2133
    %v2141 = vtanh.pop %v2137
    %v2142 = vtanh.pop %v2138
    %v2143 = vtanh.pop %v2139
    %v2144 = vtanh.pop %v2140
    %v2145 = vmul.f32 %v2141, %v811
    %v2146 = vmul.f32 %v2142, %v815
    %v2147 = vmul.f32 %v2143, %v819
    %v2148 = vmul.f32 %v2144, %v823
    %v2149 = vadd.f32 %v2145, %v836
    %v2150 = vadd.f32 %v2146, %v840
    %v2151 = vadd.f32 %v2147, %v844
    %v2152 = vadd.f32 %v2148, %v848
    %v2153 = vmul.f32 %v2150, %v2047
    %v2154 = vmul.f32 %v2149, %v2151
    %v2155 = vadd.f32 %v2153, %v2154
    %v2156 = vtanh.pop %v2155
    %v2157 = vmul.f32 %v2152, %v2156
    %v2158 = vld [vmem:[#allocation2 + $0x1a0] sm:$0xff]
    %v2159 = vld [vmem:[#allocation2 + $0x1a8] sm:$0xff]
    %v2160 = vld [vmem:[#allocation2 + $0x1b0] sm:$0xff]
    %v2161 = vld [vmem:[#allocation2 + $0x1b8] sm:$0xff]
    %v2162 = vpack.c.bf16 %v2157, %v2157
    %2163 = vmatprep.subr.bf16.mxu0 %v654
    %2164 = vmatpush1.bf16.msra.mxu0 %v653
    %2165 = vmatprep.subr.bf16.mxu0 %v658
    %2166 = vmatpush1.bf16.msra.mxu0 %v657
    %2167 = vmatprep.subr.bf16.mxu0 %v662
    %2168 = vmatpush1.bf16.msra.mxu0 %v661
    %2169 = vmatprep.subr.bf16.mxu0 %v666
    %2170 = vmatpush1.bf16.msra.mxu0 %v665
    %2171 = vmatprep.subr.bf16.mxu0 %v670
    %2172 = vmatpush1.bf16.msra.mxu0 %v669
    %2173 = vmatprep.subr.bf16.mxu0 %v674
    %2174 = vmatpush1.bf16.msra.mxu0 %v673
    %2175 = vmatprep.subr.bf16.mxu0 %v678
    %2176 = vmatpush1.bf16.msra.mxu0 %v677
    %2177 = vmatprep.subr.bf16.mxu0 %v682
    %2178 = vmatpush1.bf16.msra.mxu0 %v681
    %2179 = vmatprep.subr.bf16.mxu0 0
    %2180 = vmatpush1.bf16.msra.mxu0 0
    %2181 = vmatprep.subr.bf16.mxu0 0
    %2182 = vmatpush1.bf16.msra.mxu0 0
    %2183 = vmatprep.subr.bf16.mxu0 0
    %2184 = vmatpush1.bf16.msra.mxu0 0
    %2185 = vmatprep.subr.bf16.mxu0 0
    %2186 = vmatpush1.bf16.msra.mxu0 0
    %2187 = vmatprep.subr.bf16.mxu0 0
    %2188 = vmatpush1.bf16.msra.mxu0 0
    %2189 = vmatprep.subr.bf16.mxu0 0
    %2190 = vmatpush1.bf16.msra.mxu0 0
    %2191 = vmatprep.subr.bf16.mxu0 0
    %2192 = vmatpush1.bf16.msra.mxu0 0
    %2193 = vmatprep.subr.bf16.mxu0 0
    %2194 = vmatpush1.bf16.msra.mxu0 0
    %2195 = vmatprep.mubr.bf16.mxu0 0
    %2196 = vmatmul.mubr.bf16.gmra.mrb[0].mxu0 %v2162
    %v2197 = vpop.f32.mrb[0].mxu0
    %v2198 = vadd.f32 0.0, %v2197
    %v2199 = vpop.f32.mrb[0].mxu0
    %v2200 = vadd.f32 0.0, %v2199
    %v2201 = vpop.f32.mrb[0].mxu0
    %v2202 = vpop.f32.mrb[0].mxu0
    %2203 = vdwg.mxu0
    %2204 = vmatprep.subr.bf16.mxu0 %v656
    %2205 = vmatpush1.bf16.msra.mxu0 %v655
    %2206 = vmatprep.subr.bf16.mxu0 %v660
    %2207 = vmatpush1.bf16.msra.mxu0 %v659
    %2208 = vmatprep.subr.bf16.mxu0 %v664
    %2209 = vmatpush1.bf16.msra.mxu0 %v663
    %2210 = vmatprep.subr.bf16.mxu0 %v668
    %2211 = vmatpush1.bf16.msra.mxu0 %v667
    %2212 = vmatprep.subr.bf16.mxu0 %v672
    %2213 = vmatpush1.bf16.msra.mxu0 %v671
    %2214 = vmatprep.subr.bf16.mxu0 %v676
    %2215 = vmatpush1.bf16.msra.mxu0 %v675
    %2216 = vmatprep.subr.bf16.mxu0 %v680
    %2217 = vmatpush1.bf16.msra.mxu0 %v679
    %2218 = vmatprep.subr.bf16.mxu0 %v684
    %2219 = vmatpush1.bf16.msra.mxu0 %v683
    %2220 = vmatprep.subr.bf16.mxu0 0
    %2221 = vmatpush1.bf16.msra.mxu0 0
    %2222 = vmatprep.subr.bf16.mxu0 0
    %2223 = vmatpush1.bf16.msra.mxu0 0
    %2224 = vmatprep.subr.bf16.mxu0 0
    %2225 = vmatpush1.bf16.msra.mxu0 0
    %2226 = vmatprep.subr.bf16.mxu0 0
    %2227 = vmatpush1.bf16.msra.mxu0 0
    %2228 = vmatprep.subr.bf16.mxu0 0
    %2229 = vmatpush1.bf16.msra.mxu0 0
    %2230 = vmatprep.subr.bf16.mxu0 0
    %2231 = vmatpush1.bf16.msra.mxu0 0
    %2232 = vmatprep.subr.bf16.mxu0 0
    %2233 = vmatpush1.bf16.msra.mxu0 0
    %2234 = vmatprep.subr.bf16.mxu0 0
    %2235 = vmatpush1.bf16.msra.mxu0 0
    %2236 = vmatprep.mubr.bf16.mxu0 0
    %2237 = vmatmul.mubr.bf16.gmra.mrb[0].mxu0 %v2162
    %v2238 = vpop.f32.mrb[0].mxu0
    %v2239 = vadd.f32 0.0, %v2238
    %v2240 = vpop.f32.mrb[0].mxu0
    %v2241 = vadd.f32 0.0, %v2240
    %v2242 = vpop.f32.mrb[0].mxu0
    %v2243 = vpop.f32.mrb[0].mxu0
    %2244 = vdwg.mxu0
    %v2245 = vadd.f32 %v2158, %v2198
    %v2246 = vadd.f32 %v2159, %v2200
    %v2247 = vadd.f32 %v2160, %v2239
    %v2248 = vadd.f32 %v2161, %v2241
    %v2249 = vtanh.pop %v2245
    %v2250 = vtanh.pop %v2246
    %v2251 = vtanh.pop %v2247
    %v2252 = vtanh.pop %v2248
    %v2253 = vmul.f32 %v2249, %v811
    %v2254 = vmul.f32 %v2250, %v815
    %v2255 = vmul.f32 %v2251, %v819
    %v2256 = vmul.f32 %v2252, %v823
    %v2257 = vadd.f32 %v2253, %v836
    %v2258 = vadd.f32 %v2254, %v840
    %v2259 = vadd.f32 %v2255, %v844
    %v2260 = vadd.f32 %v2256, %v848
    %v2261 = vmul.f32 %v2258, %v2155
    %v2262 = vmul.f32 %v2257, %v2259
    %v2263 = vadd.f32 %v2261, %v2262
    %v2264 = vtanh.pop %v2263
    %v2265 = vmul.f32 %v2260, %v2264
    %v2266 = vld [vmem:[#allocation2 + $0x1c0] sm:$0xff]
    %v2267 = vld [vmem:[#allocation2 + $0x1c8] sm:$0xff]
    %v2268 = vld [vmem:[#allocation2 + $0x1d0] sm:$0xff]
    %v2269 = vld [vmem:[#allocation2 + $0x1d8] sm:$0xff]
    %v2270 = vpack.c.bf16 %v2265, %v2265
    %2271 = vmatprep.subr.bf16.mxu0 %v654
    %2272 = vmatpush1.bf16.msra.mxu0 %v653
    %2273 = vmatprep.subr.bf16.mxu0 %v658
    %2274 = vmatpush1.bf16.msra.mxu0 %v657
    %2275 = vmatprep.subr.bf16.mxu0 %v662
    %2276 = vmatpush1.bf16.msra.mxu0 %v661
    %2277 = vmatprep.subr.bf16.mxu0 %v666
    %2278 = vmatpush1.bf16.msra.mxu0 %v665
    %2279 = vmatprep.subr.bf16.mxu0 %v670
    %2280 = vmatpush1.bf16.msra.mxu0 %v669
    %2281 = vmatprep.subr.bf16.mxu0 %v674
    %2282 = vmatpush1.bf16.msra.mxu0 %v673
    %2283 = vmatprep.subr.bf16.mxu0 %v678
    %2284 = vmatpush1.bf16.msra.mxu0 %v677
    %2285 = vmatprep.subr.bf16.mxu0 %v682
    %2286 = vmatpush1.bf16.msra.mxu0 %v681
    %2287 = vmatprep.subr.bf16.mxu0 0
    %2288 = vmatpush1.bf16.msra.mxu0 0
    %2289 = vmatprep.subr.bf16.mxu0 0
    %2290 = vmatpush1.bf16.msra.mxu0 0
    %2291 = vmatprep.subr.bf16.mxu0 0
    %2292 = vmatpush1.bf16.msra.mxu0 0
    %2293 = vmatprep.subr.bf16.mxu0 0
    %2294 = vmatpush1.bf16.msra.mxu0 0
    %2295 = vmatprep.subr.bf16.mxu0 0
    %2296 = vmatpush1.bf16.msra.mxu0 0
    %2297 = vmatprep.subr.bf16.mxu0 0
    %2298 = vmatpush1.bf16.msra.mxu0 0
    %2299 = vmatprep.subr.bf16.mxu0 0
    %2300 = vmatpush1.bf16.msra.mxu0 0
    %2301 = vmatprep.subr.bf16.mxu0 0
    %2302 = vmatpush1.bf16.msra.mxu0 0
    %2303 = vmatprep.mubr.bf16.mxu0 0
    %2304 = vmatmul.mubr.bf16.gmra.mrb[0].mxu0 %v2270
    %v2305 = vpop.f32.mrb[0].mxu0
    %v2306 = vadd.f32 0.0, %v2305
    %v2307 = vpop.f32.mrb[0].mxu0
    %v2308 = vadd.f32 0.0, %v2307
    %v2309 = vpop.f32.mrb[0].mxu0
    %v2310 = vpop.f32.mrb[0].mxu0
    %2311 = vdwg.mxu0
    %2312 = vmatprep.subr.bf16.mxu0 %v656
    %2313 = vmatpush1.bf16.msra.mxu0 %v655
    %2314 = vmatprep.subr.bf16.mxu0 %v660
    %2315 = vmatpush1.bf16.msra.mxu0 %v659
    %2316 = vmatprep.subr.bf16.mxu0 %v664
    %2317 = vmatpush1.bf16.msra.mxu0 %v663
    %2318 = vmatprep.subr.bf16.mxu0 %v668
    %2319 = vmatpush1.bf16.msra.mxu0 %v667
    %2320 = vmatprep.subr.bf16.mxu0 %v672
    %2321 = vmatpush1.bf16.msra.mxu0 %v671
    %2322 = vmatprep.subr.bf16.mxu0 %v676
    %2323 = vmatpush1.bf16.msra.mxu0 %v675
    %2324 = vmatprep.subr.bf16.mxu0 %v680
    %2325 = vmatpush1.bf16.msra.mxu0 %v679
    %2326 = vmatprep.subr.bf16.mxu0 %v684
    %2327 = vmatpush1.bf16.msra.mxu0 %v683
    %2328 = vmatprep.subr.bf16.mxu0 0
    %2329 = vmatpush1.bf16.msra.mxu0 0
    %2330 = vmatprep.subr.bf16.mxu0 0
    %2331 = vmatpush1.bf16.msra.mxu0 0
    %2332 = vmatprep.subr.bf16.mxu0 0
    %2333 = vmatpush1.bf16.msra.mxu0 0
    %2334 = vmatprep.subr.bf16.mxu0 0
    %2335 = vmatpush1.bf16.msra.mxu0 0
    %2336 = vmatprep.subr.bf16.mxu0 0
    %2337 = vmatpush1.bf16.msra.mxu0 0
    %2338 = vmatprep.subr.bf16.mxu0 0
    %2339 = vmatpush1.bf16.msra.mxu0 0
    %2340 = vmatprep.subr.bf16.mxu0 0
    %2341 = vmatpush1.bf16.msra.mxu0 0
    %2342 = vmatprep.subr.bf16.mxu0 0
    %2343 = vmatpush1.bf16.msra.mxu0 0
    %2344 = vmatprep.mubr.bf16.mxu0 0
    %2345 = vmatmul.mubr.bf16.gmra.mrb[0].mxu0 %v2270
    %v2346 = vpop.f32.mrb[0].mxu0
    %v2347 = vadd.f32 0.0, %v2346
    %v2348 = vpop.f32.mrb[0].mxu0
    %v2349 = vadd.f32 0.0, %v2348
    %v2350 = vpop.f32.mrb[0].mxu0
    %v2351 = vpop.f32.mrb[0].mxu0
    %2352 = vdwg.mxu0
    %v2353 = vadd.f32 %v2266, %v2306
    %v2354 = vadd.f32 %v2267, %v2308
    %v2355 = vadd.f32 %v2268, %v2347
    %v2356 = vadd.f32 %v2269, %v2349
    %v2357 = vtanh.pop %v2353
    %v2358 = vtanh.pop %v2354
    %v2359 = vtanh.pop %v2355
    %v2360 = vtanh.pop %v2356
    %v2361 = vmul.f32 %v2357, %v811
    %v2362 = vmul.f32 %v2358, %v815
    %v2363 = vmul.f32 %v2359, %v819
    %v2364 = vmul.f32 %v2360, %v823
    %v2365 = vadd.f32 %v2361, %v836
    %v2366 = vadd.f32 %v2362, %v840
    %v2367 = vadd.f32 %v2363, %v844
    %v2368 = vadd.f32 %v2364, %v848
    %v2369 = vmul.f32 %v2366, %v2263
    %v2370 = vmul.f32 %v2365, %v2367
    %v2371 = vadd.f32 %v2369, %v2370
    %v2372 = vtanh.pop %v2371
    %v2373 = vmul.f32 %v2368, %v2372
    %v2374 = vld [vmem:[%s5] sm:$0x1]
    %v2376 = vlaneseq
    %v2377 = vshrl.u32 %v2376, 7
    %v2378 = vsub.s32 0, %v2377
    %v2379 = vrot.slane %v2374, %v2378
    %v2381 = vmul.f32 %v2373, %v2379
    %2382 = vadd.xlane.f32.xlu0 %v2381
    %v2383 = vpop.xlane.xlu0 %2382
    %v2384 = vld [vmem:[#allocation3] sm:$0x1]
    %v2386 = vlaneseq
    %v2387 = vshrl.u32 %v2386, 7
    %v2388 = vsub.s32 0, %v2387
    %v2389 = vrot.slane %v2384, %v2388
    %v2391 = vadd.f32 %v2383, %v2389
    %vm2392 = vcmask 7168
    %2393 = vst.msk [vmem:[%s7] sm:$0xff] %vm2392, %v2391
    // Predicated region
    $region42: #{tpu_custom_call.1} parent=1 // pred_check
      _
    $region43: #{tpu_custom_call.1} parent=1 // pred_check_branch
      %2395 = sbr.rel (0) target = $region45
    $region44: #{tpu_custom_call.1} parent=1 // pred_region
      _
    $region45: #{tpu_custom_call.1} parent=1 // pred_fallthru
      _
    // Predicated region
    $region46: #{tpu_custom_call.1} parent=1 // pred_check
      _
    $region47: #{tpu_custom_call.1} parent=1 // pred_check_branch
      %2397 = sbr.rel (0) target = $region49
    $region48: #{tpu_custom_call.1} parent=1 // pred_region
      _
    $region49: #{tpu_custom_call.1} parent=1 // pred_fallthru
      _
    %2398 = vsyncpa [#allocation5], 1
    %2399 = vsyncpa [#allocation7], 1

</llo_original>
